<compile_context>
chip_gen: v7x
topology: tpu7x:2x2x1
jax: 0.10.0
libtpu: 0.0.40
codegen_flags: <defaults>
</compile_context>

<pallas_src>
import jax
import jax.numpy as jnp
import numpy as np
from jax import lax
from jax.experimental import pallas as pl
from jax.experimental.pallas import tpu as pltpu


def _round_up(x, m):
    return (x + m - 1) // m * m


def _default_use_bf16_mxu():
    """bf16 MXU operands on v6e/v7x (per perf review); f32 elsewhere."""
    try:
        kind = jax.devices()[0].device_kind.lower()
    except Exception:
        return False
    return ("v6" in kind) or ("v7" in kind) or ("tpu7" in kind)


# ----------------------------------------------------------------------------
# Fused Pallas kernel
# ----------------------------------------------------------------------------
def make_fused_kernel(num_layers, T, Bp, H, unroll):
    """Kernel args (inputs, outputs, scratch):
      x_ref                      : (T*Bp, E)   time-major, batch-padded input
      per layer: wih (Ein, 4H), whh (H, 4H), b (1, 4H)   -- gate order i,f,o,g
      linw_ref (H, tile_v), linb_ref (1, tile_v)         -- vocab tile
      out_ref  (T*Bp, tile_v)
      scratch : xw_ref (T*Bp, 4H) f32, hs_ref (T*Bp, H) f32
    """

    def kernel(*args):
        x_ref = args[0]
        layer_refs = args[1:1 + 3 * num_layers]
        linw_ref = args[1 + 3 * num_layers]
        linb_ref = args[2 + 3 * num_layers]
        out_ref = args[3 + 3 * num_layers]
        xw_ref = args[4 + 3 * num_layers]
        hs_ref = args[5 + 3 * num_layers]

        # The serial LSTM phase runs exactly once (first vocab tile); its
        # hidden-sequence slab persists in VMEM scratch across vocab tiles.
        @pl.when(pl.program_id(0) == 0)
        def _lstm_phase():
            for layer in range(num_layers):
                wih_ref = layer_refs[3 * layer + 0]
                whh_ref = layer_refs[3 * layer + 1]
                b_ref = layer_refs[3 * layer + 2]

                # Hoisted input projection: one big MXU matmul for the whole
                # sequence, bias folded in.  (T*Bp, Ein)@(Ein, 4H) -> (T*Bp,4H)
                src_ref = x_ref if layer == 0 else hs_ref
                xw_ref[...] = (
                    jnp.dot(src_ref[...].astype(wih_ref.dtype), wih_ref[...],
                            preferred_element_type=jnp.float32)
                    + b_ref[...]
                )

                whh = whh_ref[...]  # (H, 4H), gate order (i, f, o, g)

                def step(t, carry, whh=whh):
                    h, c = carry
                    row = pl.multiple_of(t * Bp, Bp)      # tile-aligned rows
                    gates = xw_ref[pl.ds(row, Bp), :] + jnp.dot(
                        h.astype(whh.dtype), whh,
                        preferred_element_type=jnp.float32)   # (Bp, 4H) f32
                    # Gate order (i, f, o | g): sigmoid over 3H, tanh over H
                    # -> 4H transcendental elems/step instead of 8H.
                    sig = jax.nn.sigmoid(gates[:, :3 * H])
                    g_g = jnp.tanh(gates[:, 3 * H:])
                    i_g = sig[:, 0 * H:1 * H]
                    f_g = sig[:, 1 * H:2 * H]
                    o_g = sig[:, 2 * H:3 * H]
                    c_new = f_g * c + i_g * g_g
                    h_new = o_g * jnp.tanh(c_new)
                    hs_ref[pl.ds(row, Bp), :] = h_new.astype(hs_ref.dtype)
                    return h_new, c_new

                init = (jnp.zeros((Bp, H), jnp.float32),
                        jnp.zeros((Bp, H), jnp.float32))
                lax.fori_loop(0, T, step, init, unroll=unroll)

        # Final linear, one lane-dense vocab tile per grid step.
        out_ref[...] = (
            jnp.dot(hs_ref[...].astype(linw_ref.dtype), linw_ref[...],
                    preferred_element_type=jnp.float32)
            + linb_ref[...]
        ).astype(out_ref.dtype)

    return kernel


def _vmem_limit_bytes(num_layers, T, Bp, E, H, Vp, tile_v, wdt):
    N = T * Bp
    wbytes = jnp.dtype(wdt).itemsize
    est = N * E * wbytes                                    # x2d (resident)
    e_in = E
    for _ in range(num_layers):
        est += (e_in * 4 * H + H * 4 * H) * wbytes + 4 * H * 4
        e_in = H
    est += 2 * (H * tile_v * wbytes + tile_v * 4)           # linw/linb (2-buf)
    est += 2 * (N * tile_v * 4)                              # out tile (2-buf)
    est += N * 4 * H * 4 + N * H * 4                         # xw + hs scratch
    return int(min(max(2 * est + (8 << 20), 32 << 20), 60 << 20))


def build_fused_call(num_layers, T, Bp, E, H, Vp, compute_dtype, unroll):
    N = T * Bp

    # Vocab tiling: whole array for small Vp, lane-dense tiles otherwise.
    if Vp <= 1024:
        tile_v = Vp
    else:
        tile_v = 128
        for cand in (1024, 512, 256):
            if Vp % cand == 0:
                tile_v = cand
                break
    grid = (Vp // tile_v,)

    kernel = make_fused_kernel(num_layers, T, Bp, H, unroll)
    vmem_full = pl.BlockSpec(memory_space=pltpu.MemorySpace.VMEM)
    in_specs = [vmem_full] * (1 + 3 * num_layers) + [
        pl.BlockSpec((H, tile_v), lambda v: (0, v)),   # linear weight tile
        pl.BlockSpec((1, tile_v), lambda v: (0, v)),   # linear bias tile
    ]
    out_specs = pl.BlockSpec((N, tile_v), lambda v: (0, v))

    vmem_limit = _vmem_limit_bytes(num_layers, T, Bp, E, H, Vp, tile_v,
                                   compute_dtype)

    return pl.pallas_call(
        kernel,
        out_shape=jax.ShapeDtypeStruct((N, Vp), jnp.float32),
        grid_spec=pltpu.PrefetchScalarGridSpec(
            num_scalar_prefetch=0,
            grid=grid,
            in_specs=in_specs,
            out_specs=out_specs,
            scratch_shapes=[
                pltpu.VMEM((N, 4 * H), jnp.float32),   # hoisted input proj
                pltpu.VMEM((N, H), jnp.float32),       # per-layer hidden seq
            ]),
        compiler_params=pltpu.CompilerParams(
            dimension_semantics=("arbitrary",),   # LSTM phase only at pid 0
            vmem_limit_bytes=vmem_limit),
    )


# ----------------------------------------------------------------------------
# Weight prep (once, outside jit) and jitted forward
# ----------------------------------------------------------------------------
def _reorder_gates_ifgo_to_ifog(w, H):
    """Permute the stacked-gate leading axis from (i,f,g,o) to (i,f,o,g)."""
    return jnp.concatenate(
        [w[0 * H:1 * H], w[1 * H:2 * H], w[3 * H:4 * H], w[2 * H:3 * H]],
        axis=0)


def prepare_params(params, use_bf16_mxu=False):
    """Pre-transpose weights, reorder gates, fold biases, pad vocab to 128."""
    wdt = jnp.bfloat16 if use_bf16_mxu else jnp.float32
    lstm = []
    for lyr in params["lstm"]:
        H = lyr["w_hh"].shape[1]
        w_ih = _reorder_gates_ifgo_to_ifog(lyr["w_ih"], H)       # (4H, Ein)
        w_hh = _reorder_gates_ifgo_to_ifog(lyr["w_hh"], H)       # (4H, H)
        bias = _reorder_gates_ifgo_to_ifog(lyr["b_ih"] + lyr["b_hh"], H)
        lstm.append({
            "wih_t": jnp.transpose(w_ih).astype(wdt),            # (Ein, 4H)
            "whh_t": jnp.transpose(w_hh).astype(wdt),            # (H, 4H)
            "bias": bias.reshape(1, -1).astype(jnp.float32),     # (1, 4H)
        })
    V, H = params["lin_w"].shape
    Vp = _round_up(V, 128)
    linw_t = jnp.pad(jnp.transpose(params["lin_w"]),
                     ((0, 0), (0, Vp - V))).astype(wdt)          # (H, Vp)
    linb = jnp.pad(params["lin_b"], (0, Vp - V)).reshape(1, Vp)  # (1, Vp)
    linb = linb.astype(jnp.float32)
    return {"embed": params["embed"], "lstm": lstm,
            "linw_t": linw_t, "linb": linb}


def make_decoder_forward(num_layers, batch, caption_len, embed_size,
                         hidden_size, vocab_size, use_bf16_mxu=False):
    T = caption_len + 1                       # features prepended along time
    Bp = _round_up(max(batch, 8), 8)          # pad batch to sublane multiple
    Vp = _round_up(vocab_size, 128)
    wdt = jnp.bfloat16 if use_bf16_mxu else jnp.float32
    unroll = True if T <= 32 else 8           # avoid instruction bloat at big T
    fused = build_fused_call(num_layers, T, Bp, embed_size, hidden_size, Vp,
                             wdt, unroll)

    @jax.jit
    def forward(prepared, features, captions):
        # Embedding lookup + concat(features, embeddings) along time (glue).
        emb = jnp.take(prepared["embed"], captions, axis=0)       # (B, Tc, E)
        x = jnp.concatenate([features[:, None, :], emb], axis=1)  # (B, T, E)
        x_tm = jnp.transpose(x, (1, 0, 2))                        # (T, B, E)
        x_tm = jnp.pad(x_tm, ((0, 0), (0, Bp - batch), (0, 0)))   # (T, Bp, E)
        x2d = x_tm.reshape(T * Bp, embed_size).astype(wdt)

        args = [x2d]
        for lyr in prepared["lstm"]:
            args += [lyr["wih_t"], lyr["whh_t"], lyr["bias"]]
        args += [prepared["linw_t"], prepared["linb"]]

        out2d = fused(*args)                                      # (T*Bp, Vp)
        out = out2d.reshape(T, Bp, Vp)[:, :batch, :vocab_size]    # (T, B, V)
        return jnp.transpose(out, (1, 0, 2))                      # (B, T, V)

    return forward


# ----------------------------------------------------------------------------
# Pure-JAX reference (PyTorch semantics, original gate order)
# ----------------------------------------------------------------------------
def reference_forward(params, features, captions):
    embeddings = jnp.take(params["embed"], captions, axis=0)
    x = jnp.concatenate([features[:, None, :], embeddings], axis=1)
    B = x.shape[0]
    for layer in params["lstm"]:
        H = layer["w_hh"].shape[1]
        w_ih_t = layer["w_ih"].T
        w_hh_t = layer["w_hh"].T
        bias = layer["b_ih"] + layer["b_hh"]

        def step(carry, x_t):
            h, c = carry
            gates = x_t @ w_ih_t + h @ w_hh_t + bias
            i = jax.nn.sigmoid(gates[:, 0 * H:1 * H])
            f = jax.nn.sigmoid(gates[:, 1 * H:2 * H])
            g = jnp.tanh(gates[:, 2 * H:3 * H])
            o = jax.nn.sigmoid(gates[:, 3 * H:4 * H])
            c = f * c + i * g
            h = o * jnp.tanh(c)
            return (h, c), h

        init = (jnp.zeros((B, H), jnp.float32), jnp.zeros((B, H), jnp.float32))
        _, hs = lax.scan(step, init, jnp.transpose(x, (1, 0, 2)))
        x = jnp.transpose(hs, (1, 0, 2))
    return x @ params["lin_w"].T + params["lin_b"]


# ----------------------------------------------------------------------------
# Main
# ----------------------------------------------------------------------------
if __name__ == "__main__":
    batch = 2
    seq = 8            # caption length -> sequence length T = 9 after concat
    embed_size = 32
    hidden_size = 32
    vocab_size = 64
    num_layers = 2

    USE_BF16_MXU = _default_use_bf16_mxu()   # bf16 MXU operands on v6e/v7x

    key = jax.random.PRNGKey(0)
    keys = jax.random.split(key, 4 + 4 * num_layers)

    def init(k, shape, scale=0.1):
        return jax.random.uniform(k, shape, jnp.float32, -1.0, 1.0) * scale

    lstm_params = []
    kidx = 0
    for layer in range(num_layers):
        in_sz = embed_size if layer == 0 else hidden_size
        lstm_params.append({
            "w_ih": init(keys[kidx + 0], (4 * hidden_size, in_sz)),
            "w_hh": init(keys[kidx + 1], (4 * hidden_size, hidden_size)),
            "b_ih": init(keys[kidx + 2], (4 * hidden_size,)),
            "b_hh": init(keys[kidx + 3], (4 * hidden_size,)),
        })
        kidx += 4

    params = {
        "embed": init(keys[kidx + 0], (vocab_size, embed_size), scale=1.0),
        "lstm": lstm_params,
        "lin_w": init(keys[kidx + 1], (vocab_size, hidden_size)),
        "lin_b": init(keys[kidx + 2], (vocab_size,)),
    }

    features = init(keys[kidx + 3], (batch, embed_size), scale=1.0)
    captions = jax.random.randint(
        jax.random.PRNGKey(42), (batch, seq), 0, vocab_size, dtype=jnp.int32
    )

    prepared = prepare_params(params, use_bf16_mxu=USE_BF16_MXU)
    forward = make_decoder_forward(num_layers, batch, seq, embed_size,
                                   hidden_size, vocab_size,
                                   use_bf16_mxu=USE_BF16_MXU)

    out = forward(prepared, features, captions)
    out = jax.block_until_ready(out)

    ref = reference_forward(params, features, captions)
    assert out.shape == (batch, seq + 1, vocab_size), out.shape
    tol = 2e-2 if USE_BF16_MXU else 1e-4
    np.testing.assert_allclose(np.asarray(out), np.asarray(ref),
                               atol=tol, rtol=tol)

    print("KERNEL_OK")
</pallas_src>

<mosaic_0001>
module attributes {stable_mosaic.version = 11 : i64} {
  func.func @kernel(%arg0: i32, %arg1: memref<72x32xf32, #tpu.memory_space<vmem>>, %arg2: memref<32x128xf32, #tpu.memory_space<vmem>>, %arg3: memref<32x128xf32, #tpu.memory_space<vmem>>, %arg4: memref<1x128xf32, #tpu.memory_space<vmem>>, %arg5: memref<32x128xf32, #tpu.memory_space<vmem>>, %arg6: memref<32x128xf32, #tpu.memory_space<vmem>>, %arg7: memref<1x128xf32, #tpu.memory_space<vmem>>, %arg8: memref<32x128xf32, #tpu.memory_space<vmem>>, %arg9: memref<1x128xf32, #tpu.memory_space<vmem>>, %arg10: memref<72x128xf32, #tpu.memory_space<vmem>>, %arg11: memref<72x128xf32, #tpu.memory_space<vmem>>, %arg12: memref<72x32xf32, #tpu.memory_space<vmem>>) attributes {dimension_semantics = [#tpu.dimension_semantics<arbitrary>], iteration_bounds = array<i64: 1>, scalar_prefetch = 0 : i64, scratch_operands = 2 : i64, tpu.core_type = #tpu.core_type<tc>, window_params = [{pipeline_mode = #tpu.pipeline_mode<synchronous>, transform_indices = @transform_0, window_bounds = array<i64: 72, 32>}, {pipeline_mode = #tpu.pipeline_mode<synchronous>, transform_indices = @transform_1, window_bounds = array<i64: 32, 128>}, {pipeline_mode = #tpu.pipeline_mode<synchronous>, transform_indices = @transform_2, window_bounds = array<i64: 32, 128>}, {pipeline_mode = #tpu.pipeline_mode<synchronous>, transform_indices = @transform_3, window_bounds = array<i64: 1, 128>}, {pipeline_mode = #tpu.pipeline_mode<synchronous>, transform_indices = @transform_4, window_bounds = array<i64: 32, 128>}, {pipeline_mode = #tpu.pipeline_mode<synchronous>, transform_indices = @transform_5, window_bounds = array<i64: 32, 128>}, {pipeline_mode = #tpu.pipeline_mode<synchronous>, transform_indices = @transform_6, window_bounds = array<i64: 1, 128>}, {transform_indices = @transform_7, window_bounds = array<i64: 32, 128>}, {transform_indices = @transform_8, window_bounds = array<i64: 1, 128>}, {transform_indices = @transform_9, window_bounds = array<i64: 72, 128>}]} {
    %c0_i32 = arith.constant 0 : i32
    %0 = arith.cmpi eq, %arg0, %c0_i32 : i32
    %1 = arith.extui %0 : i1 to i32
    %c0_i32_0 = arith.constant 0 : i32
    %2 = arith.cmpi ne, %1, %c0_i32_0 : i32
    scf.if %2 {
      %c0_8 = arith.constant 0 : index
      %c0_9 = arith.constant 0 : index
      %10 = vector.load %arg1[%c0_8, %c0_9] : memref<72x32xf32, #tpu.memory_space<vmem>>, vector<72x32xf32>
      %c0_10 = arith.constant 0 : index
      %c0_11 = arith.constant 0 : index
      %11 = vector.load %arg2[%c0_10, %c0_11] : memref<32x128xf32, #tpu.memory_space<vmem>>, vector<32x128xf32>
      %cst_12 = arith.constant dense<0.000000e+00> : vector<72x128xf32>
      %12 = tpu.matmul %10, %11, %cst_12 {dimension_numbers = #tpu.dot_dimension_numbers<[1], [0], [0], [1], [0, 0, 1, 1], [], []>} : vector<72x32xf32>, vector<32x128xf32>, vector<72x128xf32> -> vector<72x128xf32>
      %c0_13 = arith.constant 0 : index
      %c0_14 = arith.constant 0 : index
      %13 = vector.load %arg4[%c0_13, %c0_14] : memref<1x128xf32, #tpu.memory_space<vmem>>, vector<1x128xf32>
      %14 = vector.broadcast %13 : vector<1x128xf32> to vector<72x128xf32>
      %15 = arith.addf %12, %14 : vector<72x128xf32>
      %c0_15 = arith.constant 0 : index
      %c0_16 = arith.constant 0 : index
      %16 = vector.load %arg11[%c0_15, %c0_16] : memref<72x128xf32, #tpu.memory_space<vmem>>, vector<72x128xf32>
      tpu.vector_store %arg11[%c0_15, %c0_16], %15 {strides = array<i32>} : memref<72x128xf32, #tpu.memory_space<vmem>>, vector<72x128xf32>,
      %c0_17 = arith.constant 0 : index
      %c0_18 = arith.constant 0 : index
      %17 = vector.load %arg3[%c0_17, %c0_18] : memref<32x128xf32, #tpu.memory_space<vmem>>, vector<32x128xf32>
      %cst_19 = arith.constant 0.000000e+00 : f32
      %18 = vector.broadcast %cst_19 : f32 to vector<8x32xf32>
      %cst_20 = arith.constant 0.000000e+00 : f32
      %19 = vector.broadcast %cst_20 : f32 to vector<8x32xf32>
      %c0_i32_21 = arith.constant 0 : i32
      %c8_i32 = arith.constant 8 : i32
      %20 = arith.muli %c0_i32_21, %c8_i32 : i32
      %21 = tpu.assume_multiple %20, 8 : i32
      %22 = arith.index_cast %21 : i32 to index
      %c0_22 = arith.constant 0 : index
      %23 = vector.load %arg11[%22, %c0_22] : memref<72x128xf32, #tpu.memory_space<vmem>>, vector<8x128xf32>
      %cst_23 = arith.constant dense<0.000000e+00> : vector<8x128xf32>
      %24 = tpu.matmul %18, %17, %cst_23 {dimension_numbers = #tpu.dot_dimension_numbers<[1], [0], [0], [1], [0, 0, 1, 1], [], []>} : vector<8x32xf32>, vector<32x128xf32>, vector<8x128xf32> -> vector<8x128xf32>
      %25 = arith.addf %23, %24 : vector<8x128xf32>
      %26 = vector.extract_strided_slice %25 {offsets = [0, 0], sizes = [8, 96], strides = [1, 1]} : vector<8x128xf32> to vector<8x96xf32>
      %27 = arith.negf %26 : vector<8x96xf32>
      %28 = math.exp %27 : vector<8x96xf32>
      %cst_24 = arith.constant 1.000000e+00 : f32
      %29 = vector.broadcast %cst_24 : f32 to vector<8x96xf32>
      %30 = arith.addf %29, %28 : vector<8x96xf32>
      %31 = arith.divf %29, %30 : vector<8x96xf32>
      %32 = vector.extract_strided_slice %25 {offsets = [0, 96], sizes = [8, 32], strides = [1, 1]} : vector<8x128xf32> to vector<8x32xf32>
      %33 = math.tanh %32 : vector<8x32xf32>
      %34 = vector.extract_strided_slice %31 {offsets = [0, 0], sizes = [8, 32], strides = [1, 1]} : vector<8x96xf32> to vector<8x32xf32>
      %35 = vector.extract_strided_slice %31 {offsets = [0, 32], sizes = [8, 32], strides = [1, 1]} : vector<8x96xf32> to vector<8x32xf32>
      %36 = vector.extract_strided_slice %31 {offsets = [0, 64], sizes = [8, 32], strides = [1, 1]} : vector<8x96xf32> to vector<8x32xf32>
      %37 = arith.mulf %35, %19 : vector<8x32xf32>
      %38 = arith.mulf %34, %33 : vector<8x32xf32>
      %39 = arith.addf %37, %38 : vector<8x32xf32>
      %40 = math.tanh %39 : vector<8x32xf32>
      %41 = arith.mulf %36, %40 : vector<8x32xf32>
      %42 = arith.index_cast %21 : i32 to index
      %c0_25 = arith.constant 0 : index
      %43 = vector.load %arg12[%42, %c0_25] : memref<72x32xf32, #tpu.memory_space<vmem>>, vector<8x32xf32>
      tpu.vector_store %arg12[%42, %c0_25], %41 {strides = array<i32>} : memref<72x32xf32, #tpu.memory_space<vmem>>, vector<8x32xf32>,
      %c1_i32 = arith.constant 1 : i32
      %c8_i32_26 = arith.constant 8 : i32
      %44 = arith.muli %c1_i32, %c8_i32_26 : i32
      %45 = tpu.assume_multiple %44, 8 : i32
      %46 = arith.index_cast %45 : i32 to index
      %c0_27 = arith.constant 0 : index
      %47 = vector.load %arg11[%46, %c0_27] : memref<72x128xf32, #tpu.memory_space<vmem>>, vector<8x128xf32>
      %cst_28 = arith.constant dense<0.000000e+00> : vector<8x128xf32>
      %48 = tpu.matmul %41, %17, %cst_28 {dimension_numbers = #tpu.dot_dimension_numbers<[1], [0], [0], [1], [0, 0, 1, 1], [], []>} : vector<8x32xf32>, vector<32x128xf32>, vector<8x128xf32> -> vector<8x128xf32>
      %49 = arith.addf %47, %48 : vector<8x128xf32>
      %50 = vector.extract_strided_slice %49 {offsets = [0, 0], sizes = [8, 96], strides = [1, 1]} : vector<8x128xf32> to vector<8x96xf32>
      %51 = arith.negf %50 : vector<8x96xf32>
      %52 = math.exp %51 : vector<8x96xf32>
      %cst_29 = arith.constant 1.000000e+00 : f32
      %53 = vector.broadcast %cst_29 : f32 to vector<8x96xf32>
      %54 = arith.addf %53, %52 : vector<8x96xf32>
      %55 = arith.divf %53, %54 : vector<8x96xf32>
      %56 = vector.extract_strided_slice %49 {offsets = [0, 96], sizes = [8, 32], strides = [1, 1]} : vector<8x128xf32> to vector<8x32xf32>
      %57 = math.tanh %56 : vector<8x32xf32>
      %58 = vector.extract_strided_slice %55 {offsets = [0, 0], sizes = [8, 32], strides = [1, 1]} : vector<8x96xf32> to vector<8x32xf32>
      %59 = vector.extract_strided_slice %55 {offsets = [0, 32], sizes = [8, 32], strides = [1, 1]} : vector<8x96xf32> to vector<8x32xf32>
      %60 = vector.extract_strided_slice %55 {offsets = [0, 64], sizes = [8, 32], strides = [1, 1]} : vector<8x96xf32> to vector<8x32xf32>
      %61 = arith.mulf %59, %39 : vector<8x32xf32>
      %62 = arith.mulf %58, %57 : vector<8x32xf32>
      %63 = arith.addf %61, %62 : vector<8x32xf32>
      %64 = math.tanh %63 : vector<8x32xf32>
      %65 = arith.mulf %60, %64 : vector<8x32xf32>
      %66 = arith.index_cast %45 : i32 to index
      %c0_30 = arith.constant 0 : index
      %67 = vector.load %arg12[%66, %c0_30] : memref<72x32xf32, #tpu.memory_space<vmem>>, vector<8x32xf32>
      tpu.vector_store %arg12[%66, %c0_30], %65 {strides = array<i32>} : memref<72x32xf32, #tpu.memory_space<vmem>>, vector<8x32xf32>,
      %c2_i32 = arith.constant 2 : i32
      %c8_i32_31 = arith.constant 8 : i32
      %68 = arith.muli %c2_i32, %c8_i32_31 : i32
      %69 = tpu.assume_multiple %68, 8 : i32
      %70 = arith.index_cast %69 : i32 to index
      %c0_32 = arith.constant 0 : index
      %71 = vector.load %arg11[%70, %c0_32] : memref<72x128xf32, #tpu.memory_space<vmem>>, vector<8x128xf32>
      %cst_33 = arith.constant dense<0.000000e+00> : vector<8x128xf32>
      %72 = tpu.matmul %65, %17, %cst_33 {dimension_numbers = #tpu.dot_dimension_numbers<[1], [0], [0], [1], [0, 0, 1, 1], [], []>} : vector<8x32xf32>, vector<32x128xf32>, vector<8x128xf32> -> vector<8x128xf32>
      %73 = arith.addf %71, %72 : vector<8x128xf32>
      %74 = vector.extract_strided_slice %73 {offsets = [0, 0], sizes = [8, 96], strides = [1, 1]} : vector<8x128xf32> to vector<8x96xf32>
      %75 = arith.negf %74 : vector<8x96xf32>
      %76 = math.exp %75 : vector<8x96xf32>
      %cst_34 = arith.constant 1.000000e+00 : f32
      %77 = vector.broadcast %cst_34 : f32 to vector<8x96xf32>
      %78 = arith.addf %77, %76 : vector<8x96xf32>
      %79 = arith.divf %77, %78 : vector<8x96xf32>
      %80 = vector.extract_strided_slice %73 {offsets = [0, 96], sizes = [8, 32], strides = [1, 1]} : vector<8x128xf32> to vector<8x32xf32>
      %81 = math.tanh %80 : vector<8x32xf32>
      %82 = vector.extract_strided_slice %79 {offsets = [0, 0], sizes = [8, 32], strides = [1, 1]} : vector<8x96xf32> to vector<8x32xf32>
      %83 = vector.extract_strided_slice %79 {offsets = [0, 32], sizes = [8, 32], strides = [1, 1]} : vector<8x96xf32> to vector<8x32xf32>
      %84 = vector.extract_strided_slice %79 {offsets = [0, 64], sizes = [8, 32], strides = [1, 1]} : vector<8x96xf32> to vector<8x32xf32>
      %85 = arith.mulf %83, %63 : vector<8x32xf32>
      %86 = arith.mulf %82, %81 : vector<8x32xf32>
      %87 = arith.addf %85, %86 : vector<8x32xf32>
      %88 = math.tanh %87 : vector<8x32xf32>
      %89 = arith.mulf %84, %88 : vector<8x32xf32>
      %90 = arith.index_cast %69 : i32 to index
      %c0_35 = arith.constant 0 : index
      %91 = vector.load %arg12[%90, %c0_35] : memref<72x32xf32, #tpu.memory_space<vmem>>, vector<8x32xf32>
      tpu.vector_store %arg12[%90, %c0_35], %89 {strides = array<i32>} : memref<72x32xf32, #tpu.memory_space<vmem>>, vector<8x32xf32>,
      %c3_i32 = arith.constant 3 : i32
      %c8_i32_36 = arith.constant 8 : i32
      %92 = arith.muli %c3_i32, %c8_i32_36 : i32
      %93 = tpu.assume_multiple %92, 8 : i32
      %94 = arith.index_cast %93 : i32 to index
      %c0_37 = arith.constant 0 : index
      %95 = vector.load %arg11[%94, %c0_37] : memref<72x128xf32, #tpu.memory_space<vmem>>, vector<8x128xf32>
      %cst_38 = arith.constant dense<0.000000e+00> : vector<8x128xf32>
      %96 = tpu.matmul %89, %17, %cst_38 {dimension_numbers = #tpu.dot_dimension_numbers<[1], [0], [0], [1], [0, 0, 1, 1], [], []>} : vector<8x32xf32>, vector<32x128xf32>, vector<8x128xf32> -> vector<8x128xf32>
      %97 = arith.addf %95, %96 : vector<8x128xf32>
      %98 = vector.extract_strided_slice %97 {offsets = [0, 0], sizes = [8, 96], strides = [1, 1]} : vector<8x128xf32> to vector<8x96xf32>
      %99 = arith.negf %98 : vector<8x96xf32>
      %100 = math.exp %99 : vector<8x96xf32>
      %cst_39 = arith.constant 1.000000e+00 : f32
      %101 = vector.broadcast %cst_39 : f32 to vector<8x96xf32>
      %102 = arith.addf %101, %100 : vector<8x96xf32>
      %103 = arith.divf %101, %102 : vector<8x96xf32>
      %104 = vector.extract_strided_slice %97 {offsets = [0, 96], sizes = [8, 32], strides = [1, 1]} : vector<8x128xf32> to vector<8x32xf32>
      %105 = math.tanh %104 : vector<8x32xf32>
      %106 = vector.extract_strided_slice %103 {offsets = [0, 0], sizes = [8, 32], strides = [1, 1]} : vector<8x96xf32> to vector<8x32xf32>
      %107 = vector.extract_strided_slice %103 {offsets = [0, 32], sizes = [8, 32], strides = [1, 1]} : vector<8x96xf32> to vector<8x32xf32>
      %108 = vector.extract_strided_slice %103 {offsets = [0, 64], sizes = [8, 32], strides = [1, 1]} : vector<8x96xf32> to vector<8x32xf32>
      %109 = arith.mulf %107, %87 : vector<8x32xf32>
      %110 = arith.mulf %106, %105 : vector<8x32xf32>
      %111 = arith.addf %109, %110 : vector<8x32xf32>
      %112 = math.tanh %111 : vector<8x32xf32>
      %113 = arith.mulf %108, %112 : vector<8x32xf32>
      %114 = arith.index_cast %93 : i32 to index
      %c0_40 = arith.constant 0 : index
      %115 = vector.load %arg12[%114, %c0_40] : memref<72x32xf32, #tpu.memory_space<vmem>>, vector<8x32xf32>
      tpu.vector_store %arg12[%114, %c0_40], %113 {strides = array<i32>} : memref<72x32xf32, #tpu.memory_space<vmem>>, vector<8x32xf32>,
      %c4_i32 = arith.constant 4 : i32
      %c8_i32_41 = arith.constant 8 : i32
      %116 = arith.muli %c4_i32, %c8_i32_41 : i32
      %117 = tpu.assume_multiple %116, 8 : i32
      %118 = arith.index_cast %117 : i32 to index
      %c0_42 = arith.constant 0 : index
      %119 = vector.load %arg11[%118, %c0_42] : memref<72x128xf32, #tpu.memory_space<vmem>>, vector<8x128xf32>
      %cst_43 = arith.constant dense<0.000000e+00> : vector<8x128xf32>
      %120 = tpu.matmul %113, %17, %cst_43 {dimension_numbers = #tpu.dot_dimension_numbers<[1], [0], [0], [1], [0, 0, 1, 1], [], []>} : vector<8x32xf32>, vector<32x128xf32>, vector<8x128xf32> -> vector<8x128xf32>
      %121 = arith.addf %119, %120 : vector<8x128xf32>
      %122 = vector.extract_strided_slice %121 {offsets = [0, 0], sizes = [8, 96], strides = [1, 1]} : vector<8x128xf32> to vector<8x96xf32>
      %123 = arith.negf %122 : vector<8x96xf32>
      %124 = math.exp %123 : vector<8x96xf32>
      %cst_44 = arith.constant 1.000000e+00 : f32
      %125 = vector.broadcast %cst_44 : f32 to vector<8x96xf32>
      %126 = arith.addf %125, %124 : vector<8x96xf32>
      %127 = arith.divf %125, %126 : vector<8x96xf32>
      %128 = vector.extract_strided_slice %121 {offsets = [0, 96], sizes = [8, 32], strides = [1, 1]} : vector<8x128xf32> to vector<8x32xf32>
      %129 = math.tanh %128 : vector<8x32xf32>
      %130 = vector.extract_strided_slice %127 {offsets = [0, 0], sizes = [8, 32], strides = [1, 1]} : vector<8x96xf32> to vector<8x32xf32>
      %131 = vector.extract_strided_slice %127 {offsets = [0, 32], sizes = [8, 32], strides = [1, 1]} : vector<8x96xf32> to vector<8x32xf32>
      %132 = vector.extract_strided_slice %127 {offsets = [0, 64], sizes = [8, 32], strides = [1, 1]} : vector<8x96xf32> to vector<8x32xf32>
      %133 = arith.mulf %131, %111 : vector<8x32xf32>
      %134 = arith.mulf %130, %129 : vector<8x32xf32>
      %135 = arith.addf %133, %134 : vector<8x32xf32>
      %136 = math.tanh %135 : vector<8x32xf32>
      %137 = arith.mulf %132, %136 : vector<8x32xf32>
      %138 = arith.index_cast %117 : i32 to index
      %c0_45 = arith.constant 0 : index
      %139 = vector.load %arg12[%138, %c0_45] : memref<72x32xf32, #tpu.memory_space<vmem>>, vector<8x32xf32>
      tpu.vector_store %arg12[%138, %c0_45], %137 {strides = array<i32>} : memref<72x32xf32, #tpu.memory_space<vmem>>, vector<8x32xf32>,
      %c5_i32 = arith.constant 5 : i32
      %c8_i32_46 = arith.constant 8 : i32
      %140 = arith.muli %c5_i32, %c8_i32_46 : i32
      %141 = tpu.assume_multiple %140, 8 : i32
      %142 = arith.index_cast %141 : i32 to index
      %c0_47 = arith.constant 0 : index
      %143 = vector.load %arg11[%142, %c0_47] : memref<72x128xf32, #tpu.memory_space<vmem>>, vector<8x128xf32>
      %cst_48 = arith.constant dense<0.000000e+00> : vector<8x128xf32>
      %144 = tpu.matmul %137, %17, %cst_48 {dimension_numbers = #tpu.dot_dimension_numbers<[1], [0], [0], [1], [0, 0, 1, 1], [], []>} : vector<8x32xf32>, vector<32x128xf32>, vector<8x128xf32> -> vector<8x128xf32>
      %145 = arith.addf %143, %144 : vector<8x128xf32>
      %146 = vector.extract_strided_slice %145 {offsets = [0, 0], sizes = [8, 96], strides = [1, 1]} : vector<8x128xf32> to vector<8x96xf32>
      %147 = arith.negf %146 : vector<8x96xf32>
      %148 = math.exp %147 : vector<8x96xf32>
      %cst_49 = arith.constant 1.000000e+00 : f32
      %149 = vector.broadcast %cst_49 : f32 to vector<8x96xf32>
      %150 = arith.addf %149, %148 : vector<8x96xf32>
      %151 = arith.divf %149, %150 : vector<8x96xf32>
      %152 = vector.extract_strided_slice %145 {offsets = [0, 96], sizes = [8, 32], strides = [1, 1]} : vector<8x128xf32> to vector<8x32xf32>
      %153 = math.tanh %152 : vector<8x32xf32>
      %154 = vector.extract_strided_slice %151 {offsets = [0, 0], sizes = [8, 32], strides = [1, 1]} : vector<8x96xf32> to vector<8x32xf32>
      %155 = vector.extract_strided_slice %151 {offsets = [0, 32], sizes = [8, 32], strides = [1, 1]} : vector<8x96xf32> to vector<8x32xf32>
      %156 = vector.extract_strided_slice %151 {offsets = [0, 64], sizes = [8, 32], strides = [1, 1]} : vector<8x96xf32> to vector<8x32xf32>
      %157 = arith.mulf %155, %135 : vector<8x32xf32>
      %158 = arith.mulf %154, %153 : vector<8x32xf32>
      %159 = arith.addf %157, %158 : vector<8x32xf32>
      %160 = math.tanh %159 : vector<8x32xf32>
      %161 = arith.mulf %156, %160 : vector<8x32xf32>
      %162 = arith.index_cast %141 : i32 to index
      %c0_50 = arith.constant 0 : index
      %163 = vector.load %arg12[%162, %c0_50] : memref<72x32xf32, #tpu.memory_space<vmem>>, vector<8x32xf32>
      tpu.vector_store %arg12[%162, %c0_50], %161 {strides = array<i32>} : memref<72x32xf32, #tpu.memory_space<vmem>>, vector<8x32xf32>,
      %c6_i32 = arith.constant 6 : i32
      %c8_i32_51 = arith.constant 8 : i32
      %164 = arith.muli %c6_i32, %c8_i32_51 : i32
      %165 = tpu.assume_multiple %164, 8 : i32
      %166 = arith.index_cast %165 : i32 to index
      %c0_52 = arith.constant 0 : index
      %167 = vector.load %arg11[%166, %c0_52] : memref<72x128xf32, #tpu.memory_space<vmem>>, vector<8x128xf32>
      %cst_53 = arith.constant dense<0.000000e+00> : vector<8x128xf32>
      %168 = tpu.matmul %161, %17, %cst_53 {dimension_numbers = #tpu.dot_dimension_numbers<[1], [0], [0], [1], [0, 0, 1, 1], [], []>} : vector<8x32xf32>, vector<32x128xf32>, vector<8x128xf32> -> vector<8x128xf32>
      %169 = arith.addf %167, %168 : vector<8x128xf32>
      %170 = vector.extract_strided_slice %169 {offsets = [0, 0], sizes = [8, 96], strides = [1, 1]} : vector<8x128xf32> to vector<8x96xf32>
      %171 = arith.negf %170 : vector<8x96xf32>
      %172 = math.exp %171 : vector<8x96xf32>
      %cst_54 = arith.constant 1.000000e+00 : f32
      %173 = vector.broadcast %cst_54 : f32 to vector<8x96xf32>
      %174 = arith.addf %173, %172 : vector<8x96xf32>
      %175 = arith.divf %173, %174 : vector<8x96xf32>
      %176 = vector.extract_strided_slice %169 {offsets = [0, 96], sizes = [8, 32], strides = [1, 1]} : vector<8x128xf32> to vector<8x32xf32>
      %177 = math.tanh %176 : vector<8x32xf32>
      %178 = vector.extract_strided_slice %175 {offsets = [0, 0], sizes = [8, 32], strides = [1, 1]} : vector<8x96xf32> to vector<8x32xf32>
      %179 = vector.extract_strided_slice %175 {offsets = [0, 32], sizes = [8, 32], strides = [1, 1]} : vector<8x96xf32> to vector<8x32xf32>
      %180 = vector.extract_strided_slice %175 {offsets = [0, 64], sizes = [8, 32], strides = [1, 1]} : vector<8x96xf32> to vector<8x32xf32>
      %181 = arith.mulf %179, %159 : vector<8x32xf32>
      %182 = arith.mulf %178, %177 : vector<8x32xf32>
      %183 = arith.addf %181, %182 : vector<8x32xf32>
      %184 = math.tanh %183 : vector<8x32xf32>
      %185 = arith.mulf %180, %184 : vector<8x32xf32>
      %186 = arith.index_cast %165 : i32 to index
      %c0_55 = arith.constant 0 : index
      %187 = vector.load %arg12[%186, %c0_55] : memref<72x32xf32, #tpu.memory_space<vmem>>, vector<8x32xf32>
      tpu.vector_store %arg12[%186, %c0_55], %185 {strides = array<i32>} : memref<72x32xf32, #tpu.memory_space<vmem>>, vector<8x32xf32>,
      %c7_i32 = arith.constant 7 : i32
      %c8_i32_56 = arith.constant 8 : i32
      %188 = arith.muli %c7_i32, %c8_i32_56 : i32
      %189 = tpu.assume_multiple %188, 8 : i32
      %190 = arith.index_cast %189 : i32 to index
      %c0_57 = arith.constant 0 : index
      %191 = vector.load %arg11[%190, %c0_57] : memref<72x128xf32, #tpu.memory_space<vmem>>, vector<8x128xf32>
      %cst_58 = arith.constant dense<0.000000e+00> : vector<8x128xf32>
      %192 = tpu.matmul %185, %17, %cst_58 {dimension_numbers = #tpu.dot_dimension_numbers<[1], [0], [0], [1], [0, 0, 1, 1], [], []>} : vector<8x32xf32>, vector<32x128xf32>, vector<8x128xf32> -> vector<8x128xf32>
      %193 = arith.addf %191, %192 : vector<8x128xf32>
      %194 = vector.extract_strided_slice %193 {offsets = [0, 0], sizes = [8, 96], strides = [1, 1]} : vector<8x128xf32> to vector<8x96xf32>
      %195 = arith.negf %194 : vector<8x96xf32>
      %196 = math.exp %195 : vector<8x96xf32>
      %cst_59 = arith.constant 1.000000e+00 : f32
      %197 = vector.broadcast %cst_59 : f32 to vector<8x96xf32>
      %198 = arith.addf %197, %196 : vector<8x96xf32>
      %199 = arith.divf %197, %198 : vector<8x96xf32>
      %200 = vector.extract_strided_slice %193 {offsets = [0, 96], sizes = [8, 32], strides = [1, 1]} : vector<8x128xf32> to vector<8x32xf32>
      %201 = math.tanh %200 : vector<8x32xf32>
      %202 = vector.extract_strided_slice %199 {offsets = [0, 0], sizes = [8, 32], strides = [1, 1]} : vector<8x96xf32> to vector<8x32xf32>
      %203 = vector.extract_strided_slice %199 {offsets = [0, 32], sizes = [8, 32], strides = [1, 1]} : vector<8x96xf32> to vector<8x32xf32>
      %204 = vector.extract_strided_slice %199 {offsets = [0, 64], sizes = [8, 32], strides = [1, 1]} : vector<8x96xf32> to vector<8x32xf32>
      %205 = arith.mulf %203, %183 : vector<8x32xf32>
      %206 = arith.mulf %202, %201 : vector<8x32xf32>
      %207 = arith.addf %205, %206 : vector<8x32xf32>
      %208 = math.tanh %207 : vector<8x32xf32>
      %209 = arith.mulf %204, %208 : vector<8x32xf32>
      %210 = arith.index_cast %189 : i32 to index
      %c0_60 = arith.constant 0 : index
      %211 = vector.load %arg12[%210, %c0_60] : memref<72x32xf32, #tpu.memory_space<vmem>>, vector<8x32xf32>
      tpu.vector_store %arg12[%210, %c0_60], %209 {strides = array<i32>} : memref<72x32xf32, #tpu.memory_space<vmem>>, vector<8x32xf32>,
      %c8_i32_61 = arith.constant 8 : i32
      %c8_i32_62 = arith.constant 8 : i32
      %212 = arith.muli %c8_i32_61, %c8_i32_62 : i32
      %213 = tpu.assume_multiple %212, 8 : i32
      %214 = arith.index_cast %213 : i32 to index
      %c0_63 = arith.constant 0 : index
      %215 = vector.load %arg11[%214, %c0_63] : memref<72x128xf32, #tpu.memory_space<vmem>>, vector<8x128xf32>
      %cst_64 = arith.constant dense<0.000000e+00> : vector<8x128xf32>
      %216 = tpu.matmul %209, %17, %cst_64 {dimension_numbers = #tpu.dot_dimension_numbers<[1], [0], [0], [1], [0, 0, 1, 1], [], []>} : vector<8x32xf32>, vector<32x128xf32>, vector<8x128xf32> -> vector<8x128xf32>
      %217 = arith.addf %215, %216 : vector<8x128xf32>
      %218 = vector.extract_strided_slice %217 {offsets = [0, 0], sizes = [8, 96], strides = [1, 1]} : vector<8x128xf32> to vector<8x96xf32>
      %219 = arith.negf %218 : vector<8x96xf32>
      %220 = math.exp %219 : vector<8x96xf32>
      %cst_65 = arith.constant 1.000000e+00 : f32
      %221 = vector.broadcast %cst_65 : f32 to vector<8x96xf32>
      %222 = arith.addf %221, %220 : vector<8x96xf32>
      %223 = arith.divf %221, %222 : vector<8x96xf32>
      %224 = vector.extract_strided_slice %217 {offsets = [0, 96], sizes = [8, 32], strides = [1, 1]} : vector<8x128xf32> to vector<8x32xf32>
      %225 = math.tanh %224 : vector<8x32xf32>
      %226 = vector.extract_strided_slice %223 {offsets = [0, 0], sizes = [8, 32], strides = [1, 1]} : vector<8x96xf32> to vector<8x32xf32>
      %227 = vector.extract_strided_slice %223 {offsets = [0, 32], sizes = [8, 32], strides = [1, 1]} : vector<8x96xf32> to vector<8x32xf32>
      %228 = vector.extract_strided_slice %223 {offsets = [0, 64], sizes = [8, 32], strides = [1, 1]} : vector<8x96xf32> to vector<8x32xf32>
      %229 = arith.mulf %227, %207 : vector<8x32xf32>
      %230 = arith.mulf %226, %225 : vector<8x32xf32>
      %231 = arith.addf %229, %230 : vector<8x32xf32>
      %232 = math.tanh %231 : vector<8x32xf32>
      %233 = arith.mulf %228, %232 : vector<8x32xf32>
      %234 = arith.index_cast %213 : i32 to index
      %c0_66 = arith.constant 0 : index
      %235 = vector.load %arg12[%234, %c0_66] : memref<72x32xf32, #tpu.memory_space<vmem>>, vector<8x32xf32>
      tpu.vector_store %arg12[%234, %c0_66], %233 {strides = array<i32>} : memref<72x32xf32, #tpu.memory_space<vmem>>, vector<8x32xf32>,
      %c9_i32 = arith.constant 9 : i32
      %c0_67 = arith.constant 0 : index
      %c0_68 = arith.constant 0 : index
      %236 = vector.load %arg12[%c0_67, %c0_68] : memref<72x32xf32, #tpu.memory_space<vmem>>, vector<72x32xf32>
      %c0_69 = arith.constant 0 : index
      %c0_70 = arith.constant 0 : index
      %237 = vector.load %arg5[%c0_69, %c0_70] : memref<32x128xf32, #tpu.memory_space<vmem>>, vector<32x128xf32>
      %cst_71 = arith.constant dense<0.000000e+00> : vector<72x128xf32>
      %238 = tpu.matmul %236, %237, %cst_71 {dimension_numbers = #tpu.dot_dimension_numbers<[1], [0], [0], [1], [0, 0, 1, 1], [], []>} : vector<72x32xf32>, vector<32x128xf32>, vector<72x128xf32> -> vector<72x128xf32>
      %c0_72 = arith.constant 0 : index
      %c0_73 = arith.constant 0 : index
      %239 = vector.load %arg7[%c0_72, %c0_73] : memref<1x128xf32, #tpu.memory_space<vmem>>, vector<1x128xf32>
      %240 = vector.broadcast %239 : vector<1x128xf32> to vector<72x128xf32>
      %241 = arith.addf %238, %240 : vector<72x128xf32>
      %c0_74 = arith.constant 0 : index
      %c0_75 = arith.constant 0 : index
      %242 = vector.load %arg11[%c0_74, %c0_75] : memref<72x128xf32, #tpu.memory_space<vmem>>, vector<72x128xf32>
      tpu.vector_store %arg11[%c0_74, %c0_75], %241 {strides = array<i32>} : memref<72x128xf32, #tpu.memory_space<vmem>>, vector<72x128xf32>,
      %c0_76 = arith.constant 0 : index
      %c0_77 = arith.constant 0 : index
      %243 = vector.load %arg6[%c0_76, %c0_77] : memref<32x128xf32, #tpu.memory_space<vmem>>, vector<32x128xf32>
      %cst_78 = arith.constant 0.000000e+00 : f32
      %244 = vector.broadcast %cst_78 : f32 to vector<8x32xf32>
      %cst_79 = arith.constant 0.000000e+00 : f32
      %245 = vector.broadcast %cst_79 : f32 to vector<8x32xf32>
      %c0_i32_80 = arith.constant 0 : i32
      %c8_i32_81 = arith.constant 8 : i32
      %246 = arith.muli %c0_i32_80, %c8_i32_81 : i32
      %247 = tpu.assume_multiple %246, 8 : i32
      %248 = arith.index_cast %247 : i32 to index
      %c0_82 = arith.constant 0 : index
      %249 = vector.load %arg11[%248, %c0_82] : memref<72x128xf32, #tpu.memory_space<vmem>>, vector<8x128xf32>
      %cst_83 = arith.constant dense<0.000000e+00> : vector<8x128xf32>
      %250 = tpu.matmul %244, %243, %cst_83 {dimension_numbers = #tpu.dot_dimension_numbers<[1], [0], [0], [1], [0, 0, 1, 1], [], []>} : vector<8x32xf32>, vector<32x128xf32>, vector<8x128xf32> -> vector<8x128xf32>
      %251 = arith.addf %249, %250 : vector<8x128xf32>
      %252 = vector.extract_strided_slice %251 {offsets = [0, 0], sizes = [8, 96], strides = [1, 1]} : vector<8x128xf32> to vector<8x96xf32>
      %253 = arith.negf %252 : vector<8x96xf32>
      %254 = math.exp %253 : vector<8x96xf32>
      %cst_84 = arith.constant 1.000000e+00 : f32
      %255 = vector.broadcast %cst_84 : f32 to vector<8x96xf32>
      %256 = arith.addf %255, %254 : vector<8x96xf32>
      %257 = arith.divf %255, %256 : vector<8x96xf32>
      %258 = vector.extract_strided_slice %251 {offsets = [0, 96], sizes = [8, 32], strides = [1, 1]} : vector<8x128xf32> to vector<8x32xf32>
      %259 = math.tanh %258 : vector<8x32xf32>
      %260 = vector.extract_strided_slice %257 {offsets = [0, 0], sizes = [8, 32], strides = [1, 1]} : vector<8x96xf32> to vector<8x32xf32>
      %261 = vector.extract_strided_slice %257 {offsets = [0, 32], sizes = [8, 32], strides = [1, 1]} : vector<8x96xf32> to vector<8x32xf32>
      %262 = vector.extract_strided_slice %257 {offsets = [0, 64], sizes = [8, 32], strides = [1, 1]} : vector<8x96xf32> to vector<8x32xf32>
      %263 = arith.mulf %261, %245 : vector<8x32xf32>
      %264 = arith.mulf %260, %259 : vector<8x32xf32>
      %265 = arith.addf %263, %264 : vector<8x32xf32>
      %266 = math.tanh %265 : vector<8x32xf32>
      %267 = arith.mulf %262, %266 : vector<8x32xf32>
      %268 = arith.index_cast %247 : i32 to index
      %c0_85 = arith.constant 0 : index
      %269 = vector.load %arg12[%268, %c0_85] : memref<72x32xf32, #tpu.memory_space<vmem>>, vector<8x32xf32>
      tpu.vector_store %arg12[%268, %c0_85], %267 {strides = array<i32>} : memref<72x32xf32, #tpu.memory_space<vmem>>, vector<8x32xf32>,
      %c1_i32_86 = arith.constant 1 : i32
      %c8_i32_87 = arith.constant 8 : i32
      %270 = arith.muli %c1_i32_86, %c8_i32_87 : i32
      %271 = tpu.assume_multiple %270, 8 : i32
      %272 = arith.index_cast %271 : i32 to index
      %c0_88 = arith.constant 0 : index
      %273 = vector.load %arg11[%272, %c0_88] : memref<72x128xf32, #tpu.memory_space<vmem>>, vector<8x128xf32>
      %cst_89 = arith.constant dense<0.000000e+00> : vector<8x128xf32>
      %274 = tpu.matmul %267, %243, %cst_89 {dimension_numbers = #tpu.dot_dimension_numbers<[1], [0], [0], [1], [0, 0, 1, 1], [], []>} : vector<8x32xf32>, vector<32x128xf32>, vector<8x128xf32> -> vector<8x128xf32>
      %275 = arith.addf %273, %274 : vector<8x128xf32>
      %276 = vector.extract_strided_slice %275 {offsets = [0, 0], sizes = [8, 96], strides = [1, 1]} : vector<8x128xf32> to vector<8x96xf32>
      %277 = arith.negf %276 : vector<8x96xf32>
      %278 = math.exp %277 : vector<8x96xf32>
      %cst_90 = arith.constant 1.000000e+00 : f32
      %279 = vector.broadcast %cst_90 : f32 to vector<8x96xf32>
      %280 = arith.addf %279, %278 : vector<8x96xf32>
      %281 = arith.divf %279, %280 : vector<8x96xf32>
      %282 = vector.extract_strided_slice %275 {offsets = [0, 96], sizes = [8, 32], strides = [1, 1]} : vector<8x128xf32> to vector<8x32xf32>
      %283 = math.tanh %282 : vector<8x32xf32>
      %284 = vector.extract_strided_slice %281 {offsets = [0, 0], sizes = [8, 32], strides = [1, 1]} : vector<8x96xf32> to vector<8x32xf32>
      %285 = vector.extract_strided_slice %281 {offsets = [0, 32], sizes = [8, 32], strides = [1, 1]} : vector<8x96xf32> to vector<8x32xf32>
      %286 = vector.extract_strided_slice %281 {offsets = [0, 64], sizes = [8, 32], strides = [1, 1]} : vector<8x96xf32> to vector<8x32xf32>
      %287 = arith.mulf %285, %265 : vector<8x32xf32>
      %288 = arith.mulf %284, %283 : vector<8x32xf32>
      %289 = arith.addf %287, %288 : vector<8x32xf32>
      %290 = math.tanh %289 : vector<8x32xf32>
      %291 = arith.mulf %286, %290 : vector<8x32xf32>
      %292 = arith.index_cast %271 : i32 to index
      %c0_91 = arith.constant 0 : index
      %293 = vector.load %arg12[%292, %c0_91] : memref<72x32xf32, #tpu.memory_space<vmem>>, vector<8x32xf32>
      tpu.vector_store %arg12[%292, %c0_91], %291 {strides = array<i32>} : memref<72x32xf32, #tpu.memory_space<vmem>>, vector<8x32xf32>,
      %c2_i32_92 = arith.constant 2 : i32
      %c8_i32_93 = arith.constant 8 : i32
      %294 = arith.muli %c2_i32_92, %c8_i32_93 : i32
      %295 = tpu.assume_multiple %294, 8 : i32
      %296 = arith.index_cast %295 : i32 to index
      %c0_94 = arith.constant 0 : index
      %297 = vector.load %arg11[%296, %c0_94] : memref<72x128xf32, #tpu.memory_space<vmem>>, vector<8x128xf32>
      %cst_95 = arith.constant dense<0.000000e+00> : vector<8x128xf32>
      %298 = tpu.matmul %291, %243, %cst_95 {dimension_numbers = #tpu.dot_dimension_numbers<[1], [0], [0], [1], [0, 0, 1, 1], [], []>} : vector<8x32xf32>, vector<32x128xf32>, vector<8x128xf32> -> vector<8x128xf32>
      %299 = arith.addf %297, %298 : vector<8x128xf32>
      %300 = vector.extract_strided_slice %299 {offsets = [0, 0], sizes = [8, 96], strides = [1, 1]} : vector<8x128xf32> to vector<8x96xf32>
      %301 = arith.negf %300 : vector<8x96xf32>
      %302 = math.exp %301 : vector<8x96xf32>
      %cst_96 = arith.constant 1.000000e+00 : f32
      %303 = vector.broadcast %cst_96 : f32 to vector<8x96xf32>
      %304 = arith.addf %303, %302 : vector<8x96xf32>
      %305 = arith.divf %303, %304 : vector<8x96xf32>
      %306 = vector.extract_strided_slice %299 {offsets = [0, 96], sizes = [8, 32], strides = [1, 1]} : vector<8x128xf32> to vector<8x32xf32>
      %307 = math.tanh %306 : vector<8x32xf32>
      %308 = vector.extract_strided_slice %305 {offsets = [0, 0], sizes = [8, 32], strides = [1, 1]} : vector<8x96xf32> to vector<8x32xf32>
      %309 = vector.extract_strided_slice %305 {offsets = [0, 32], sizes = [8, 32], strides = [1, 1]} : vector<8x96xf32> to vector<8x32xf32>
      %310 = vector.extract_strided_slice %305 {offsets = [0, 64], sizes = [8, 32], strides = [1, 1]} : vector<8x96xf32> to vector<8x32xf32>
      %311 = arith.mulf %309, %289 : vector<8x32xf32>
      %312 = arith.mulf %308, %307 : vector<8x32xf32>
      %313 = arith.addf %311, %312 : vector<8x32xf32>
      %314 = math.tanh %313 : vector<8x32xf32>
      %315 = arith.mulf %310, %314 : vector<8x32xf32>
      %316 = arith.index_cast %295 : i32 to index
      %c0_97 = arith.constant 0 : index
      %317 = vector.load %arg12[%316, %c0_97] : memref<72x32xf32, #tpu.memory_space<vmem>>, vector<8x32xf32>
      tpu.vector_store %arg12[%316, %c0_97], %315 {strides = array<i32>} : memref<72x32xf32, #tpu.memory_space<vmem>>, vector<8x32xf32>,
      %c3_i32_98 = arith.constant 3 : i32
      %c8_i32_99 = arith.constant 8 : i32
      %318 = arith.muli %c3_i32_98, %c8_i32_99 : i32
      %319 = tpu.assume_multiple %318, 8 : i32
      %320 = arith.index_cast %319 : i32 to index
      %c0_100 = arith.constant 0 : index
      %321 = vector.load %arg11[%320, %c0_100] : memref<72x128xf32, #tpu.memory_space<vmem>>, vector<8x128xf32>
      %cst_101 = arith.constant dense<0.000000e+00> : vector<8x128xf32>
      %322 = tpu.matmul %315, %243, %cst_101 {dimension_numbers = #tpu.dot_dimension_numbers<[1], [0], [0], [1], [0, 0, 1, 1], [], []>} : vector<8x32xf32>, vector<32x128xf32>, vector<8x128xf32> -> vector<8x128xf32>
      %323 = arith.addf %321, %322 : vector<8x128xf32>
      %324 = vector.extract_strided_slice %323 {offsets = [0, 0], sizes = [8, 96], strides = [1, 1]} : vector<8x128xf32> to vector<8x96xf32>
      %325 = arith.negf %324 : vector<8x96xf32>
      %326 = math.exp %325 : vector<8x96xf32>
      %cst_102 = arith.constant 1.000000e+00 : f32
      %327 = vector.broadcast %cst_102 : f32 to vector<8x96xf32>
      %328 = arith.addf %327, %326 : vector<8x96xf32>
      %329 = arith.divf %327, %328 : vector<8x96xf32>
      %330 = vector.extract_strided_slice %323 {offsets = [0, 96], sizes = [8, 32], strides = [1, 1]} : vector<8x128xf32> to vector<8x32xf32>
      %331 = math.tanh %330 : vector<8x32xf32>
      %332 = vector.extract_strided_slice %329 {offsets = [0, 0], sizes = [8, 32], strides = [1, 1]} : vector<8x96xf32> to vector<8x32xf32>
      %333 = vector.extract_strided_slice %329 {offsets = [0, 32], sizes = [8, 32], strides = [1, 1]} : vector<8x96xf32> to vector<8x32xf32>
      %334 = vector.extract_strided_slice %329 {offsets = [0, 64], sizes = [8, 32], strides = [1, 1]} : vector<8x96xf32> to vector<8x32xf32>
      %335 = arith.mulf %333, %313 : vector<8x32xf32>
      %336 = arith.mulf %332, %331 : vector<8x32xf32>
      %337 = arith.addf %335, %336 : vector<8x32xf32>
      %338 = math.tanh %337 : vector<8x32xf32>
      %339 = arith.mulf %334, %338 : vector<8x32xf32>
      %340 = arith.index_cast %319 : i32 to index
      %c0_103 = arith.constant 0 : index
      %341 = vector.load %arg12[%340, %c0_103] : memref<72x32xf32, #tpu.memory_space<vmem>>, vector<8x32xf32>
      tpu.vector_store %arg12[%340, %c0_103], %339 {strides = array<i32>} : memref<72x32xf32, #tpu.memory_space<vmem>>, vector<8x32xf32>,
      %c4_i32_104 = arith.constant 4 : i32
      %c8_i32_105 = arith.constant 8 : i32
      %342 = arith.muli %c4_i32_104, %c8_i32_105 : i32
      %343 = tpu.assume_multiple %342, 8 : i32
      %344 = arith.index_cast %343 : i32 to index
      %c0_106 = arith.constant 0 : index
      %345 = vector.load %arg11[%344, %c0_106] : memref<72x128xf32, #tpu.memory_space<vmem>>, vector<8x128xf32>
      %cst_107 = arith.constant dense<0.000000e+00> : vector<8x128xf32>
      %346 = tpu.matmul %339, %243, %cst_107 {dimension_numbers = #tpu.dot_dimension_numbers<[1], [0], [0], [1], [0, 0, 1, 1], [], []>} : vector<8x32xf32>, vector<32x128xf32>, vector<8x128xf32> -> vector<8x128xf32>
      %347 = arith.addf %345, %346 : vector<8x128xf32>
      %348 = vector.extract_strided_slice %347 {offsets = [0, 0], sizes = [8, 96], strides = [1, 1]} : vector<8x128xf32> to vector<8x96xf32>
      %349 = arith.negf %348 : vector<8x96xf32>
      %350 = math.exp %349 : vector<8x96xf32>
      %cst_108 = arith.constant 1.000000e+00 : f32
      %351 = vector.broadcast %cst_108 : f32 to vector<8x96xf32>
      %352 = arith.addf %351, %350 : vector<8x96xf32>
      %353 = arith.divf %351, %352 : vector<8x96xf32>
      %354 = vector.extract_strided_slice %347 {offsets = [0, 96], sizes = [8, 32], strides = [1, 1]} : vector<8x128xf32> to vector<8x32xf32>
      %355 = math.tanh %354 : vector<8x32xf32>
      %356 = vector.extract_strided_slice %353 {offsets = [0, 0], sizes = [8, 32], strides = [1, 1]} : vector<8x96xf32> to vector<8x32xf32>
      %357 = vector.extract_strided_slice %353 {offsets = [0, 32], sizes = [8, 32], strides = [1, 1]} : vector<8x96xf32> to vector<8x32xf32>
      %358 = vector.extract_strided_slice %353 {offsets = [0, 64], sizes = [8, 32], strides = [1, 1]} : vector<8x96xf32> to vector<8x32xf32>
      %359 = arith.mulf %357, %337 : vector<8x32xf32>
      %360 = arith.mulf %356, %355 : vector<8x32xf32>
      %361 = arith.addf %359, %360 : vector<8x32xf32>
      %362 = math.tanh %361 : vector<8x32xf32>
      %363 = arith.mulf %358, %362 : vector<8x32xf32>
      %364 = arith.index_cast %343 : i32 to index
      %c0_109 = arith.constant 0 : index
      %365 = vector.load %arg12[%364, %c0_109] : memref<72x32xf32, #tpu.memory_space<vmem>>, vector<8x32xf32>
      tpu.vector_store %arg12[%364, %c0_109], %363 {strides = array<i32>} : memref<72x32xf32, #tpu.memory_space<vmem>>, vector<8x32xf32>,
      %c5_i32_110 = arith.constant 5 : i32
      %c8_i32_111 = arith.constant 8 : i32
      %366 = arith.muli %c5_i32_110, %c8_i32_111 : i32
      %367 = tpu.assume_multiple %366, 8 : i32
      %368 = arith.index_cast %367 : i32 to index
      %c0_112 = arith.constant 0 : index
      %369 = vector.load %arg11[%368, %c0_112] : memref<72x128xf32, #tpu.memory_space<vmem>>, vector<8x128xf32>
      %cst_113 = arith.constant dense<0.000000e+00> : vector<8x128xf32>
      %370 = tpu.matmul %363, %243, %cst_113 {dimension_numbers = #tpu.dot_dimension_numbers<[1], [0], [0], [1], [0, 0, 1, 1], [], []>} : vector<8x32xf32>, vector<32x128xf32>, vector<8x128xf32> -> vector<8x128xf32>
      %371 = arith.addf %369, %370 : vector<8x128xf32>
      %372 = vector.extract_strided_slice %371 {offsets = [0, 0], sizes = [8, 96], strides = [1, 1]} : vector<8x128xf32> to vector<8x96xf32>
      %373 = arith.negf %372 : vector<8x96xf32>
      %374 = math.exp %373 : vector<8x96xf32>
      %cst_114 = arith.constant 1.000000e+00 : f32
      %375 = vector.broadcast %cst_114 : f32 to vector<8x96xf32>
      %376 = arith.addf %375, %374 : vector<8x96xf32>
      %377 = arith.divf %375, %376 : vector<8x96xf32>
      %378 = vector.extract_strided_slice %371 {offsets = [0, 96], sizes = [8, 32], strides = [1, 1]} : vector<8x128xf32> to vector<8x32xf32>
      %379 = math.tanh %378 : vector<8x32xf32>
      %380 = vector.extract_strided_slice %377 {offsets = [0, 0], sizes = [8, 32], strides = [1, 1]} : vector<8x96xf32> to vector<8x32xf32>
      %381 = vector.extract_strided_slice %377 {offsets = [0, 32], sizes = [8, 32], strides = [1, 1]} : vector<8x96xf32> to vector<8x32xf32>
      %382 = vector.extract_strided_slice %377 {offsets = [0, 64], sizes = [8, 32], strides = [1, 1]} : vector<8x96xf32> to vector<8x32xf32>
      %383 = arith.mulf %381, %361 : vector<8x32xf32>
      %384 = arith.mulf %380, %379 : vector<8x32xf32>
      %385 = arith.addf %383, %384 : vector<8x32xf32>
      %386 = math.tanh %385 : vector<8x32xf32>
      %387 = arith.mulf %382, %386 : vector<8x32xf32>
      %388 = arith.index_cast %367 : i32 to index
      %c0_115 = arith.constant 0 : index
      %389 = vector.load %arg12[%388, %c0_115] : memref<72x32xf32, #tpu.memory_space<vmem>>, vector<8x32xf32>
      tpu.vector_store %arg12[%388, %c0_115], %387 {strides = array<i32>} : memref<72x32xf32, #tpu.memory_space<vmem>>, vector<8x32xf32>,
      %c6_i32_116 = arith.constant 6 : i32
      %c8_i32_117 = arith.constant 8 : i32
      %390 = arith.muli %c6_i32_116, %c8_i32_117 : i32
      %391 = tpu.assume_multiple %390, 8 : i32
      %392 = arith.index_cast %391 : i32 to index
      %c0_118 = arith.constant 0 : index
      %393 = vector.load %arg11[%392, %c0_118] : memref<72x128xf32, #tpu.memory_space<vmem>>, vector<8x128xf32>
      %cst_119 = arith.constant dense<0.000000e+00> : vector<8x128xf32>
      %394 = tpu.matmul %387, %243, %cst_119 {dimension_numbers = #tpu.dot_dimension_numbers<[1], [0], [0], [1], [0, 0, 1, 1], [], []>} : vector<8x32xf32>, vector<32x128xf32>, vector<8x128xf32> -> vector<8x128xf32>
      %395 = arith.addf %393, %394 : vector<8x128xf32>
      %396 = vector.extract_strided_slice %395 {offsets = [0, 0], sizes = [8, 96], strides = [1, 1]} : vector<8x128xf32> to vector<8x96xf32>
      %397 = arith.negf %396 : vector<8x96xf32>
      %398 = math.exp %397 : vector<8x96xf32>
      %cst_120 = arith.constant 1.000000e+00 : f32
      %399 = vector.broadcast %cst_120 : f32 to vector<8x96xf32>
      %400 = arith.addf %399, %398 : vector<8x96xf32>
      %401 = arith.divf %399, %400 : vector<8x96xf32>
      %402 = vector.extract_strided_slice %395 {offsets = [0, 96], sizes = [8, 32], strides = [1, 1]} : vector<8x128xf32> to vector<8x32xf32>
      %403 = math.tanh %402 : vector<8x32xf32>
      %404 = vector.extract_strided_slice %401 {offsets = [0, 0], sizes = [8, 32], strides = [1, 1]} : vector<8x96xf32> to vector<8x32xf32>
      %405 = vector.extract_strided_slice %401 {offsets = [0, 32], sizes = [8, 32], strides = [1, 1]} : vector<8x96xf32> to vector<8x32xf32>
      %406 = vector.extract_strided_slice %401 {offsets = [0, 64], sizes = [8, 32], strides = [1, 1]} : vector<8x96xf32> to vector<8x32xf32>
      %407 = arith.mulf %405, %385 : vector<8x32xf32>
      %408 = arith.mulf %404, %403 : vector<8x32xf32>
      %409 = arith.addf %407, %408 : vector<8x32xf32>
      %410 = math.tanh %409 : vector<8x32xf32>
      %411 = arith.mulf %406, %410 : vector<8x32xf32>
      %412 = arith.index_cast %391 : i32 to index
      %c0_121 = arith.constant 0 : index
      %413 = vector.load %arg12[%412, %c0_121] : memref<72x32xf32, #tpu.memory_space<vmem>>, vector<8x32xf32>
      tpu.vector_store %arg12[%412, %c0_121], %411 {strides = array<i32>} : memref<72x32xf32, #tpu.memory_space<vmem>>, vector<8x32xf32>,
      %c7_i32_122 = arith.constant 7 : i32
      %c8_i32_123 = arith.constant 8 : i32
      %414 = arith.muli %c7_i32_122, %c8_i32_123 : i32
      %415 = tpu.assume_multiple %414, 8 : i32
      %416 = arith.index_cast %415 : i32 to index
      %c0_124 = arith.constant 0 : index
      %417 = vector.load %arg11[%416, %c0_124] : memref<72x128xf32, #tpu.memory_space<vmem>>, vector<8x128xf32>
      %cst_125 = arith.constant dense<0.000000e+00> : vector<8x128xf32>
      %418 = tpu.matmul %411, %243, %cst_125 {dimension_numbers = #tpu.dot_dimension_numbers<[1], [0], [0], [1], [0, 0, 1, 1], [], []>} : vector<8x32xf32>, vector<32x128xf32>, vector<8x128xf32> -> vector<8x128xf32>
      %419 = arith.addf %417, %418 : vector<8x128xf32>
      %420 = vector.extract_strided_slice %419 {offsets = [0, 0], sizes = [8, 96], strides = [1, 1]} : vector<8x128xf32> to vector<8x96xf32>
      %421 = arith.negf %420 : vector<8x96xf32>
      %422 = math.exp %421 : vector<8x96xf32>
      %cst_126 = arith.constant 1.000000e+00 : f32
      %423 = vector.broadcast %cst_126 : f32 to vector<8x96xf32>
      %424 = arith.addf %423, %422 : vector<8x96xf32>
      %425 = arith.divf %423, %424 : vector<8x96xf32>
      %426 = vector.extract_strided_slice %419 {offsets = [0, 96], sizes = [8, 32], strides = [1, 1]} : vector<8x128xf32> to vector<8x32xf32>
      %427 = math.tanh %426 : vector<8x32xf32>
      %428 = vector.extract_strided_slice %425 {offsets = [0, 0], sizes = [8, 32], strides = [1, 1]} : vector<8x96xf32> to vector<8x32xf32>
      %429 = vector.extract_strided_slice %425 {offsets = [0, 32], sizes = [8, 32], strides = [1, 1]} : vector<8x96xf32> to vector<8x32xf32>
      %430 = vector.extract_strided_slice %425 {offsets = [0, 64], sizes = [8, 32], strides = [1, 1]} : vector<8x96xf32> to vector<8x32xf32>
      %431 = arith.mulf %429, %409 : vector<8x32xf32>
      %432 = arith.mulf %428, %427 : vector<8x32xf32>
      %433 = arith.addf %431, %432 : vector<8x32xf32>
      %434 = math.tanh %433 : vector<8x32xf32>
      %435 = arith.mulf %430, %434 : vector<8x32xf32>
      %436 = arith.index_cast %415 : i32 to index
      %c0_127 = arith.constant 0 : index
      %437 = vector.load %arg12[%436, %c0_127] : memref<72x32xf32, #tpu.memory_space<vmem>>, vector<8x32xf32>
      tpu.vector_store %arg12[%436, %c0_127], %435 {strides = array<i32>} : memref<72x32xf32, #tpu.memory_space<vmem>>, vector<8x32xf32>,
      %c8_i32_128 = arith.constant 8 : i32
      %c8_i32_129 = arith.constant 8 : i32
      %438 = arith.muli %c8_i32_128, %c8_i32_129 : i32
      %439 = tpu.assume_multiple %438, 8 : i32
      %440 = arith.index_cast %439 : i32 to index
      %c0_130 = arith.constant 0 : index
      %441 = vector.load %arg11[%440, %c0_130] : memref<72x128xf32, #tpu.memory_space<vmem>>, vector<8x128xf32>
      %cst_131 = arith.constant dense<0.000000e+00> : vector<8x128xf32>
      %442 = tpu.matmul %435, %243, %cst_131 {dimension_numbers = #tpu.dot_dimension_numbers<[1], [0], [0], [1], [0, 0, 1, 1], [], []>} : vector<8x32xf32>, vector<32x128xf32>, vector<8x128xf32> -> vector<8x128xf32>
      %443 = arith.addf %441, %442 : vector<8x128xf32>
      %444 = vector.extract_strided_slice %443 {offsets = [0, 0], sizes = [8, 96], strides = [1, 1]} : vector<8x128xf32> to vector<8x96xf32>
      %445 = arith.negf %444 : vector<8x96xf32>
      %446 = math.exp %445 : vector<8x96xf32>
      %cst_132 = arith.constant 1.000000e+00 : f32
      %447 = vector.broadcast %cst_132 : f32 to vector<8x96xf32>
      %448 = arith.addf %447, %446 : vector<8x96xf32>
      %449 = arith.divf %447, %448 : vector<8x96xf32>
      %450 = vector.extract_strided_slice %443 {offsets = [0, 96], sizes = [8, 32], strides = [1, 1]} : vector<8x128xf32> to vector<8x32xf32>
      %451 = math.tanh %450 : vector<8x32xf32>
      %452 = vector.extract_strided_slice %449 {offsets = [0, 0], sizes = [8, 32], strides = [1, 1]} : vector<8x96xf32> to vector<8x32xf32>
      %453 = vector.extract_strided_slice %449 {offsets = [0, 32], sizes = [8, 32], strides = [1, 1]} : vector<8x96xf32> to vector<8x32xf32>
      %454 = vector.extract_strided_slice %449 {offsets = [0, 64], sizes = [8, 32], strides = [1, 1]} : vector<8x96xf32> to vector<8x32xf32>
      %455 = arith.mulf %453, %433 : vector<8x32xf32>
      %456 = arith.mulf %452, %451 : vector<8x32xf32>
      %457 = arith.addf %455, %456 : vector<8x32xf32>
      %458 = math.tanh %457 : vector<8x32xf32>
      %459 = arith.mulf %454, %458 : vector<8x32xf32>
      %460 = arith.index_cast %439 : i32 to index
      %c0_133 = arith.constant 0 : index
      %461 = vector.load %arg12[%460, %c0_133] : memref<72x32xf32, #tpu.memory_space<vmem>>, vector<8x32xf32>
      tpu.vector_store %arg12[%460, %c0_133], %459 {strides = array<i32>} : memref<72x32xf32, #tpu.memory_space<vmem>>, vector<8x32xf32>,
      %c9_i32_134 = arith.constant 9 : i32
    } else {
    }
    %c0 = arith.constant 0 : index
    %c0_1 = arith.constant 0 : index
    %3 = vector.load %arg12[%c0, %c0_1] : memref<72x32xf32, #tpu.memory_space<vmem>>, vector<72x32xf32>
    %c0_2 = arith.constant 0 : index
    %c0_3 = arith.constant 0 : index
    %4 = vector.load %arg8[%c0_2, %c0_3] : memref<32x128xf32, #tpu.memory_space<vmem>>, vector<32x128xf32>
    %cst = arith.constant dense<0.000000e+00> : vector<72x128xf32>
    %5 = tpu.matmul %3, %4, %cst {dimension_numbers = #tpu.dot_dimension_numbers<[1], [0], [0], [1], [0, 0, 1, 1], [], []>} : vector<72x32xf32>, vector<32x128xf32>, vector<72x128xf32> -> vector<72x128xf32>
    %c0_4 = arith.constant 0 : index
    %c0_5 = arith.constant 0 : index
    %6 = vector.load %arg9[%c0_4, %c0_5] : memref<1x128xf32, #tpu.memory_space<vmem>>, vector<1x128xf32>
    %7 = vector.broadcast %6 : vector<1x128xf32> to vector<72x128xf32>
    %8 = arith.addf %5, %7 : vector<72x128xf32>
    %c0_6 = arith.constant 0 : index
    %c0_7 = arith.constant 0 : index
    %9 = vector.load %arg10[%c0_6, %c0_7] : memref<72x128xf32, #tpu.memory_space<vmem>>, vector<72x128xf32>
    tpu.vector_store %arg10[%c0_6, %c0_7], %8 {strides = array<i32>} : memref<72x128xf32, #tpu.memory_space<vmem>>, vector<72x128xf32>,
    return
  }
  func.func @transform_0(%arg0: i32) -> (i32, i32) {
    %c0_i32 = arith.constant 0 : i32
    %c0_i32_0 = arith.constant 0 : i32
    %c0_i32_1 = arith.constant 0 : i32
    return %c0_i32, %c0_i32_0 : i32, i32
  }
  func.func @transform_1(%arg0: i32) -> (i32, i32) {
    %c0_i32 = arith.constant 0 : i32
    %c0_i32_0 = arith.constant 0 : i32
    %c0_i32_1 = arith.constant 0 : i32
    return %c0_i32, %c0_i32_0 : i32, i32
  }
  func.func @transform_2(%arg0: i32) -> (i32, i32) {
    %c0_i32 = arith.constant 0 : i32
    %c0_i32_0 = arith.constant 0 : i32
    %c0_i32_1 = arith.constant 0 : i32
    return %c0_i32, %c0_i32_0 : i32, i32
  }
  func.func @transform_3(%arg0: i32) -> (i32, i32) {
    %c0_i32 = arith.constant 0 : i32
    %c0_i32_0 = arith.constant 0 : i32
    %c0_i32_1 = arith.constant 0 : i32
    return %c0_i32, %c0_i32_0 : i32, i32
  }
  func.func @transform_4(%arg0: i32) -> (i32, i32) {
    %c0_i32 = arith.constant 0 : i32
    %c0_i32_0 = arith.constant 0 : i32
    %c0_i32_1 = arith.constant 0 : i32
    return %c0_i32, %c0_i32_0 : i32, i32
  }
  func.func @transform_5(%arg0: i32) -> (i32, i32) {
    %c0_i32 = arith.constant 0 : i32
    %c0_i32_0 = arith.constant 0 : i32
    %c0_i32_1 = arith.constant 0 : i32
    return %c0_i32, %c0_i32_0 : i32, i32
  }
  func.func @transform_6(%arg0: i32) -> (i32, i32) {
    %c0_i32 = arith.constant 0 : i32
    %c0_i32_0 = arith.constant 0 : i32
    %c0_i32_1 = arith.constant 0 : i32
    return %c0_i32, %c0_i32_0 : i32, i32
  }
  func.func @transform_7(%arg0: i32) -> (i32, i32) {
    %c0_i32 = arith.constant 0 : i32
    %c0_i32_0 = arith.constant 0 : i32
    return %c0_i32, %arg0 : i32, i32
  }
  func.func @transform_8(%arg0: i32) -> (i32, i32) {
    %c0_i32 = arith.constant 0 : i32
    %c0_i32_0 = arith.constant 0 : i32
    return %c0_i32, %arg0 : i32, i32
  }
  func.func @transform_9(%arg0: i32) -> (i32, i32) {
    %c0_i32 = arith.constant 0 : i32
    %c0_i32_0 = arith.constant 0 : i32
    return %c0_i32, %arg0 : i32, i32
  }
}

</mosaic_0001>

<llo_original>
// kernel: forward.1
$region0: #{forward.1}
  #allocation0 [shape = 'u32[]', space=smem, size = 0x4, offset = 0x4, fixed_abs, tag = 'smem constant byte address 0x4 - core index']
  #allocation1 [shape = 'u32[144,128]{1,0:T(1,128)}', space=vmem, size = 0x12000, scoped, tag = 'internal scratch']
  #allocation2 [shape = 'f32[72,128]{1,0:T(8,128)}', space=vmem, size = 0x9000, scoped, tag = 'scratch operand']
  #allocation3 [shape = 'f32[72,32]{1,0:T(8,128)}', space=vmem, size = 0x9000, scoped, tag = 'scratch operand']
  %s0 = inlined_call_operand.vmem [shape: f32[72,32], index: 0, kind: input, shape index: {}]
  %s1 = inlined_call_operand.vmem [shape: f32[32,128], index: 1, kind: input, shape index: {}]
  %s2 = inlined_call_operand.vmem [shape: f32[32,128], index: 2, kind: input, shape index: {}]
  %s3 = inlined_call_operand.vmem [shape: f32[1,128], index: 3, kind: input, shape index: {}]
  %s4 = inlined_call_operand.vmem [shape: f32[32,128], index: 4, kind: input, shape index: {}]
  %s5 = inlined_call_operand.vmem [shape: f32[32,128], index: 5, kind: input, shape index: {}]
  %s6 = inlined_call_operand.vmem [shape: f32[1,128], index: 6, kind: input, shape index: {}]
  %s7 = inlined_call_operand.vmem [shape: f32[32,128], index: 7, kind: input, shape index: {}]
  %s8 = inlined_call_operand.vmem [shape: f32[1,128], index: 8, kind: input, shape index: {}]
  %s9 = inlined_call_operand.vmem [shape: f32[72,128], index: 9, kind: output, shape index: {}]
  %s10 = sld [smem:[#allocation0]]
  $region50: #{forward.1} parent=0
    _
  %s12 = ssub.s32 1, %s10
  %s13 = scalar_select 0, %s12, %s10
  // Predicated region
  $region2: #{forward.1} parent=0 // pred_check
    _
  $region3: #{forward.1} parent=0 // pred_check_branch
    %15 = sbr.rel (0) target = $region5
  $region4: #{forward.1} parent=0 // pred_region
    _
  $region5: #{forward.1} parent=0 // pred_fallthru
    _
  // Predicated region
  $region6: #{forward.1} parent=0 // pred_check
    _
  $region7: #{forward.1} parent=0 // pred_check_branch
    %17 = sbr.rel (0) target = $region9
  $region8: #{forward.1} parent=0 // pred_region
    _
  $region9: #{forward.1} parent=0 // pred_fallthru
    _
  // Predicated region
  $region10: #{forward.1} parent=0 // pred_check
    _
  $region11: #{forward.1} parent=0 // pred_check_branch
    %19 = sbr.rel (0) target = $region13
  $region12: #{forward.1} parent=0 // pred_region
    _
  $region13: #{forward.1} parent=0 // pred_fallthru
    _
  // Predicated region
  $region14: #{forward.1} parent=0 // pred_check
    _
  $region15: #{forward.1} parent=0 // pred_check_branch
    %21 = sbr.rel (0) target = $region17
  $region16: #{forward.1} parent=0 // pred_region
    _
  $region17: #{forward.1} parent=0 // pred_fallthru
    _
  // Predicated region
  $region18: #{forward.1} parent=0 // pred_check
    _
  $region19: #{forward.1} parent=0 // pred_check_branch
    %23 = sbr.rel (0) target = $region21
  $region20: #{forward.1} parent=0 // pred_region
    _
  $region21: #{forward.1} parent=0 // pred_fallthru
    _
  // Predicated region
  $region22: #{forward.1} parent=0 // pred_check
    _
  $region23: #{forward.1} parent=0 // pred_check_branch
    %25 = sbr.rel (0) target = $region25
  $region24: #{forward.1} parent=0 // pred_region
    _
  $region25: #{forward.1} parent=0 // pred_fallthru
    _
  // Predicated region
  $region26: #{forward.1} parent=0 // pred_check
    _
  $region27: #{forward.1} parent=0 // pred_check_branch
    %27 = sbr.rel (0) target = $region29
  $region28: #{forward.1} parent=0 // pred_region
    _
  $region29: #{forward.1} parent=0 // pred_fallthru
    _
  // Predicated region
  $region30: #{forward.1} parent=0 // pred_check
    _
  $region31: #{forward.1} parent=0 // pred_check_branch
    %29 = sbr.rel (0) target = $region33
  $region32: #{forward.1} parent=0 // pred_region
    _
  $region33: #{forward.1} parent=0 // pred_fallthru
    _
  // Predicated region
  $region34: #{forward.1} parent=0 // pred_check
    _
  $region35: #{forward.1} parent=0 // pred_check_branch
    %31 = sbr.rel (0) target = $region37
  $region36: #{forward.1} parent=0 // pred_region
    _
  $region37: #{forward.1} parent=0 // pred_fallthru
    _
  %p32 = scmp.eq.s32.totalorder 0, 0
  // Predicated region
  $region38: #{forward.1} parent=0 // pred_check
    %p33 = pneg %p32
  $region39: #{forward.1} parent=0 // pred_check_branch
    %35 = sbr.rel (%p33) target = $region41
  $region40: #{forward.1} parent=0 // pred_region
    %v36 = vld [vmem:[%s0] sm:$0xff]
    %v37 = vld [vmem:[%s0 + $0x8] sm:$0xff]
    %v38 = vld [vmem:[%s0 + $0x10] sm:$0xff]
    %v39 = vld [vmem:[%s0 + $0x18] sm:$0xff]
    %v40 = vld [vmem:[%s0 + $0x20] sm:$0xff]
    %v41 = vld [vmem:[%s0 + $0x28] sm:$0xff]
    %v42 = vld [vmem:[%s0 + $0x30] sm:$0xff]
    %v43 = vld [vmem:[%s0 + $0x38] sm:$0xff]
    %v44 = vld [vmem:[%s0 + $0x40] sm:$0xff]
    %v45 = vld [vmem:[%s1] sm:$0xff]
    %v46 = vld [vmem:[%s1 + $0x8] sm:$0xff]
    %v47 = vld [vmem:[%s1 + $0x10] sm:$0xff]
    %v48 = vld [vmem:[%s1 + $0x18] sm:$0xff]
    %v49 = vld [vmem:[%s3] sm:$0x1]
    %v51 = vlaneseq
    %v52 = vshrl.u32 %v51, 7
    %v53 = vsub.s32 0, %v52
    %v54 = vrot.slane %v49, %v53
    %vm56 = vcmask 261120
    %v58 = vsel %vm56, %v36, 0
    %v61 = vsel %vm56, %v37, 0
    %v64 = vsel %vm56, %v38, 0
    %v67 = vsel %vm56, %v39, 0
    %v70 = vsel %vm56, %v40, 0
    %v73 = vsel %vm56, %v41, 0
    %v76 = vsel %vm56, %v42, 0
    %v79 = vsel %vm56, %v43, 0
    %v82 = vsel %vm56, %v44, 0
    %84 = vmatprep.subr.mxu0 0.0
    %85 = vmatpush1.msra.mxu0 %v45
    %86 = vmatprep.subr.mxu0 0.0
    %87 = vmatpush1.msra.mxu0 %v46
    %88 = vmatprep.subr.mxu0 0.0
    %89 = vmatpush1.msra.mxu0 %v47
    %90 = vmatprep.subr.mxu0 0.0
    %91 = vmatpush1.msra.mxu0 %v48
    %92 = vmatprep.subr.mxu0 0.0
    %93 = vmatpush1.msra.mxu0 0.0
    %94 = vmatprep.subr.mxu0 0.0
    %95 = vmatpush1.msra.mxu0 0.0
    %96 = vmatprep.subr.mxu0 0.0
    %97 = vmatpush1.msra.mxu0 0.0
    %98 = vmatprep.subr.mxu0 0.0
    %99 = vmatpush1.msra.mxu0 0.0
    %100 = vmatprep.subr.mxu0 0.0
    %101 = vmatpush1.msra.mxu0 0.0
    %102 = vmatprep.subr.mxu0 0.0
    %103 = vmatpush1.msra.mxu0 0.0
    %104 = vmatprep.subr.mxu0 0.0
    %105 = vmatpush1.msra.mxu0 0.0
    %106 = vmatprep.subr.mxu0 0.0
    %107 = vmatpush1.msra.mxu0 0.0
    %108 = vmatprep.subr.mxu0 0.0
    %109 = vmatpush1.msra.mxu0 0.0
    %110 = vmatprep.subr.mxu0 0.0
    %111 = vmatpush1.msra.mxu0 0.0
    %112 = vmatprep.subr.mxu0 0.0
    %113 = vmatpush1.msra.mxu0 0.0
    %114 = vmatprep.subr.mxu0 0.0
    %115 = vmatpush1.msra.mxu0 0.0
    %116 = vmatprep.subr.mxu0 0.0
    %117 = vmatpush1.msra.mxu0 0.0
    %118 = vmatprep.subr.mxu0 0.0
    %119 = vmatpush1.msra.mxu0 0.0
    %120 = vmatprep.subr.mxu0 0.0
    %121 = vmatpush1.msra.mxu0 0.0
    %122 = vmatprep.subr.mxu0 0.0
    %123 = vmatpush1.msra.mxu0 0.0
    %124 = vmatprep.subr.mxu0 0.0
    %125 = vmatpush1.msra.mxu0 0.0
    %126 = vmatprep.subr.mxu0 0.0
    %127 = vmatpush1.msra.mxu0 0.0
    %128 = vmatprep.subr.mxu0 0.0
    %129 = vmatpush1.msra.mxu0 0.0
    %130 = vmatprep.subr.mxu0 0.0
    %131 = vmatpush1.msra.mxu0 0.0
    %132 = vmatprep.subr.mxu0 0.0
    %133 = vmatpush1.msra.mxu0 0.0
    %134 = vmatprep.subr.mxu0 0.0
    %135 = vmatpush1.msra.mxu0 0.0
    %136 = vmatprep.subr.mxu0 0.0
    %137 = vmatpush1.msra.mxu0 0.0
    %138 = vmatprep.subr.mxu0 0.0
    %139 = vmatpush1.msra.mxu0 0.0
    %140 = vmatprep.subr.mxu0 0.0
    %141 = vmatpush1.msra.mxu0 0.0
    %142 = vmatprep.subr.mxu0 0.0
    %143 = vmatpush1.msra.mxu0 0.0
    %144 = vmatprep.subr.mxu0 0.0
    %145 = vmatpush1.msra.mxu0 0.0
    %146 = vmatprep.subr.mxu0 0.0
    %147 = vmatpush1.msra.mxu0 0.0
    %148 = vmatprep.mubr.f32.mxu0 0.0
    %149 = vmatmul.mubr.f32.gmra.mrb[0].mxu0 %v58
    %v150 = vpop.f32.mrb[0].mxu0
    %v151 = vadd.f32 %v54, %v150
    %v152 = vpop.f32.mrb[0].mxu0
    %153 = vmatprep.mubr.f32.mxu0 0.0
    %154 = vmatmul.mubr.f32.gmra.mrb[0].mxu0 %v61
    %v155 = vpop.f32.mrb[0].mxu0
    %v156 = vadd.f32 %v54, %v155
    %v157 = vpop.f32.mrb[0].mxu0
    %158 = vmatprep.mubr.f32.mxu0 0.0
    %159 = vmatmul.mubr.f32.gmra.mrb[0].mxu0 %v64
    %v160 = vpop.f32.mrb[0].mxu0
    %v161 = vadd.f32 %v54, %v160
    %v162 = vpop.f32.mrb[0].mxu0
    %163 = vmatprep.mubr.f32.mxu0 0.0
    %164 = vmatmul.mubr.f32.gmra.mrb[0].mxu0 %v67
    %v165 = vpop.f32.mrb[0].mxu0
    %v166 = vadd.f32 %v54, %v165
    %v167 = vpop.f32.mrb[0].mxu0
    %168 = vmatprep.mubr.f32.mxu0 0.0
    %169 = vmatmul.mubr.f32.gmra.mrb[0].mxu0 %v70
    %v170 = vpop.f32.mrb[0].mxu0
    %v171 = vadd.f32 %v54, %v170
    %v172 = vpop.f32.mrb[0].mxu0
    %173 = vmatprep.mubr.f32.mxu0 0.0
    %174 = vmatmul.mubr.f32.gmra.mrb[0].mxu0 %v73
    %v175 = vpop.f32.mrb[0].mxu0
    %v176 = vadd.f32 %v54, %v175
    %v177 = vpop.f32.mrb[0].mxu0
    %178 = vmatprep.mubr.f32.mxu0 0.0
    %179 = vmatmul.mubr.f32.gmra.mrb[0].mxu0 %v76
    %v180 = vpop.f32.mrb[0].mxu0
    %v181 = vadd.f32 %v54, %v180
    %v182 = vpop.f32.mrb[0].mxu0
    %183 = vmatprep.mubr.f32.mxu0 0.0
    %184 = vmatmul.mubr.f32.gmra.mrb[0].mxu0 %v79
    %v185 = vpop.f32.mrb[0].mxu0
    %v186 = vadd.f32 %v54, %v185
    %v187 = vpop.f32.mrb[0].mxu0
    %188 = vmatprep.mubr.f32.mxu0 0.0
    %189 = vmatmul.mubr.f32.gmra.mrb[0].mxu0 %v82
    %v190 = vpop.f32.mrb[0].mxu0
    %v191 = vadd.f32 %v54, %v190
    %v192 = vpop.f32.mrb[0].mxu0
    %193 = vdwg.mxu0
    %194 = vst [vmem:[#allocation2] sm:$0xff] %v151
    %195 = vst [vmem:[#allocation2 + $0x8] sm:$0xff] %v156
    %196 = vst [vmem:[#allocation2 + $0x10] sm:$0xff] %v161
    %197 = vst [vmem:[#allocation2 + $0x18] sm:$0xff] %v166
    %198 = vst [vmem:[#allocation2 + $0x20] sm:$0xff] %v171
    %199 = vst [vmem:[#allocation2 + $0x28] sm:$0xff] %v176
    %200 = vst [vmem:[#allocation2 + $0x30] sm:$0xff] %v181
    %201 = vst [vmem:[#allocation2 + $0x38] sm:$0xff] %v186
    %202 = vst [vmem:[#allocation2 + $0x40] sm:$0xff] %v191
    %v203 = vld [vmem:[%s2] sm:$0xff]
    %v204 = vld [vmem:[%s2 + $0x8] sm:$0xff]
    %v205 = vld [vmem:[%s2 + $0x10] sm:$0xff]
    %v206 = vld [vmem:[%s2 + $0x18] sm:$0xff]
    %v207 = vld [vmem:[#allocation2] sm:$0xff]
    %v209 = vsel %vm56, 0.0, 0
    %211 = vmatprep.subr.mxu0 0.0
    %212 = vmatpush1.msra.mxu0 %v203
    %213 = vmatprep.subr.mxu0 0.0
    %214 = vmatpush1.msra.mxu0 %v204
    %215 = vmatprep.subr.mxu0 0.0
    %216 = vmatpush1.msra.mxu0 %v205
    %217 = vmatprep.subr.mxu0 0.0
    %218 = vmatpush1.msra.mxu0 %v206
    %219 = vmatprep.subr.mxu0 0.0
    %220 = vmatpush1.msra.mxu0 0.0
    %221 = vmatprep.subr.mxu0 0.0
    %222 = vmatpush1.msra.mxu0 0.0
    %223 = vmatprep.subr.mxu0 0.0
    %224 = vmatpush1.msra.mxu0 0.0
    %225 = vmatprep.subr.mxu0 0.0
    %226 = vmatpush1.msra.mxu0 0.0
    %227 = vmatprep.subr.mxu0 0.0
    %228 = vmatpush1.msra.mxu0 0.0
    %229 = vmatprep.subr.mxu0 0.0
    %230 = vmatpush1.msra.mxu0 0.0
    %231 = vmatprep.subr.mxu0 0.0
    %232 = vmatpush1.msra.mxu0 0.0
    %233 = vmatprep.subr.mxu0 0.0
    %234 = vmatpush1.msra.mxu0 0.0
    %235 = vmatprep.subr.mxu0 0.0
    %236 = vmatpush1.msra.mxu0 0.0
    %237 = vmatprep.subr.mxu0 0.0
    %238 = vmatpush1.msra.mxu0 0.0
    %239 = vmatprep.subr.mxu0 0.0
    %240 = vmatpush1.msra.mxu0 0.0
    %241 = vmatprep.subr.mxu0 0.0
    %242 = vmatpush1.msra.mxu0 0.0
    %243 = vmatprep.subr.mxu0 0.0
    %244 = vmatpush1.msra.mxu0 0.0
    %245 = vmatprep.subr.mxu0 0.0
    %246 = vmatpush1.msra.mxu0 0.0
    %247 = vmatprep.subr.mxu0 0.0
    %248 = vmatpush1.msra.mxu0 0.0
    %249 = vmatprep.subr.mxu0 0.0
    %250 = vmatpush1.msra.mxu0 0.0
    %251 = vmatprep.subr.mxu0 0.0
    %252 = vmatpush1.msra.mxu0 0.0
    %253 = vmatprep.subr.mxu0 0.0
    %254 = vmatpush1.msra.mxu0 0.0
    %255 = vmatprep.subr.mxu0 0.0
    %256 = vmatpush1.msra.mxu0 0.0
    %257 = vmatprep.subr.mxu0 0.0
    %258 = vmatpush1.msra.mxu0 0.0
    %259 = vmatprep.subr.mxu0 0.0
    %260 = vmatpush1.msra.mxu0 0.0
    %261 = vmatprep.subr.mxu0 0.0
    %262 = vmatpush1.msra.mxu0 0.0
    %263 = vmatprep.subr.mxu0 0.0
    %264 = vmatpush1.msra.mxu0 0.0
    %265 = vmatprep.subr.mxu0 0.0
    %266 = vmatpush1.msra.mxu0 0.0
    %267 = vmatprep.subr.mxu0 0.0
    %268 = vmatpush1.msra.mxu0 0.0
    %269 = vmatprep.subr.mxu0 0.0
    %270 = vmatpush1.msra.mxu0 0.0
    %271 = vmatprep.subr.mxu0 0.0
    %272 = vmatpush1.msra.mxu0 0.0
    %273 = vmatprep.subr.mxu0 0.0
    %274 = vmatpush1.msra.mxu0 0.0
    %275 = vmatprep.mubr.f32.mxu0 0.0
    %276 = vmatmul.mubr.f32.gmra.mrb[0].mxu0 %v209
    %v277 = vpop.f32.mrb[0].mxu0
    %v278 = vadd.f32 0.0, %v277
    %v279 = vpop.f32.mrb[0].mxu0
    %280 = vdwg.mxu0
    %v281 = vadd.f32 %v207, %v278
    %v282 = vxor.u32 %v281, 2147483648
    %v283 = vmul.f32 %v282, 1.442695
    %v284 = vpow.pop %v283
    %v285 = vadd.f32 %v284, 1.0
    %v286 = vrcp.pop %v285
    %v287 = vmul.f32 1.0, %v286
    %v288 = vtanh.pop %v281
    %v289 = vmul.f32 %v287, 0.0
    %291 = vrot.lane.b32.xlu0 %v288, 32
    %v292 = vpop.permute.xlu0 %291
    %v294 = vmul.f32 %v287, %v292
    %296 = vrot.lane.b32.xlu0 %v294, 32
    %v297 = vpop.permute.xlu0 %296
    %v299 = vadd.f32 %v289, %v297
    %v300 = vtanh.pop %v299
    %302 = vrot.lane.b32.xlu0 %v300, 32
    %v303 = vpop.permute.xlu0 %302
    %v305 = vmul.f32 %v287, %v303
    %307 = vrot.lane.b32.xlu0 %v305, 64
    %v308 = vpop.permute.xlu0 %307
    %310 = vst.msk [vmem:[#allocation3] sm:$0xff] %vm56, %v308
    %s311 = scalar_lea.vmem [#allocation2], 8
    %v312 = vld [vmem:[%s311] sm:$0xff]
    %v313 = vsel %vm56, %v308, 0
    %315 = vmatprep.subr.mxu0 0.0
    %316 = vmatpush1.msra.mxu0 %v203
    %317 = vmatprep.subr.mxu0 0.0
    %318 = vmatpush1.msra.mxu0 %v204
    %319 = vmatprep.subr.mxu0 0.0
    %320 = vmatpush1.msra.mxu0 %v205
    %321 = vmatprep.subr.mxu0 0.0
    %322 = vmatpush1.msra.mxu0 %v206
    %323 = vmatprep.subr.mxu0 0.0
    %324 = vmatpush1.msra.mxu0 0.0
    %325 = vmatprep.subr.mxu0 0.0
    %326 = vmatpush1.msra.mxu0 0.0
    %327 = vmatprep.subr.mxu0 0.0
    %328 = vmatpush1.msra.mxu0 0.0
    %329 = vmatprep.subr.mxu0 0.0
    %330 = vmatpush1.msra.mxu0 0.0
    %331 = vmatprep.subr.mxu0 0.0
    %332 = vmatpush1.msra.mxu0 0.0
    %333 = vmatprep.subr.mxu0 0.0
    %334 = vmatpush1.msra.mxu0 0.0
    %335 = vmatprep.subr.mxu0 0.0
    %336 = vmatpush1.msra.mxu0 0.0
    %337 = vmatprep.subr.mxu0 0.0
    %338 = vmatpush1.msra.mxu0 0.0
    %339 = vmatprep.subr.mxu0 0.0
    %340 = vmatpush1.msra.mxu0 0.0
    %341 = vmatprep.subr.mxu0 0.0
    %342 = vmatpush1.msra.mxu0 0.0
    %343 = vmatprep.subr.mxu0 0.0
    %344 = vmatpush1.msra.mxu0 0.0
    %345 = vmatprep.subr.mxu0 0.0
    %346 = vmatpush1.msra.mxu0 0.0
    %347 = vmatprep.subr.mxu0 0.0
    %348 = vmatpush1.msra.mxu0 0.0
    %349 = vmatprep.subr.mxu0 0.0
    %350 = vmatpush1.msra.mxu0 0.0
    %351 = vmatprep.subr.mxu0 0.0
    %352 = vmatpush1.msra.mxu0 0.0
    %353 = vmatprep.subr.mxu0 0.0
    %354 = vmatpush1.msra.mxu0 0.0
    %355 = vmatprep.subr.mxu0 0.0
    %356 = vmatpush1.msra.mxu0 0.0
    %357 = vmatprep.subr.mxu0 0.0
    %358 = vmatpush1.msra.mxu0 0.0
    %359 = vmatprep.subr.mxu0 0.0
    %360 = vmatpush1.msra.mxu0 0.0
    %361 = vmatprep.subr.mxu0 0.0
    %362 = vmatpush1.msra.mxu0 0.0
    %363 = vmatprep.subr.mxu0 0.0
    %364 = vmatpush1.msra.mxu0 0.0
    %365 = vmatprep.subr.mxu0 0.0
    %366 = vmatpush1.msra.mxu0 0.0
    %367 = vmatprep.subr.mxu0 0.0
    %368 = vmatpush1.msra.mxu0 0.0
    %369 = vmatprep.subr.mxu0 0.0
    %370 = vmatpush1.msra.mxu0 0.0
    %371 = vmatprep.subr.mxu0 0.0
    %372 = vmatpush1.msra.mxu0 0.0
    %373 = vmatprep.subr.mxu0 0.0
    %374 = vmatpush1.msra.mxu0 0.0
    %375 = vmatprep.subr.mxu0 0.0
    %376 = vmatpush1.msra.mxu0 0.0
    %377 = vmatprep.subr.mxu0 0.0
    %378 = vmatpush1.msra.mxu0 0.0
    %379 = vmatprep.mubr.f32.mxu0 0.0
    %380 = vmatmul.mubr.f32.gmra.mrb[0].mxu0 %v313
    %v381 = vpop.f32.mrb[0].mxu0
    %v382 = vadd.f32 0.0, %v381
    %v383 = vpop.f32.mrb[0].mxu0
    %384 = vdwg.mxu0
    %v385 = vadd.f32 %v312, %v382
    %v386 = vxor.u32 %v385, 2147483648
    %v387 = vmul.f32 %v386, 1.442695
    %v388 = vpow.pop %v387
    %v389 = vadd.f32 %v388, 1.0
    %v390 = vrcp.pop %v389
    %v391 = vmul.f32 1.0, %v390
    %v392 = vtanh.pop %v385
    %v393 = vmul.f32 %v391, %v299
    %395 = vrot.lane.b32.xlu0 %v392, 32
    %v396 = vpop.permute.xlu0 %395
    %v398 = vmul.f32 %v391, %v396
    %400 = vrot.lane.b32.xlu0 %v398, 32
    %v401 = vpop.permute.xlu0 %400
    %v403 = vadd.f32 %v393, %v401
    %v404 = vtanh.pop %v403
    %406 = vrot.lane.b32.xlu0 %v404, 32
    %v407 = vpop.permute.xlu0 %406
    %v409 = vmul.f32 %v391, %v407
    %411 = vrot.lane.b32.xlu0 %v409, 64
    %v412 = vpop.permute.xlu0 %411
    %s414 = scalar_lea.vmem [#allocation3], 8
    %415 = vst.msk [vmem:[%s414] sm:$0xff] %vm56, %v412
    %s416 = scalar_lea.vmem [#allocation2], 16
    %v417 = vld [vmem:[%s416] sm:$0xff]
    %v418 = vsel %vm56, %v412, 0
    %420 = vmatprep.subr.mxu0 0.0
    %421 = vmatpush1.msra.mxu0 %v203
    %422 = vmatprep.subr.mxu0 0.0
    %423 = vmatpush1.msra.mxu0 %v204
    %424 = vmatprep.subr.mxu0 0.0
    %425 = vmatpush1.msra.mxu0 %v205
    %426 = vmatprep.subr.mxu0 0.0
    %427 = vmatpush1.msra.mxu0 %v206
    %428 = vmatprep.subr.mxu0 0.0
    %429 = vmatpush1.msra.mxu0 0.0
    %430 = vmatprep.subr.mxu0 0.0
    %431 = vmatpush1.msra.mxu0 0.0
    %432 = vmatprep.subr.mxu0 0.0
    %433 = vmatpush1.msra.mxu0 0.0
    %434 = vmatprep.subr.mxu0 0.0
    %435 = vmatpush1.msra.mxu0 0.0
    %436 = vmatprep.subr.mxu0 0.0
    %437 = vmatpush1.msra.mxu0 0.0
    %438 = vmatprep.subr.mxu0 0.0
    %439 = vmatpush1.msra.mxu0 0.0
    %440 = vmatprep.subr.mxu0 0.0
    %441 = vmatpush1.msra.mxu0 0.0
    %442 = vmatprep.subr.mxu0 0.0
    %443 = vmatpush1.msra.mxu0 0.0
    %444 = vmatprep.subr.mxu0 0.0
    %445 = vmatpush1.msra.mxu0 0.0
    %446 = vmatprep.subr.mxu0 0.0
    %447 = vmatpush1.msra.mxu0 0.0
    %448 = vmatprep.subr.mxu0 0.0
    %449 = vmatpush1.msra.mxu0 0.0
    %450 = vmatprep.subr.mxu0 0.0
    %451 = vmatpush1.msra.mxu0 0.0
    %452 = vmatprep.subr.mxu0 0.0
    %453 = vmatpush1.msra.mxu0 0.0
    %454 = vmatprep.subr.mxu0 0.0
    %455 = vmatpush1.msra.mxu0 0.0
    %456 = vmatprep.subr.mxu0 0.0
    %457 = vmatpush1.msra.mxu0 0.0
    %458 = vmatprep.subr.mxu0 0.0
    %459 = vmatpush1.msra.mxu0 0.0
    %460 = vmatprep.subr.mxu0 0.0
    %461 = vmatpush1.msra.mxu0 0.0
    %462 = vmatprep.subr.mxu0 0.0
    %463 = vmatpush1.msra.mxu0 0.0
    %464 = vmatprep.subr.mxu0 0.0
    %465 = vmatpush1.msra.mxu0 0.0
    %466 = vmatprep.subr.mxu0 0.0
    %467 = vmatpush1.msra.mxu0 0.0
    %468 = vmatprep.subr.mxu0 0.0
    %469 = vmatpush1.msra.mxu0 0.0
    %470 = vmatprep.subr.mxu0 0.0
    %471 = vmatpush1.msra.mxu0 0.0
    %472 = vmatprep.subr.mxu0 0.0
    %473 = vmatpush1.msra.mxu0 0.0
    %474 = vmatprep.subr.mxu0 0.0
    %475 = vmatpush1.msra.mxu0 0.0
    %476 = vmatprep.subr.mxu0 0.0
    %477 = vmatpush1.msra.mxu0 0.0
    %478 = vmatprep.subr.mxu0 0.0
    %479 = vmatpush1.msra.mxu0 0.0
    %480 = vmatprep.subr.mxu0 0.0
    %481 = vmatpush1.msra.mxu0 0.0
    %482 = vmatprep.subr.mxu0 0.0
    %483 = vmatpush1.msra.mxu0 0.0
    %484 = vmatprep.mubr.f32.mxu0 0.0
    %485 = vmatmul.mubr.f32.gmra.mrb[0].mxu0 %v418
    %v486 = vpop.f32.mrb[0].mxu0
    %v487 = vadd.f32 0.0, %v486
    %v488 = vpop.f32.mrb[0].mxu0
    %489 = vdwg.mxu0
    %v490 = vadd.f32 %v417, %v487
    %v491 = vxor.u32 %v490, 2147483648
    %v492 = vmul.f32 %v491, 1.442695
    %v493 = vpow.pop %v492
    %v494 = vadd.f32 %v493, 1.0
    %v495 = vrcp.pop %v494
    %v496 = vmul.f32 1.0, %v495
    %v497 = vtanh.pop %v490
    %v498 = vmul.f32 %v496, %v403
    %500 = vrot.lane.b32.xlu0 %v497, 32
    %v501 = vpop.permute.xlu0 %500
    %v503 = vmul.f32 %v496, %v501
    %505 = vrot.lane.b32.xlu0 %v503, 32
    %v506 = vpop.permute.xlu0 %505
    %v508 = vadd.f32 %v498, %v506
    %v509 = vtanh.pop %v508
    %511 = vrot.lane.b32.xlu0 %v509, 32
    %v512 = vpop.permute.xlu0 %511
    %v514 = vmul.f32 %v496, %v512
    %516 = vrot.lane.b32.xlu0 %v514, 64
    %v517 = vpop.permute.xlu0 %516
    %s519 = scalar_lea.vmem [#allocation3], 16
    %520 = vst.msk [vmem:[%s519] sm:$0xff] %vm56, %v517
    %s521 = scalar_lea.vmem [#allocation2], 24
    %v522 = vld [vmem:[%s521] sm:$0xff]
    %v523 = vsel %vm56, %v517, 0
    %525 = vmatprep.subr.mxu0 0.0
    %526 = vmatpush1.msra.mxu0 %v203
    %527 = vmatprep.subr.mxu0 0.0
    %528 = vmatpush1.msra.mxu0 %v204
    %529 = vmatprep.subr.mxu0 0.0
    %530 = vmatpush1.msra.mxu0 %v205
    %531 = vmatprep.subr.mxu0 0.0
    %532 = vmatpush1.msra.mxu0 %v206
    %533 = vmatprep.subr.mxu0 0.0
    %534 = vmatpush1.msra.mxu0 0.0
    %535 = vmatprep.subr.mxu0 0.0
    %536 = vmatpush1.msra.mxu0 0.0
    %537 = vmatprep.subr.mxu0 0.0
    %538 = vmatpush1.msra.mxu0 0.0
    %539 = vmatprep.subr.mxu0 0.0
    %540 = vmatpush1.msra.mxu0 0.0
    %541 = vmatprep.subr.mxu0 0.0
    %542 = vmatpush1.msra.mxu0 0.0
    %543 = vmatprep.subr.mxu0 0.0
    %544 = vmatpush1.msra.mxu0 0.0
    %545 = vmatprep.subr.mxu0 0.0
    %546 = vmatpush1.msra.mxu0 0.0
    %547 = vmatprep.subr.mxu0 0.0
    %548 = vmatpush1.msra.mxu0 0.0
    %549 = vmatprep.subr.mxu0 0.0
    %550 = vmatpush1.msra.mxu0 0.0
    %551 = vmatprep.subr.mxu0 0.0
    %552 = vmatpush1.msra.mxu0 0.0
    %553 = vmatprep.subr.mxu0 0.0
    %554 = vmatpush1.msra.mxu0 0.0
    %555 = vmatprep.subr.mxu0 0.0
    %556 = vmatpush1.msra.mxu0 0.0
    %557 = vmatprep.subr.mxu0 0.0
    %558 = vmatpush1.msra.mxu0 0.0
    %559 = vmatprep.subr.mxu0 0.0
    %560 = vmatpush1.msra.mxu0 0.0
    %561 = vmatprep.subr.mxu0 0.0
    %562 = vmatpush1.msra.mxu0 0.0
    %563 = vmatprep.subr.mxu0 0.0
    %564 = vmatpush1.msra.mxu0 0.0
    %565 = vmatprep.subr.mxu0 0.0
    %566 = vmatpush1.msra.mxu0 0.0
    %567 = vmatprep.subr.mxu0 0.0
    %568 = vmatpush1.msra.mxu0 0.0
    %569 = vmatprep.subr.mxu0 0.0
    %570 = vmatpush1.msra.mxu0 0.0
    %571 = vmatprep.subr.mxu0 0.0
    %572 = vmatpush1.msra.mxu0 0.0
    %573 = vmatprep.subr.mxu0 0.0
    %574 = vmatpush1.msra.mxu0 0.0
    %575 = vmatprep.subr.mxu0 0.0
    %576 = vmatpush1.msra.mxu0 0.0
    %577 = vmatprep.subr.mxu0 0.0
    %578 = vmatpush1.msra.mxu0 0.0
    %579 = vmatprep.subr.mxu0 0.0
    %580 = vmatpush1.msra.mxu0 0.0
    %581 = vmatprep.subr.mxu0 0.0
    %582 = vmatpush1.msra.mxu0 0.0
    %583 = vmatprep.subr.mxu0 0.0
    %584 = vmatpush1.msra.mxu0 0.0
    %585 = vmatprep.subr.mxu0 0.0
    %586 = vmatpush1.msra.mxu0 0.0
    %587 = vmatprep.subr.mxu0 0.0
    %588 = vmatpush1.msra.mxu0 0.0
    %589 = vmatprep.mubr.f32.mxu0 0.0
    %590 = vmatmul.mubr.f32.gmra.mrb[0].mxu0 %v523
    %v591 = vpop.f32.mrb[0].mxu0
    %v592 = vadd.f32 0.0, %v591
    %v593 = vpop.f32.mrb[0].mxu0
    %594 = vdwg.mxu0
    %v595 = vadd.f32 %v522, %v592
    %v596 = vxor.u32 %v595, 2147483648
    %v597 = vmul.f32 %v596, 1.442695
    %v598 = vpow.pop %v597
    %v599 = vadd.f32 %v598, 1.0
    %v600 = vrcp.pop %v599
    %v601 = vmul.f32 1.0, %v600
    %v602 = vtanh.pop %v595
    %v603 = vmul.f32 %v601, %v508
    %605 = vrot.lane.b32.xlu0 %v602, 32
    %v606 = vpop.permute.xlu0 %605
    %v608 = vmul.f32 %v601, %v606
    %610 = vrot.lane.b32.xlu0 %v608, 32
    %v611 = vpop.permute.xlu0 %610
    %v613 = vadd.f32 %v603, %v611
    %v614 = vtanh.pop %v613
    %616 = vrot.lane.b32.xlu0 %v614, 32
    %v617 = vpop.permute.xlu0 %616
    %v619 = vmul.f32 %v601, %v617
    %621 = vrot.lane.b32.xlu0 %v619, 64
    %v622 = vpop.permute.xlu0 %621
    %s624 = scalar_lea.vmem [#allocation3], 24
    %625 = vst.msk [vmem:[%s624] sm:$0xff] %vm56, %v622
    %s626 = scalar_lea.vmem [#allocation2], 32
    %v627 = vld [vmem:[%s626] sm:$0xff]
    %v628 = vsel %vm56, %v622, 0
    %630 = vmatprep.subr.mxu0 0.0
    %631 = vmatpush1.msra.mxu0 %v203
    %632 = vmatprep.subr.mxu0 0.0
    %633 = vmatpush1.msra.mxu0 %v204
    %634 = vmatprep.subr.mxu0 0.0
    %635 = vmatpush1.msra.mxu0 %v205
    %636 = vmatprep.subr.mxu0 0.0
    %637 = vmatpush1.msra.mxu0 %v206
    %638 = vmatprep.subr.mxu0 0.0
    %639 = vmatpush1.msra.mxu0 0.0
    %640 = vmatprep.subr.mxu0 0.0
    %641 = vmatpush1.msra.mxu0 0.0
    %642 = vmatprep.subr.mxu0 0.0
    %643 = vmatpush1.msra.mxu0 0.0
    %644 = vmatprep.subr.mxu0 0.0
    %645 = vmatpush1.msra.mxu0 0.0
    %646 = vmatprep.subr.mxu0 0.0
    %647 = vmatpush1.msra.mxu0 0.0
    %648 = vmatprep.subr.mxu0 0.0
    %649 = vmatpush1.msra.mxu0 0.0
    %650 = vmatprep.subr.mxu0 0.0
    %651 = vmatpush1.msra.mxu0 0.0
    %652 = vmatprep.subr.mxu0 0.0
    %653 = vmatpush1.msra.mxu0 0.0
    %654 = vmatprep.subr.mxu0 0.0
    %655 = vmatpush1.msra.mxu0 0.0
    %656 = vmatprep.subr.mxu0 0.0
    %657 = vmatpush1.msra.mxu0 0.0
    %658 = vmatprep.subr.mxu0 0.0
    %659 = vmatpush1.msra.mxu0 0.0
    %660 = vmatprep.subr.mxu0 0.0
    %661 = vmatpush1.msra.mxu0 0.0
    %662 = vmatprep.subr.mxu0 0.0
    %663 = vmatpush1.msra.mxu0 0.0
    %664 = vmatprep.subr.mxu0 0.0
    %665 = vmatpush1.msra.mxu0 0.0
    %666 = vmatprep.subr.mxu0 0.0
    %667 = vmatpush1.msra.mxu0 0.0
    %668 = vmatprep.subr.mxu0 0.0
    %669 = vmatpush1.msra.mxu0 0.0
    %670 = vmatprep.subr.mxu0 0.0
    %671 = vmatpush1.msra.mxu0 0.0
    %672 = vmatprep.subr.mxu0 0.0
    %673 = vmatpush1.msra.mxu0 0.0
    %674 = vmatprep.subr.mxu0 0.0
    %675 = vmatpush1.msra.mxu0 0.0
    %676 = vmatprep.subr.mxu0 0.0
    %677 = vmatpush1.msra.mxu0 0.0
    %678 = vmatprep.subr.mxu0 0.0
    %679 = vmatpush1.msra.mxu0 0.0
    %680 = vmatprep.subr.mxu0 0.0
    %681 = vmatpush1.msra.mxu0 0.0
    %682 = vmatprep.subr.mxu0 0.0
    %683 = vmatpush1.msra.mxu0 0.0
    %684 = vmatprep.subr.mxu0 0.0
    %685 = vmatpush1.msra.mxu0 0.0
    %686 = vmatprep.subr.mxu0 0.0
    %687 = vmatpush1.msra.mxu0 0.0
    %688 = vmatprep.subr.mxu0 0.0
    %689 = vmatpush1.msra.mxu0 0.0
    %690 = vmatprep.subr.mxu0 0.0
    %691 = vmatpush1.msra.mxu0 0.0
    %692 = vmatprep.subr.mxu0 0.0
    %693 = vmatpush1.msra.mxu0 0.0
    %694 = vmatprep.mubr.f32.mxu0 0.0
    %695 = vmatmul.mubr.f32.gmra.mrb[0].mxu0 %v628
    %v696 = vpop.f32.mrb[0].mxu0
    %v697 = vadd.f32 0.0, %v696
    %v698 = vpop.f32.mrb[0].mxu0
    %699 = vdwg.mxu0
    %v700 = vadd.f32 %v627, %v697
    %v701 = vxor.u32 %v700, 2147483648
    %v702 = vmul.f32 %v701, 1.442695
    %v703 = vpow.pop %v702
    %v704 = vadd.f32 %v703, 1.0
    %v705 = vrcp.pop %v704
    %v706 = vmul.f32 1.0, %v705
    %v707 = vtanh.pop %v700
    %v708 = vmul.f32 %v706, %v613
    %710 = vrot.lane.b32.xlu0 %v707, 32
    %v711 = vpop.permute.xlu0 %710
    %v713 = vmul.f32 %v706, %v711
    %715 = vrot.lane.b32.xlu0 %v713, 32
    %v716 = vpop.permute.xlu0 %715
    %v718 = vadd.f32 %v708, %v716
    %v719 = vtanh.pop %v718
    %721 = vrot.lane.b32.xlu0 %v719, 32
    %v722 = vpop.permute.xlu0 %721
    %v724 = vmul.f32 %v706, %v722
    %726 = vrot.lane.b32.xlu0 %v724, 64
    %v727 = vpop.permute.xlu0 %726
    %s729 = scalar_lea.vmem [#allocation3], 32
    %730 = vst.msk [vmem:[%s729] sm:$0xff] %vm56, %v727
    %s731 = scalar_lea.vmem [#allocation2], 40
    %v732 = vld [vmem:[%s731] sm:$0xff]
    %v733 = vsel %vm56, %v727, 0
    %735 = vmatprep.subr.mxu0 0.0
    %736 = vmatpush1.msra.mxu0 %v203
    %737 = vmatprep.subr.mxu0 0.0
    %738 = vmatpush1.msra.mxu0 %v204
    %739 = vmatprep.subr.mxu0 0.0
    %740 = vmatpush1.msra.mxu0 %v205
    %741 = vmatprep.subr.mxu0 0.0
    %742 = vmatpush1.msra.mxu0 %v206
    %743 = vmatprep.subr.mxu0 0.0
    %744 = vmatpush1.msra.mxu0 0.0
    %745 = vmatprep.subr.mxu0 0.0
    %746 = vmatpush1.msra.mxu0 0.0
    %747 = vmatprep.subr.mxu0 0.0
    %748 = vmatpush1.msra.mxu0 0.0
    %749 = vmatprep.subr.mxu0 0.0
    %750 = vmatpush1.msra.mxu0 0.0
    %751 = vmatprep.subr.mxu0 0.0
    %752 = vmatpush1.msra.mxu0 0.0
    %753 = vmatprep.subr.mxu0 0.0
    %754 = vmatpush1.msra.mxu0 0.0
    %755 = vmatprep.subr.mxu0 0.0
    %756 = vmatpush1.msra.mxu0 0.0
    %757 = vmatprep.subr.mxu0 0.0
    %758 = vmatpush1.msra.mxu0 0.0
    %759 = vmatprep.subr.mxu0 0.0
    %760 = vmatpush1.msra.mxu0 0.0
    %761 = vmatprep.subr.mxu0 0.0
    %762 = vmatpush1.msra.mxu0 0.0
    %763 = vmatprep.subr.mxu0 0.0
    %764 = vmatpush1.msra.mxu0 0.0
    %765 = vmatprep.subr.mxu0 0.0
    %766 = vmatpush1.msra.mxu0 0.0
    %767 = vmatprep.subr.mxu0 0.0
    %768 = vmatpush1.msra.mxu0 0.0
    %769 = vmatprep.subr.mxu0 0.0
    %770 = vmatpush1.msra.mxu0 0.0
    %771 = vmatprep.subr.mxu0 0.0
    %772 = vmatpush1.msra.mxu0 0.0
    %773 = vmatprep.subr.mxu0 0.0
    %774 = vmatpush1.msra.mxu0 0.0
    %775 = vmatprep.subr.mxu0 0.0
    %776 = vmatpush1.msra.mxu0 0.0
    %777 = vmatprep.subr.mxu0 0.0
    %778 = vmatpush1.msra.mxu0 0.0
    %779 = vmatprep.subr.mxu0 0.0
    %780 = vmatpush1.msra.mxu0 0.0
    %781 = vmatprep.subr.mxu0 0.0
    %782 = vmatpush1.msra.mxu0 0.0
    %783 = vmatprep.subr.mxu0 0.0
    %784 = vmatpush1.msra.mxu0 0.0
    %785 = vmatprep.subr.mxu0 0.0
    %786 = vmatpush1.msra.mxu0 0.0
    %787 = vmatprep.subr.mxu0 0.0
    %788 = vmatpush1.msra.mxu0 0.0
    %789 = vmatprep.subr.mxu0 0.0
    %790 = vmatpush1.msra.mxu0 0.0
    %791 = vmatprep.subr.mxu0 0.0
    %792 = vmatpush1.msra.mxu0 0.0
    %793 = vmatprep.subr.mxu0 0.0
    %794 = vmatpush1.msra.mxu0 0.0
    %795 = vmatprep.subr.mxu0 0.0
    %796 = vmatpush1.msra.mxu0 0.0
    %797 = vmatprep.subr.mxu0 0.0
    %798 = vmatpush1.msra.mxu0 0.0
    %799 = vmatprep.mubr.f32.mxu0 0.0
    %800 = vmatmul.mubr.f32.gmra.mrb[0].mxu0 %v733
    %v801 = vpop.f32.mrb[0].mxu0
    %v802 = vadd.f32 0.0, %v801
    %v803 = vpop.f32.mrb[0].mxu0
    %804 = vdwg.mxu0
    %v805 = vadd.f32 %v732, %v802
    %v806 = vxor.u32 %v805, 2147483648
    %v807 = vmul.f32 %v806, 1.442695
    %v808 = vpow.pop %v807
    %v809 = vadd.f32 %v808, 1.0
    %v810 = vrcp.pop %v809
    %v811 = vmul.f32 1.0, %v810
    %v812 = vtanh.pop %v805
    %v813 = vmul.f32 %v811, %v718
    %815 = vrot.lane.b32.xlu0 %v812, 32
    %v816 = vpop.permute.xlu0 %815
    %v818 = vmul.f32 %v811, %v816
    %820 = vrot.lane.b32.xlu0 %v818, 32
    %v821 = vpop.permute.xlu0 %820
    %v823 = vadd.f32 %v813, %v821
    %v824 = vtanh.pop %v823
    %826 = vrot.lane.b32.xlu0 %v824, 32
    %v827 = vpop.permute.xlu0 %826
    %v829 = vmul.f32 %v811, %v827
    %831 = vrot.lane.b32.xlu0 %v829, 64
    %v832 = vpop.permute.xlu0 %831
    %s834 = scalar_lea.vmem [#allocation3], 40
    %835 = vst.msk [vmem:[%s834] sm:$0xff] %vm56, %v832
    %s836 = scalar_lea.vmem [#allocation2], 48
    %v837 = vld [vmem:[%s836] sm:$0xff]
    %v838 = vsel %vm56, %v832, 0
    %840 = vmatprep.subr.mxu0 0.0
    %841 = vmatpush1.msra.mxu0 %v203
    %842 = vmatprep.subr.mxu0 0.0
    %843 = vmatpush1.msra.mxu0 %v204
    %844 = vmatprep.subr.mxu0 0.0
    %845 = vmatpush1.msra.mxu0 %v205
    %846 = vmatprep.subr.mxu0 0.0
    %847 = vmatpush1.msra.mxu0 %v206
    %848 = vmatprep.subr.mxu0 0.0
    %849 = vmatpush1.msra.mxu0 0.0
    %850 = vmatprep.subr.mxu0 0.0
    %851 = vmatpush1.msra.mxu0 0.0
    %852 = vmatprep.subr.mxu0 0.0
    %853 = vmatpush1.msra.mxu0 0.0
    %854 = vmatprep.subr.mxu0 0.0
    %855 = vmatpush1.msra.mxu0 0.0
    %856 = vmatprep.subr.mxu0 0.0
    %857 = vmatpush1.msra.mxu0 0.0
    %858 = vmatprep.subr.mxu0 0.0
    %859 = vmatpush1.msra.mxu0 0.0
    %860 = vmatprep.subr.mxu0 0.0
    %861 = vmatpush1.msra.mxu0 0.0
    %862 = vmatprep.subr.mxu0 0.0
    %863 = vmatpush1.msra.mxu0 0.0
    %864 = vmatprep.subr.mxu0 0.0
    %865 = vmatpush1.msra.mxu0 0.0
    %866 = vmatprep.subr.mxu0 0.0
    %867 = vmatpush1.msra.mxu0 0.0
    %868 = vmatprep.subr.mxu0 0.0
    %869 = vmatpush1.msra.mxu0 0.0
    %870 = vmatprep.subr.mxu0 0.0
    %871 = vmatpush1.msra.mxu0 0.0
    %872 = vmatprep.subr.mxu0 0.0
    %873 = vmatpush1.msra.mxu0 0.0
    %874 = vmatprep.subr.mxu0 0.0
    %875 = vmatpush1.msra.mxu0 0.0
    %876 = vmatprep.subr.mxu0 0.0
    %877 = vmatpush1.msra.mxu0 0.0
    %878 = vmatprep.subr.mxu0 0.0
    %879 = vmatpush1.msra.mxu0 0.0
    %880 = vmatprep.subr.mxu0 0.0
    %881 = vmatpush1.msra.mxu0 0.0
    %882 = vmatprep.subr.mxu0 0.0
    %883 = vmatpush1.msra.mxu0 0.0
    %884 = vmatprep.subr.mxu0 0.0
    %885 = vmatpush1.msra.mxu0 0.0
    %886 = vmatprep.subr.mxu0 0.0
    %887 = vmatpush1.msra.mxu0 0.0
    %888 = vmatprep.subr.mxu0 0.0
    %889 = vmatpush1.msra.mxu0 0.0
    %890 = vmatprep.subr.mxu0 0.0
    %891 = vmatpush1.msra.mxu0 0.0
    %892 = vmatprep.subr.mxu0 0.0
    %893 = vmatpush1.msra.mxu0 0.0
    %894 = vmatprep.subr.mxu0 0.0
    %895 = vmatpush1.msra.mxu0 0.0
    %896 = vmatprep.subr.mxu0 0.0
    %897 = vmatpush1.msra.mxu0 0.0
    %898 = vmatprep.subr.mxu0 0.0
    %899 = vmatpush1.msra.mxu0 0.0
    %900 = vmatprep.subr.mxu0 0.0
    %901 = vmatpush1.msra.mxu0 0.0
    %902 = vmatprep.subr.mxu0 0.0
    %903 = vmatpush1.msra.mxu0 0.0
    %904 = vmatprep.mubr.f32.mxu0 0.0
    %905 = vmatmul.mubr.f32.gmra.mrb[0].mxu0 %v838
    %v906 = vpop.f32.mrb[0].mxu0
    %v907 = vadd.f32 0.0, %v906
    %v908 = vpop.f32.mrb[0].mxu0
    %909 = vdwg.mxu0
    %v910 = vadd.f32 %v837, %v907
    %v911 = vxor.u32 %v910, 2147483648
    %v912 = vmul.f32 %v911, 1.442695
    %v913 = vpow.pop %v912
    %v914 = vadd.f32 %v913, 1.0
    %v915 = vrcp.pop %v914
    %v916 = vmul.f32 1.0, %v915
    %v917 = vtanh.pop %v910
    %v918 = vmul.f32 %v916, %v823
    %920 = vrot.lane.b32.xlu0 %v917, 32
    %v921 = vpop.permute.xlu0 %920
    %v923 = vmul.f32 %v916, %v921
    %925 = vrot.lane.b32.xlu0 %v923, 32
    %v926 = vpop.permute.xlu0 %925
    %v928 = vadd.f32 %v918, %v926
    %v929 = vtanh.pop %v928
    %931 = vrot.lane.b32.xlu0 %v929, 32
    %v932 = vpop.permute.xlu0 %931
    %v934 = vmul.f32 %v916, %v932
    %936 = vrot.lane.b32.xlu0 %v934, 64
    %v937 = vpop.permute.xlu0 %936
    %s939 = scalar_lea.vmem [#allocation3], 48
    %940 = vst.msk [vmem:[%s939] sm:$0xff] %vm56, %v937
    %s941 = scalar_lea.vmem [#allocation2], 56
    %v942 = vld [vmem:[%s941] sm:$0xff]
    %v943 = vsel %vm56, %v937, 0
    %945 = vmatprep.subr.mxu0 0.0
    %946 = vmatpush1.msra.mxu0 %v203
    %947 = vmatprep.subr.mxu0 0.0
    %948 = vmatpush1.msra.mxu0 %v204
    %949 = vmatprep.subr.mxu0 0.0
    %950 = vmatpush1.msra.mxu0 %v205
    %951 = vmatprep.subr.mxu0 0.0
    %952 = vmatpush1.msra.mxu0 %v206
    %953 = vmatprep.subr.mxu0 0.0
    %954 = vmatpush1.msra.mxu0 0.0
    %955 = vmatprep.subr.mxu0 0.0
    %956 = vmatpush1.msra.mxu0 0.0
    %957 = vmatprep.subr.mxu0 0.0
    %958 = vmatpush1.msra.mxu0 0.0
    %959 = vmatprep.subr.mxu0 0.0
    %960 = vmatpush1.msra.mxu0 0.0
    %961 = vmatprep.subr.mxu0 0.0
    %962 = vmatpush1.msra.mxu0 0.0
    %963 = vmatprep.subr.mxu0 0.0
    %964 = vmatpush1.msra.mxu0 0.0
    %965 = vmatprep.subr.mxu0 0.0
    %966 = vmatpush1.msra.mxu0 0.0
    %967 = vmatprep.subr.mxu0 0.0
    %968 = vmatpush1.msra.mxu0 0.0
    %969 = vmatprep.subr.mxu0 0.0
    %970 = vmatpush1.msra.mxu0 0.0
    %971 = vmatprep.subr.mxu0 0.0
    %972 = vmatpush1.msra.mxu0 0.0
    %973 = vmatprep.subr.mxu0 0.0
    %974 = vmatpush1.msra.mxu0 0.0
    %975 = vmatprep.subr.mxu0 0.0
    %976 = vmatpush1.msra.mxu0 0.0
    %977 = vmatprep.subr.mxu0 0.0
    %978 = vmatpush1.msra.mxu0 0.0
    %979 = vmatprep.subr.mxu0 0.0
    %980 = vmatpush1.msra.mxu0 0.0
    %981 = vmatprep.subr.mxu0 0.0
    %982 = vmatpush1.msra.mxu0 0.0
    %983 = vmatprep.subr.mxu0 0.0
    %984 = vmatpush1.msra.mxu0 0.0
    %985 = vmatprep.subr.mxu0 0.0
    %986 = vmatpush1.msra.mxu0 0.0
    %987 = vmatprep.subr.mxu0 0.0
    %988 = vmatpush1.msra.mxu0 0.0
    %989 = vmatprep.subr.mxu0 0.0
    %990 = vmatpush1.msra.mxu0 0.0
    %991 = vmatprep.subr.mxu0 0.0
    %992 = vmatpush1.msra.mxu0 0.0
    %993 = vmatprep.subr.mxu0 0.0
    %994 = vmatpush1.msra.mxu0 0.0
    %995 = vmatprep.subr.mxu0 0.0
    %996 = vmatpush1.msra.mxu0 0.0
    %997 = vmatprep.subr.mxu0 0.0
    %998 = vmatpush1.msra.mxu0 0.0
    %999 = vmatprep.subr.mxu0 0.0
    %1000 = vmatpush1.msra.mxu0 0.0
    %1001 = vmatprep.subr.mxu0 0.0
    %1002 = vmatpush1.msra.mxu0 0.0
    %1003 = vmatprep.subr.mxu0 0.0
    %1004 = vmatpush1.msra.mxu0 0.0
    %1005 = vmatprep.subr.mxu0 0.0
    %1006 = vmatpush1.msra.mxu0 0.0
    %1007 = vmatprep.subr.mxu0 0.0
    %1008 = vmatpush1.msra.mxu0 0.0
    %1009 = vmatprep.mubr.f32.mxu0 0.0
    %1010 = vmatmul.mubr.f32.gmra.mrb[0].mxu0 %v943
    %v1011 = vpop.f32.mrb[0].mxu0
    %v1012 = vadd.f32 0.0, %v1011
    %v1013 = vpop.f32.mrb[0].mxu0
    %1014 = vdwg.mxu0
    %v1015 = vadd.f32 %v942, %v1012
    %v1016 = vxor.u32 %v1015, 2147483648
    %v1017 = vmul.f32 %v1016, 1.442695
    %v1018 = vpow.pop %v1017
    %v1019 = vadd.f32 %v1018, 1.0
    %v1020 = vrcp.pop %v1019
    %v1021 = vmul.f32 1.0, %v1020
    %v1022 = vtanh.pop %v1015
    %v1023 = vmul.f32 %v1021, %v928
    %1025 = vrot.lane.b32.xlu0 %v1022, 32
    %v1026 = vpop.permute.xlu0 %1025
    %v1028 = vmul.f32 %v1021, %v1026
    %1030 = vrot.lane.b32.xlu0 %v1028, 32
    %v1031 = vpop.permute.xlu0 %1030
    %v1033 = vadd.f32 %v1023, %v1031
    %v1034 = vtanh.pop %v1033
    %1036 = vrot.lane.b32.xlu0 %v1034, 32
    %v1037 = vpop.permute.xlu0 %1036
    %v1039 = vmul.f32 %v1021, %v1037
    %1041 = vrot.lane.b32.xlu0 %v1039, 64
    %v1042 = vpop.permute.xlu0 %1041
    %s1044 = scalar_lea.vmem [#allocation3], 56
    %1045 = vst.msk [vmem:[%s1044] sm:$0xff] %vm56, %v1042
    %s1046 = scalar_lea.vmem [#allocation2], 64
    %v1047 = vld [vmem:[%s1046] sm:$0xff]
    %v1048 = vsel %vm56, %v1042, 0
    %1050 = vmatprep.subr.mxu0 0.0
    %1051 = vmatpush1.msra.mxu0 %v203
    %1052 = vmatprep.subr.mxu0 0.0
    %1053 = vmatpush1.msra.mxu0 %v204
    %1054 = vmatprep.subr.mxu0 0.0
    %1055 = vmatpush1.msra.mxu0 %v205
    %1056 = vmatprep.subr.mxu0 0.0
    %1057 = vmatpush1.msra.mxu0 %v206
    %1058 = vmatprep.subr.mxu0 0.0
    %1059 = vmatpush1.msra.mxu0 0.0
    %1060 = vmatprep.subr.mxu0 0.0
    %1061 = vmatpush1.msra.mxu0 0.0
    %1062 = vmatprep.subr.mxu0 0.0
    %1063 = vmatpush1.msra.mxu0 0.0
    %1064 = vmatprep.subr.mxu0 0.0
    %1065 = vmatpush1.msra.mxu0 0.0
    %1066 = vmatprep.subr.mxu0 0.0
    %1067 = vmatpush1.msra.mxu0 0.0
    %1068 = vmatprep.subr.mxu0 0.0
    %1069 = vmatpush1.msra.mxu0 0.0
    %1070 = vmatprep.subr.mxu0 0.0
    %1071 = vmatpush1.msra.mxu0 0.0
    %1072 = vmatprep.subr.mxu0 0.0
    %1073 = vmatpush1.msra.mxu0 0.0
    %1074 = vmatprep.subr.mxu0 0.0
    %1075 = vmatpush1.msra.mxu0 0.0
    %1076 = vmatprep.subr.mxu0 0.0
    %1077 = vmatpush1.msra.mxu0 0.0
    %1078 = vmatprep.subr.mxu0 0.0
    %1079 = vmatpush1.msra.mxu0 0.0
    %1080 = vmatprep.subr.mxu0 0.0
    %1081 = vmatpush1.msra.mxu0 0.0
    %1082 = vmatprep.subr.mxu0 0.0
    %1083 = vmatpush1.msra.mxu0 0.0
    %1084 = vmatprep.subr.mxu0 0.0
    %1085 = vmatpush1.msra.mxu0 0.0
    %1086 = vmatprep.subr.mxu0 0.0
    %1087 = vmatpush1.msra.mxu0 0.0
    %1088 = vmatprep.subr.mxu0 0.0
    %1089 = vmatpush1.msra.mxu0 0.0
    %1090 = vmatprep.subr.mxu0 0.0
    %1091 = vmatpush1.msra.mxu0 0.0
    %1092 = vmatprep.subr.mxu0 0.0
    %1093 = vmatpush1.msra.mxu0 0.0
    %1094 = vmatprep.subr.mxu0 0.0
    %1095 = vmatpush1.msra.mxu0 0.0
    %1096 = vmatprep.subr.mxu0 0.0
    %1097 = vmatpush1.msra.mxu0 0.0
    %1098 = vmatprep.subr.mxu0 0.0
    %1099 = vmatpush1.msra.mxu0 0.0
    %1100 = vmatprep.subr.mxu0 0.0
    %1101 = vmatpush1.msra.mxu0 0.0
    %1102 = vmatprep.subr.mxu0 0.0
    %1103 = vmatpush1.msra.mxu0 0.0
    %1104 = vmatprep.subr.mxu0 0.0
    %1105 = vmatpush1.msra.mxu0 0.0
    %1106 = vmatprep.subr.mxu0 0.0
    %1107 = vmatpush1.msra.mxu0 0.0
    %1108 = vmatprep.subr.mxu0 0.0
    %1109 = vmatpush1.msra.mxu0 0.0
    %1110 = vmatprep.subr.mxu0 0.0
    %1111 = vmatpush1.msra.mxu0 0.0
    %1112 = vmatprep.subr.mxu0 0.0
    %1113 = vmatpush1.msra.mxu0 0.0
    %1114 = vmatprep.mubr.f32.mxu0 0.0
    %1115 = vmatmul.mubr.f32.gmra.mrb[0].mxu0 %v1048
    %v1116 = vpop.f32.mrb[0].mxu0
    %v1117 = vadd.f32 0.0, %v1116
    %v1118 = vpop.f32.mrb[0].mxu0
    %1119 = vdwg.mxu0
    %v1120 = vadd.f32 %v1047, %v1117
    %v1121 = vxor.u32 %v1120, 2147483648
    %v1122 = vmul.f32 %v1121, 1.442695
    %v1123 = vpow.pop %v1122
    %v1124 = vadd.f32 %v1123, 1.0
    %v1125 = vrcp.pop %v1124
    %v1126 = vmul.f32 1.0, %v1125
    %v1127 = vtanh.pop %v1120
    %v1128 = vmul.f32 %v1126, %v1033
    %1130 = vrot.lane.b32.xlu0 %v1127, 32
    %v1131 = vpop.permute.xlu0 %1130
    %v1133 = vmul.f32 %v1126, %v1131
    %1135 = vrot.lane.b32.xlu0 %v1133, 32
    %v1136 = vpop.permute.xlu0 %1135
    %v1138 = vadd.f32 %v1128, %v1136
    %v1139 = vtanh.pop %v1138
    %1141 = vrot.lane.b32.xlu0 %v1139, 32
    %v1142 = vpop.permute.xlu0 %1141
    %v1144 = vmul.f32 %v1126, %v1142
    %1146 = vrot.lane.b32.xlu0 %v1144, 64
    %v1147 = vpop.permute.xlu0 %1146
    %s1149 = scalar_lea.vmem [#allocation3], 64
    %1150 = vst.msk [vmem:[%s1149] sm:$0xff] %vm56, %v1147
    %v1151 = vld [vmem:[#allocation3] sm:$0xff]
    %v1152 = vld [vmem:[#allocation3 + $0x8] sm:$0xff]
    %v1153 = vld [vmem:[#allocation3 + $0x10] sm:$0xff]
    %v1154 = vld [vmem:[#allocation3 + $0x18] sm:$0xff]
    %v1155 = vld [vmem:[#allocation3 + $0x20] sm:$0xff]
    %v1156 = vld [vmem:[#allocation3 + $0x28] sm:$0xff]
    %v1157 = vld [vmem:[#allocation3 + $0x30] sm:$0xff]
    %v1158 = vld [vmem:[#allocation3 + $0x38] sm:$0xff]
    %v1159 = vld [vmem:[#allocation3 + $0x40] sm:$0xff]
    %v1160 = vld [vmem:[%s4] sm:$0xff]
    %v1161 = vld [vmem:[%s4 + $0x8] sm:$0xff]
    %v1162 = vld [vmem:[%s4 + $0x10] sm:$0xff]
    %v1163 = vld [vmem:[%s4 + $0x18] sm:$0xff]
    %v1164 = vld [vmem:[%s6] sm:$0x1]
    %v1166 = vlaneseq
    %v1167 = vshrl.u32 %v1166, 7
    %v1168 = vsub.s32 0, %v1167
    %v1169 = vrot.slane %v1164, %v1168
    %v1172 = vsel %vm56, %v1151, 0
    %v1175 = vsel %vm56, %v1152, 0
    %v1178 = vsel %vm56, %v1153, 0
    %v1181 = vsel %vm56, %v1154, 0
    %v1184 = vsel %vm56, %v1155, 0
    %v1187 = vsel %vm56, %v1156, 0
    %v1190 = vsel %vm56, %v1157, 0
    %v1193 = vsel %vm56, %v1158, 0
    %v1196 = vsel %vm56, %v1159, 0
    %1198 = vmatprep.subr.mxu0 0.0
    %1199 = vmatpush1.msra.mxu0 %v1160
    %1200 = vmatprep.subr.mxu0 0.0
    %1201 = vmatpush1.msra.mxu0 %v1161
    %1202 = vmatprep.subr.mxu0 0.0
    %1203 = vmatpush1.msra.mxu0 %v1162
    %1204 = vmatprep.subr.mxu0 0.0
    %1205 = vmatpush1.msra.mxu0 %v1163
    %1206 = vmatprep.subr.mxu0 0.0
    %1207 = vmatpush1.msra.mxu0 0.0
    %1208 = vmatprep.subr.mxu0 0.0
    %1209 = vmatpush1.msra.mxu0 0.0
    %1210 = vmatprep.subr.mxu0 0.0
    %1211 = vmatpush1.msra.mxu0 0.0
    %1212 = vmatprep.subr.mxu0 0.0
    %1213 = vmatpush1.msra.mxu0 0.0
    %1214 = vmatprep.subr.mxu0 0.0
    %1215 = vmatpush1.msra.mxu0 0.0
    %1216 = vmatprep.subr.mxu0 0.0
    %1217 = vmatpush1.msra.mxu0 0.0
    %1218 = vmatprep.subr.mxu0 0.0
    %1219 = vmatpush1.msra.mxu0 0.0
    %1220 = vmatprep.subr.mxu0 0.0
    %1221 = vmatpush1.msra.mxu0 0.0
    %1222 = vmatprep.subr.mxu0 0.0
    %1223 = vmatpush1.msra.mxu0 0.0
    %1224 = vmatprep.subr.mxu0 0.0
    %1225 = vmatpush1.msra.mxu0 0.0
    %1226 = vmatprep.subr.mxu0 0.0
    %1227 = vmatpush1.msra.mxu0 0.0
    %1228 = vmatprep.subr.mxu0 0.0
    %1229 = vmatpush1.msra.mxu0 0.0
    %1230 = vmatprep.subr.mxu0 0.0
    %1231 = vmatpush1.msra.mxu0 0.0
    %1232 = vmatprep.subr.mxu0 0.0
    %1233 = vmatpush1.msra.mxu0 0.0
    %1234 = vmatprep.subr.mxu0 0.0
    %1235 = vmatpush1.msra.mxu0 0.0
    %1236 = vmatprep.subr.mxu0 0.0
    %1237 = vmatpush1.msra.mxu0 0.0
    %1238 = vmatprep.subr.mxu0 0.0
    %1239 = vmatpush1.msra.mxu0 0.0
    %1240 = vmatprep.subr.mxu0 0.0
    %1241 = vmatpush1.msra.mxu0 0.0
    %1242 = vmatprep.subr.mxu0 0.0
    %1243 = vmatpush1.msra.mxu0 0.0
    %1244 = vmatprep.subr.mxu0 0.0
    %1245 = vmatpush1.msra.mxu0 0.0
    %1246 = vmatprep.subr.mxu0 0.0
    %1247 = vmatpush1.msra.mxu0 0.0
    %1248 = vmatprep.subr.mxu0 0.0
    %1249 = vmatpush1.msra.mxu0 0.0
    %1250 = vmatprep.subr.mxu0 0.0
    %1251 = vmatpush1.msra.mxu0 0.0
    %1252 = vmatprep.subr.mxu0 0.0
    %1253 = vmatpush1.msra.mxu0 0.0
    %1254 = vmatprep.subr.mxu0 0.0
    %1255 = vmatpush1.msra.mxu0 0.0
    %1256 = vmatprep.subr.mxu0 0.0
    %1257 = vmatpush1.msra.mxu0 0.0
    %1258 = vmatprep.subr.mxu0 0.0
    %1259 = vmatpush1.msra.mxu0 0.0
    %1260 = vmatprep.subr.mxu0 0.0
    %1261 = vmatpush1.msra.mxu0 0.0
    %1262 = vmatprep.mubr.f32.mxu0 0.0
    %1263 = vmatmul.mubr.f32.gmra.mrb[0].mxu0 %v1172
    %v1264 = vpop.f32.mrb[0].mxu0
    %v1265 = vadd.f32 %v1169, %v1264
    %v1266 = vpop.f32.mrb[0].mxu0
    %1267 = vmatprep.mubr.f32.mxu0 0.0
    %1268 = vmatmul.mubr.f32.gmra.mrb[0].mxu0 %v1175
    %v1269 = vpop.f32.mrb[0].mxu0
    %v1270 = vadd.f32 %v1169, %v1269
    %v1271 = vpop.f32.mrb[0].mxu0
    %1272 = vmatprep.mubr.f32.mxu0 0.0
    %1273 = vmatmul.mubr.f32.gmra.mrb[0].mxu0 %v1178
    %v1274 = vpop.f32.mrb[0].mxu0
    %v1275 = vadd.f32 %v1169, %v1274
    %v1276 = vpop.f32.mrb[0].mxu0
    %1277 = vmatprep.mubr.f32.mxu0 0.0
    %1278 = vmatmul.mubr.f32.gmra.mrb[0].mxu0 %v1181
    %v1279 = vpop.f32.mrb[0].mxu0
    %v1280 = vadd.f32 %v1169, %v1279
    %v1281 = vpop.f32.mrb[0].mxu0
    %1282 = vmatprep.mubr.f32.mxu0 0.0
    %1283 = vmatmul.mubr.f32.gmra.mrb[0].mxu0 %v1184
    %v1284 = vpop.f32.mrb[0].mxu0
    %v1285 = vadd.f32 %v1169, %v1284
    %v1286 = vpop.f32.mrb[0].mxu0
    %1287 = vmatprep.mubr.f32.mxu0 0.0
    %1288 = vmatmul.mubr.f32.gmra.mrb[0].mxu0 %v1187
    %v1289 = vpop.f32.mrb[0].mxu0
    %v1290 = vadd.f32 %v1169, %v1289
    %v1291 = vpop.f32.mrb[0].mxu0
    %1292 = vmatprep.mubr.f32.mxu0 0.0
    %1293 = vmatmul.mubr.f32.gmra.mrb[0].mxu0 %v1190
    %v1294 = vpop.f32.mrb[0].mxu0
    %v1295 = vadd.f32 %v1169, %v1294
    %v1296 = vpop.f32.mrb[0].mxu0
    %1297 = vmatprep.mubr.f32.mxu0 0.0
    %1298 = vmatmul.mubr.f32.gmra.mrb[0].mxu0 %v1193
    %v1299 = vpop.f32.mrb[0].mxu0
    %v1300 = vadd.f32 %v1169, %v1299
    %v1301 = vpop.f32.mrb[0].mxu0
    %1302 = vmatprep.mubr.f32.mxu0 0.0
    %1303 = vmatmul.mubr.f32.gmra.mrb[0].mxu0 %v1196
    %v1304 = vpop.f32.mrb[0].mxu0
    %v1305 = vadd.f32 %v1169, %v1304
    %v1306 = vpop.f32.mrb[0].mxu0
    %1307 = vdwg.mxu0
    %1308 = vst [vmem:[#allocation2] sm:$0xff] %v1265
    %1309 = vst [vmem:[#allocation2 + $0x8] sm:$0xff] %v1270
    %1310 = vst [vmem:[#allocation2 + $0x10] sm:$0xff] %v1275
    %1311 = vst [vmem:[#allocation2 + $0x18] sm:$0xff] %v1280
    %1312 = vst [vmem:[#allocation2 + $0x20] sm:$0xff] %v1285
    %1313 = vst [vmem:[#allocation2 + $0x28] sm:$0xff] %v1290
    %1314 = vst [vmem:[#allocation2 + $0x30] sm:$0xff] %v1295
    %1315 = vst [vmem:[#allocation2 + $0x38] sm:$0xff] %v1300
    %1316 = vst [vmem:[#allocation2 + $0x40] sm:$0xff] %v1305
    %v1317 = vld [vmem:[%s5] sm:$0xff]
    %v1318 = vld [vmem:[%s5 + $0x8] sm:$0xff]
    %v1319 = vld [vmem:[%s5 + $0x10] sm:$0xff]
    %v1320 = vld [vmem:[%s5 + $0x18] sm:$0xff]
    %v1321 = vld [vmem:[#allocation2] sm:$0xff]
    %1322 = vmatprep.subr.mxu0 0.0
    %1323 = vmatpush1.msra.mxu0 %v1317
    %1324 = vmatprep.subr.mxu0 0.0
    %1325 = vmatpush1.msra.mxu0 %v1318
    %1326 = vmatprep.subr.mxu0 0.0
    %1327 = vmatpush1.msra.mxu0 %v1319
    %1328 = vmatprep.subr.mxu0 0.0
    %1329 = vmatpush1.msra.mxu0 %v1320
    %1330 = vmatprep.subr.mxu0 0.0
    %1331 = vmatpush1.msra.mxu0 0.0
    %1332 = vmatprep.subr.mxu0 0.0
    %1333 = vmatpush1.msra.mxu0 0.0
    %1334 = vmatprep.subr.mxu0 0.0
    %1335 = vmatpush1.msra.mxu0 0.0
    %1336 = vmatprep.subr.mxu0 0.0
    %1337 = vmatpush1.msra.mxu0 0.0
    %1338 = vmatprep.subr.mxu0 0.0
    %1339 = vmatpush1.msra.mxu0 0.0
    %1340 = vmatprep.subr.mxu0 0.0
    %1341 = vmatpush1.msra.mxu0 0.0
    %1342 = vmatprep.subr.mxu0 0.0
    %1343 = vmatpush1.msra.mxu0 0.0
    %1344 = vmatprep.subr.mxu0 0.0
    %1345 = vmatpush1.msra.mxu0 0.0
    %1346 = vmatprep.subr.mxu0 0.0
    %1347 = vmatpush1.msra.mxu0 0.0
    %1348 = vmatprep.subr.mxu0 0.0
    %1349 = vmatpush1.msra.mxu0 0.0
    %1350 = vmatprep.subr.mxu0 0.0
    %1351 = vmatpush1.msra.mxu0 0.0
    %1352 = vmatprep.subr.mxu0 0.0
    %1353 = vmatpush1.msra.mxu0 0.0
    %1354 = vmatprep.subr.mxu0 0.0
    %1355 = vmatpush1.msra.mxu0 0.0
    %1356 = vmatprep.subr.mxu0 0.0
    %1357 = vmatpush1.msra.mxu0 0.0
    %1358 = vmatprep.subr.mxu0 0.0
    %1359 = vmatpush1.msra.mxu0 0.0
    %1360 = vmatprep.subr.mxu0 0.0
    %1361 = vmatpush1.msra.mxu0 0.0
    %1362 = vmatprep.subr.mxu0 0.0
    %1363 = vmatpush1.msra.mxu0 0.0
    %1364 = vmatprep.subr.mxu0 0.0
    %1365 = vmatpush1.msra.mxu0 0.0
    %1366 = vmatprep.subr.mxu0 0.0
    %1367 = vmatpush1.msra.mxu0 0.0
    %1368 = vmatprep.subr.mxu0 0.0
    %1369 = vmatpush1.msra.mxu0 0.0
    %1370 = vmatprep.subr.mxu0 0.0
    %1371 = vmatpush1.msra.mxu0 0.0
    %1372 = vmatprep.subr.mxu0 0.0
    %1373 = vmatpush1.msra.mxu0 0.0
    %1374 = vmatprep.subr.mxu0 0.0
    %1375 = vmatpush1.msra.mxu0 0.0
    %1376 = vmatprep.subr.mxu0 0.0
    %1377 = vmatpush1.msra.mxu0 0.0
    %1378 = vmatprep.subr.mxu0 0.0
    %1379 = vmatpush1.msra.mxu0 0.0
    %1380 = vmatprep.subr.mxu0 0.0
    %1381 = vmatpush1.msra.mxu0 0.0
    %1382 = vmatprep.subr.mxu0 0.0
    %1383 = vmatpush1.msra.mxu0 0.0
    %1384 = vmatprep.subr.mxu0 0.0
    %1385 = vmatpush1.msra.mxu0 0.0
    %1386 = vmatprep.mubr.f32.mxu0 0.0
    %1387 = vmatmul.mubr.f32.gmra.mrb[0].mxu0 %v209
    %v1388 = vpop.f32.mrb[0].mxu0
    %v1389 = vadd.f32 0.0, %v1388
    %v1390 = vpop.f32.mrb[0].mxu0
    %1391 = vdwg.mxu0
    %v1392 = vadd.f32 %v1321, %v1389
    %v1393 = vxor.u32 %v1392, 2147483648
    %v1394 = vmul.f32 %v1393, 1.442695
    %v1395 = vpow.pop %v1394
    %v1396 = vadd.f32 %v1395, 1.0
    %v1397 = vrcp.pop %v1396
    %v1398 = vmul.f32 1.0, %v1397
    %v1399 = vtanh.pop %v1392
    %v1400 = vmul.f32 %v1398, 0.0
    %1402 = vrot.lane.b32.xlu0 %v1399, 32
    %v1403 = vpop.permute.xlu0 %1402
    %v1405 = vmul.f32 %v1398, %v1403
    %1407 = vrot.lane.b32.xlu0 %v1405, 32
    %v1408 = vpop.permute.xlu0 %1407
    %v1410 = vadd.f32 %v1400, %v1408
    %v1411 = vtanh.pop %v1410
    %1413 = vrot.lane.b32.xlu0 %v1411, 32
    %v1414 = vpop.permute.xlu0 %1413
    %v1416 = vmul.f32 %v1398, %v1414
    %1418 = vrot.lane.b32.xlu0 %v1416, 64
    %v1419 = vpop.permute.xlu0 %1418
    %1421 = vst.msk [vmem:[#allocation3] sm:$0xff] %vm56, %v1419
    %v1422 = vld [vmem:[%s311] sm:$0xff]
    %v1423 = vsel %vm56, %v1419, 0
    %1425 = vmatprep.subr.mxu0 0.0
    %1426 = vmatpush1.msra.mxu0 %v1317
    %1427 = vmatprep.subr.mxu0 0.0
    %1428 = vmatpush1.msra.mxu0 %v1318
    %1429 = vmatprep.subr.mxu0 0.0
    %1430 = vmatpush1.msra.mxu0 %v1319
    %1431 = vmatprep.subr.mxu0 0.0
    %1432 = vmatpush1.msra.mxu0 %v1320
    %1433 = vmatprep.subr.mxu0 0.0
    %1434 = vmatpush1.msra.mxu0 0.0
    %1435 = vmatprep.subr.mxu0 0.0
    %1436 = vmatpush1.msra.mxu0 0.0
    %1437 = vmatprep.subr.mxu0 0.0
    %1438 = vmatpush1.msra.mxu0 0.0
    %1439 = vmatprep.subr.mxu0 0.0
    %1440 = vmatpush1.msra.mxu0 0.0
    %1441 = vmatprep.subr.mxu0 0.0
    %1442 = vmatpush1.msra.mxu0 0.0
    %1443 = vmatprep.subr.mxu0 0.0
    %1444 = vmatpush1.msra.mxu0 0.0
    %1445 = vmatprep.subr.mxu0 0.0
    %1446 = vmatpush1.msra.mxu0 0.0
    %1447 = vmatprep.subr.mxu0 0.0
    %1448 = vmatpush1.msra.mxu0 0.0
    %1449 = vmatprep.subr.mxu0 0.0
    %1450 = vmatpush1.msra.mxu0 0.0
    %1451 = vmatprep.subr.mxu0 0.0
    %1452 = vmatpush1.msra.mxu0 0.0
    %1453 = vmatprep.subr.mxu0 0.0
    %1454 = vmatpush1.msra.mxu0 0.0
    %1455 = vmatprep.subr.mxu0 0.0
    %1456 = vmatpush1.msra.mxu0 0.0
    %1457 = vmatprep.subr.mxu0 0.0
    %1458 = vmatpush1.msra.mxu0 0.0
    %1459 = vmatprep.subr.mxu0 0.0
    %1460 = vmatpush1.msra.mxu0 0.0
    %1461 = vmatprep.subr.mxu0 0.0
    %1462 = vmatpush1.msra.mxu0 0.0
    %1463 = vmatprep.subr.mxu0 0.0
    %1464 = vmatpush1.msra.mxu0 0.0
    %1465 = vmatprep.subr.mxu0 0.0
    %1466 = vmatpush1.msra.mxu0 0.0
    %1467 = vmatprep.subr.mxu0 0.0
    %1468 = vmatpush1.msra.mxu0 0.0
    %1469 = vmatprep.subr.mxu0 0.0
    %1470 = vmatpush1.msra.mxu0 0.0
    %1471 = vmatprep.subr.mxu0 0.0
    %1472 = vmatpush1.msra.mxu0 0.0
    %1473 = vmatprep.subr.mxu0 0.0
    %1474 = vmatpush1.msra.mxu0 0.0
    %1475 = vmatprep.subr.mxu0 0.0
    %1476 = vmatpush1.msra.mxu0 0.0
    %1477 = vmatprep.subr.mxu0 0.0
    %1478 = vmatpush1.msra.mxu0 0.0
    %1479 = vmatprep.subr.mxu0 0.0
    %1480 = vmatpush1.msra.mxu0 0.0
    %1481 = vmatprep.subr.mxu0 0.0
    %1482 = vmatpush1.msra.mxu0 0.0
    %1483 = vmatprep.subr.mxu0 0.0
    %1484 = vmatpush1.msra.mxu0 0.0
    %1485 = vmatprep.subr.mxu0 0.0
    %1486 = vmatpush1.msra.mxu0 0.0
    %1487 = vmatprep.subr.mxu0 0.0
    %1488 = vmatpush1.msra.mxu0 0.0
    %1489 = vmatprep.mubr.f32.mxu0 0.0
    %1490 = vmatmul.mubr.f32.gmra.mrb[0].mxu0 %v1423
    %v1491 = vpop.f32.mrb[0].mxu0
    %v1492 = vadd.f32 0.0, %v1491
    %v1493 = vpop.f32.mrb[0].mxu0
    %1494 = vdwg.mxu0
    %v1495 = vadd.f32 %v1422, %v1492
    %v1496 = vxor.u32 %v1495, 2147483648
    %v1497 = vmul.f32 %v1496, 1.442695
    %v1498 = vpow.pop %v1497
    %v1499 = vadd.f32 %v1498, 1.0
    %v1500 = vrcp.pop %v1499
    %v1501 = vmul.f32 1.0, %v1500
    %v1502 = vtanh.pop %v1495
    %v1503 = vmul.f32 %v1501, %v1410
    %1505 = vrot.lane.b32.xlu0 %v1502, 32
    %v1506 = vpop.permute.xlu0 %1505
    %v1508 = vmul.f32 %v1501, %v1506
    %1510 = vrot.lane.b32.xlu0 %v1508, 32
    %v1511 = vpop.permute.xlu0 %1510
    %v1513 = vadd.f32 %v1503, %v1511
    %v1514 = vtanh.pop %v1513
    %1516 = vrot.lane.b32.xlu0 %v1514, 32
    %v1517 = vpop.permute.xlu0 %1516
    %v1519 = vmul.f32 %v1501, %v1517
    %1521 = vrot.lane.b32.xlu0 %v1519, 64
    %v1522 = vpop.permute.xlu0 %1521
    %1524 = vst.msk [vmem:[%s414] sm:$0xff] %vm56, %v1522
    %v1525 = vld [vmem:[%s416] sm:$0xff]
    %v1526 = vsel %vm56, %v1522, 0
    %1528 = vmatprep.subr.mxu0 0.0
    %1529 = vmatpush1.msra.mxu0 %v1317
    %1530 = vmatprep.subr.mxu0 0.0
    %1531 = vmatpush1.msra.mxu0 %v1318
    %1532 = vmatprep.subr.mxu0 0.0
    %1533 = vmatpush1.msra.mxu0 %v1319
    %1534 = vmatprep.subr.mxu0 0.0
    %1535 = vmatpush1.msra.mxu0 %v1320
    %1536 = vmatprep.subr.mxu0 0.0
    %1537 = vmatpush1.msra.mxu0 0.0
    %1538 = vmatprep.subr.mxu0 0.0
    %1539 = vmatpush1.msra.mxu0 0.0
    %1540 = vmatprep.subr.mxu0 0.0
    %1541 = vmatpush1.msra.mxu0 0.0
    %1542 = vmatprep.subr.mxu0 0.0
    %1543 = vmatpush1.msra.mxu0 0.0
    %1544 = vmatprep.subr.mxu0 0.0
    %1545 = vmatpush1.msra.mxu0 0.0
    %1546 = vmatprep.subr.mxu0 0.0
    %1547 = vmatpush1.msra.mxu0 0.0
    %1548 = vmatprep.subr.mxu0 0.0
    %1549 = vmatpush1.msra.mxu0 0.0
    %1550 = vmatprep.subr.mxu0 0.0
    %1551 = vmatpush1.msra.mxu0 0.0
    %1552 = vmatprep.subr.mxu0 0.0
    %1553 = vmatpush1.msra.mxu0 0.0
    %1554 = vmatprep.subr.mxu0 0.0
    %1555 = vmatpush1.msra.mxu0 0.0
    %1556 = vmatprep.subr.mxu0 0.0
    %1557 = vmatpush1.msra.mxu0 0.0
    %1558 = vmatprep.subr.mxu0 0.0
    %1559 = vmatpush1.msra.mxu0 0.0
    %1560 = vmatprep.subr.mxu0 0.0
    %1561 = vmatpush1.msra.mxu0 0.0
    %1562 = vmatprep.subr.mxu0 0.0
    %1563 = vmatpush1.msra.mxu0 0.0
    %1564 = vmatprep.subr.mxu0 0.0
    %1565 = vmatpush1.msra.mxu0 0.0
    %1566 = vmatprep.subr.mxu0 0.0
    %1567 = vmatpush1.msra.mxu0 0.0
    %1568 = vmatprep.subr.mxu0 0.0
    %1569 = vmatpush1.msra.mxu0 0.0
    %1570 = vmatprep.subr.mxu0 0.0
    %1571 = vmatpush1.msra.mxu0 0.0
    %1572 = vmatprep.subr.mxu0 0.0
    %1573 = vmatpush1.msra.mxu0 0.0
    %1574 = vmatprep.subr.mxu0 0.0
    %1575 = vmatpush1.msra.mxu0 0.0
    %1576 = vmatprep.subr.mxu0 0.0
    %1577 = vmatpush1.msra.mxu0 0.0
    %1578 = vmatprep.subr.mxu0 0.0
    %1579 = vmatpush1.msra.mxu0 0.0
    %1580 = vmatprep.subr.mxu0 0.0
    %1581 = vmatpush1.msra.mxu0 0.0
    %1582 = vmatprep.subr.mxu0 0.0
    %1583 = vmatpush1.msra.mxu0 0.0
    %1584 = vmatprep.subr.mxu0 0.0
    %1585 = vmatpush1.msra.mxu0 0.0
    %1586 = vmatprep.subr.mxu0 0.0
    %1587 = vmatpush1.msra.mxu0 0.0
    %1588 = vmatprep.subr.mxu0 0.0
    %1589 = vmatpush1.msra.mxu0 0.0
    %1590 = vmatprep.subr.mxu0 0.0
    %1591 = vmatpush1.msra.mxu0 0.0
    %1592 = vmatprep.mubr.f32.mxu0 0.0
    %1593 = vmatmul.mubr.f32.gmra.mrb[0].mxu0 %v1526
    %v1594 = vpop.f32.mrb[0].mxu0
    %v1595 = vadd.f32 0.0, %v1594
    %v1596 = vpop.f32.mrb[0].mxu0
    %1597 = vdwg.mxu0
    %v1598 = vadd.f32 %v1525, %v1595
    %v1599 = vxor.u32 %v1598, 2147483648
    %v1600 = vmul.f32 %v1599, 1.442695
    %v1601 = vpow.pop %v1600
    %v1602 = vadd.f32 %v1601, 1.0
    %v1603 = vrcp.pop %v1602
    %v1604 = vmul.f32 1.0, %v1603
    %v1605 = vtanh.pop %v1598
    %v1606 = vmul.f32 %v1604, %v1513
    %1608 = vrot.lane.b32.xlu0 %v1605, 32
    %v1609 = vpop.permute.xlu0 %1608
    %v1611 = vmul.f32 %v1604, %v1609
    %1613 = vrot.lane.b32.xlu0 %v1611, 32
    %v1614 = vpop.permute.xlu0 %1613
    %v1616 = vadd.f32 %v1606, %v1614
    %v1617 = vtanh.pop %v1616
    %1619 = vrot.lane.b32.xlu0 %v1617, 32
    %v1620 = vpop.permute.xlu0 %1619
    %v1622 = vmul.f32 %v1604, %v1620
    %1624 = vrot.lane.b32.xlu0 %v1622, 64
    %v1625 = vpop.permute.xlu0 %1624
    %1627 = vst.msk [vmem:[%s519] sm:$0xff] %vm56, %v1625
    %v1628 = vld [vmem:[%s521] sm:$0xff]
    %v1629 = vsel %vm56, %v1625, 0
    %1631 = vmatprep.subr.mxu0 0.0
    %1632 = vmatpush1.msra.mxu0 %v1317
    %1633 = vmatprep.subr.mxu0 0.0
    %1634 = vmatpush1.msra.mxu0 %v1318
    %1635 = vmatprep.subr.mxu0 0.0
    %1636 = vmatpush1.msra.mxu0 %v1319
    %1637 = vmatprep.subr.mxu0 0.0
    %1638 = vmatpush1.msra.mxu0 %v1320
    %1639 = vmatprep.subr.mxu0 0.0
    %1640 = vmatpush1.msra.mxu0 0.0
    %1641 = vmatprep.subr.mxu0 0.0
    %1642 = vmatpush1.msra.mxu0 0.0
    %1643 = vmatprep.subr.mxu0 0.0
    %1644 = vmatpush1.msra.mxu0 0.0
    %1645 = vmatprep.subr.mxu0 0.0
    %1646 = vmatpush1.msra.mxu0 0.0
    %1647 = vmatprep.subr.mxu0 0.0
    %1648 = vmatpush1.msra.mxu0 0.0
    %1649 = vmatprep.subr.mxu0 0.0
    %1650 = vmatpush1.msra.mxu0 0.0
    %1651 = vmatprep.subr.mxu0 0.0
    %1652 = vmatpush1.msra.mxu0 0.0
    %1653 = vmatprep.subr.mxu0 0.0
    %1654 = vmatpush1.msra.mxu0 0.0
    %1655 = vmatprep.subr.mxu0 0.0
    %1656 = vmatpush1.msra.mxu0 0.0
    %1657 = vmatprep.subr.mxu0 0.0
    %1658 = vmatpush1.msra.mxu0 0.0
    %1659 = vmatprep.subr.mxu0 0.0
    %1660 = vmatpush1.msra.mxu0 0.0
    %1661 = vmatprep.subr.mxu0 0.0
    %1662 = vmatpush1.msra.mxu0 0.0
    %1663 = vmatprep.subr.mxu0 0.0
    %1664 = vmatpush1.msra.mxu0 0.0
    %1665 = vmatprep.subr.mxu0 0.0
    %1666 = vmatpush1.msra.mxu0 0.0
    %1667 = vmatprep.subr.mxu0 0.0
    %1668 = vmatpush1.msra.mxu0 0.0
    %1669 = vmatprep.subr.mxu0 0.0
    %1670 = vmatpush1.msra.mxu0 0.0
    %1671 = vmatprep.subr.mxu0 0.0
    %1672 = vmatpush1.msra.mxu0 0.0
    %1673 = vmatprep.subr.mxu0 0.0
    %1674 = vmatpush1.msra.mxu0 0.0
    %1675 = vmatprep.subr.mxu0 0.0
    %1676 = vmatpush1.msra.mxu0 0.0
    %1677 = vmatprep.subr.mxu0 0.0
    %1678 = vmatpush1.msra.mxu0 0.0
    %1679 = vmatprep.subr.mxu0 0.0
    %1680 = vmatpush1.msra.mxu0 0.0
    %1681 = vmatprep.subr.mxu0 0.0
    %1682 = vmatpush1.msra.mxu0 0.0
    %1683 = vmatprep.subr.mxu0 0.0
    %1684 = vmatpush1.msra.mxu0 0.0
    %1685 = vmatprep.subr.mxu0 0.0
    %1686 = vmatpush1.msra.mxu0 0.0
    %1687 = vmatprep.subr.mxu0 0.0
    %1688 = vmatpush1.msra.mxu0 0.0
    %1689 = vmatprep.subr.mxu0 0.0
    %1690 = vmatpush1.msra.mxu0 0.0
    %1691 = vmatprep.subr.mxu0 0.0
    %1692 = vmatpush1.msra.mxu0 0.0
    %1693 = vmatprep.subr.mxu0 0.0
    %1694 = vmatpush1.msra.mxu0 0.0
    %1695 = vmatprep.mubr.f32.mxu0 0.0
    %1696 = vmatmul.mubr.f32.gmra.mrb[0].mxu0 %v1629
    %v1697 = vpop.f32.mrb[0].mxu0
    %v1698 = vadd.f32 0.0, %v1697
    %v1699 = vpop.f32.mrb[0].mxu0
    %1700 = vdwg.mxu0
    %v1701 = vadd.f32 %v1628, %v1698
    %v1702 = vxor.u32 %v1701, 2147483648
    %v1703 = vmul.f32 %v1702, 1.442695
    %v1704 = vpow.pop %v1703
    %v1705 = vadd.f32 %v1704, 1.0
    %v1706 = vrcp.pop %v1705
    %v1707 = vmul.f32 1.0, %v1706
    %v1708 = vtanh.pop %v1701
    %v1709 = vmul.f32 %v1707, %v1616
    %1711 = vrot.lane.b32.xlu0 %v1708, 32
    %v1712 = vpop.permute.xlu0 %1711
    %v1714 = vmul.f32 %v1707, %v1712
    %1716 = vrot.lane.b32.xlu0 %v1714, 32
    %v1717 = vpop.permute.xlu0 %1716
    %v1719 = vadd.f32 %v1709, %v1717
    %v1720 = vtanh.pop %v1719
    %1722 = vrot.lane.b32.xlu0 %v1720, 32
    %v1723 = vpop.permute.xlu0 %1722
    %v1725 = vmul.f32 %v1707, %v1723
    %1727 = vrot.lane.b32.xlu0 %v1725, 64
    %v1728 = vpop.permute.xlu0 %1727
    %1730 = vst.msk [vmem:[%s624] sm:$0xff] %vm56, %v1728
    %v1731 = vld [vmem:[%s626] sm:$0xff]
    %v1732 = vsel %vm56, %v1728, 0
    %1734 = vmatprep.subr.mxu0 0.0
    %1735 = vmatpush1.msra.mxu0 %v1317
    %1736 = vmatprep.subr.mxu0 0.0
    %1737 = vmatpush1.msra.mxu0 %v1318
    %1738 = vmatprep.subr.mxu0 0.0
    %1739 = vmatpush1.msra.mxu0 %v1319
    %1740 = vmatprep.subr.mxu0 0.0
    %1741 = vmatpush1.msra.mxu0 %v1320
    %1742 = vmatprep.subr.mxu0 0.0
    %1743 = vmatpush1.msra.mxu0 0.0
    %1744 = vmatprep.subr.mxu0 0.0
    %1745 = vmatpush1.msra.mxu0 0.0
    %1746 = vmatprep.subr.mxu0 0.0
    %1747 = vmatpush1.msra.mxu0 0.0
    %1748 = vmatprep.subr.mxu0 0.0
    %1749 = vmatpush1.msra.mxu0 0.0
    %1750 = vmatprep.subr.mxu0 0.0
    %1751 = vmatpush1.msra.mxu0 0.0
    %1752 = vmatprep.subr.mxu0 0.0
    %1753 = vmatpush1.msra.mxu0 0.0
    %1754 = vmatprep.subr.mxu0 0.0
    %1755 = vmatpush1.msra.mxu0 0.0
    %1756 = vmatprep.subr.mxu0 0.0
    %1757 = vmatpush1.msra.mxu0 0.0
    %1758 = vmatprep.subr.mxu0 0.0
    %1759 = vmatpush1.msra.mxu0 0.0
    %1760 = vmatprep.subr.mxu0 0.0
    %1761 = vmatpush1.msra.mxu0 0.0
    %1762 = vmatprep.subr.mxu0 0.0
    %1763 = vmatpush1.msra.mxu0 0.0
    %1764 = vmatprep.subr.mxu0 0.0
    %1765 = vmatpush1.msra.mxu0 0.0
    %1766 = vmatprep.subr.mxu0 0.0
    %1767 = vmatpush1.msra.mxu0 0.0
    %1768 = vmatprep.subr.mxu0 0.0
    %1769 = vmatpush1.msra.mxu0 0.0
    %1770 = vmatprep.subr.mxu0 0.0
    %1771 = vmatpush1.msra.mxu0 0.0
    %1772 = vmatprep.subr.mxu0 0.0
    %1773 = vmatpush1.msra.mxu0 0.0
    %1774 = vmatprep.subr.mxu0 0.0
    %1775 = vmatpush1.msra.mxu0 0.0
    %1776 = vmatprep.subr.mxu0 0.0
    %1777 = vmatpush1.msra.mxu0 0.0
    %1778 = vmatprep.subr.mxu0 0.0
    %1779 = vmatpush1.msra.mxu0 0.0
    %1780 = vmatprep.subr.mxu0 0.0
    %1781 = vmatpush1.msra.mxu0 0.0
    %1782 = vmatprep.subr.mxu0 0.0
    %1783 = vmatpush1.msra.mxu0 0.0
    %1784 = vmatprep.subr.mxu0 0.0
    %1785 = vmatpush1.msra.mxu0 0.0
    %1786 = vmatprep.subr.mxu0 0.0
    %1787 = vmatpush1.msra.mxu0 0.0
    %1788 = vmatprep.subr.mxu0 0.0
    %1789 = vmatpush1.msra.mxu0 0.0
    %1790 = vmatprep.subr.mxu0 0.0
    %1791 = vmatpush1.msra.mxu0 0.0
    %1792 = vmatprep.subr.mxu0 0.0
    %1793 = vmatpush1.msra.mxu0 0.0
    %1794 = vmatprep.subr.mxu0 0.0
    %1795 = vmatpush1.msra.mxu0 0.0
    %1796 = vmatprep.subr.mxu0 0.0
    %1797 = vmatpush1.msra.mxu0 0.0
    %1798 = vmatprep.mubr.f32.mxu0 0.0
    %1799 = vmatmul.mubr.f32.gmra.mrb[0].mxu0 %v1732
    %v1800 = vpop.f32.mrb[0].mxu0
    %v1801 = vadd.f32 0.0, %v1800
    %v1802 = vpop.f32.mrb[0].mxu0
    %1803 = vdwg.mxu0
    %v1804 = vadd.f32 %v1731, %v1801
    %v1805 = vxor.u32 %v1804, 2147483648
    %v1806 = vmul.f32 %v1805, 1.442695
    %v1807 = vpow.pop %v1806
    %v1808 = vadd.f32 %v1807, 1.0
    %v1809 = vrcp.pop %v1808
    %v1810 = vmul.f32 1.0, %v1809
    %v1811 = vtanh.pop %v1804
    %v1812 = vmul.f32 %v1810, %v1719
    %1814 = vrot.lane.b32.xlu0 %v1811, 32
    %v1815 = vpop.permute.xlu0 %1814
    %v1817 = vmul.f32 %v1810, %v1815
    %1819 = vrot.lane.b32.xlu0 %v1817, 32
    %v1820 = vpop.permute.xlu0 %1819
    %v1822 = vadd.f32 %v1812, %v1820
    %v1823 = vtanh.pop %v1822
    %1825 = vrot.lane.b32.xlu0 %v1823, 32
    %v1826 = vpop.permute.xlu0 %1825
    %v1828 = vmul.f32 %v1810, %v1826
    %1830 = vrot.lane.b32.xlu0 %v1828, 64
    %v1831 = vpop.permute.xlu0 %1830
    %1833 = vst.msk [vmem:[%s729] sm:$0xff] %vm56, %v1831
    %v1834 = vld [vmem:[%s731] sm:$0xff]
    %v1835 = vsel %vm56, %v1831, 0
    %1837 = vmatprep.subr.mxu0 0.0
    %1838 = vmatpush1.msra.mxu0 %v1317
    %1839 = vmatprep.subr.mxu0 0.0
    %1840 = vmatpush1.msra.mxu0 %v1318
    %1841 = vmatprep.subr.mxu0 0.0
    %1842 = vmatpush1.msra.mxu0 %v1319
    %1843 = vmatprep.subr.mxu0 0.0
    %1844 = vmatpush1.msra.mxu0 %v1320
    %1845 = vmatprep.subr.mxu0 0.0
    %1846 = vmatpush1.msra.mxu0 0.0
    %1847 = vmatprep.subr.mxu0 0.0
    %1848 = vmatpush1.msra.mxu0 0.0
    %1849 = vmatprep.subr.mxu0 0.0
    %1850 = vmatpush1.msra.mxu0 0.0
    %1851 = vmatprep.subr.mxu0 0.0
    %1852 = vmatpush1.msra.mxu0 0.0
    %1853 = vmatprep.subr.mxu0 0.0
    %1854 = vmatpush1.msra.mxu0 0.0
    %1855 = vmatprep.subr.mxu0 0.0
    %1856 = vmatpush1.msra.mxu0 0.0
    %1857 = vmatprep.subr.mxu0 0.0
    %1858 = vmatpush1.msra.mxu0 0.0
    %1859 = vmatprep.subr.mxu0 0.0
    %1860 = vmatpush1.msra.mxu0 0.0
    %1861 = vmatprep.subr.mxu0 0.0
    %1862 = vmatpush1.msra.mxu0 0.0
    %1863 = vmatprep.subr.mxu0 0.0
    %1864 = vmatpush1.msra.mxu0 0.0
    %1865 = vmatprep.subr.mxu0 0.0
    %1866 = vmatpush1.msra.mxu0 0.0
    %1867 = vmatprep.subr.mxu0 0.0
    %1868 = vmatpush1.msra.mxu0 0.0
    %1869 = vmatprep.subr.mxu0 0.0
    %1870 = vmatpush1.msra.mxu0 0.0
    %1871 = vmatprep.subr.mxu0 0.0
    %1872 = vmatpush1.msra.mxu0 0.0
    %1873 = vmatprep.subr.mxu0 0.0
    %1874 = vmatpush1.msra.mxu0 0.0
    %1875 = vmatprep.subr.mxu0 0.0
    %1876 = vmatpush1.msra.mxu0 0.0
    %1877 = vmatprep.subr.mxu0 0.0
    %1878 = vmatpush1.msra.mxu0 0.0
    %1879 = vmatprep.subr.mxu0 0.0
    %1880 = vmatpush1.msra.mxu0 0.0
    %1881 = vmatprep.subr.mxu0 0.0
    %1882 = vmatpush1.msra.mxu0 0.0
    %1883 = vmatprep.subr.mxu0 0.0
    %1884 = vmatpush1.msra.mxu0 0.0
    %1885 = vmatprep.subr.mxu0 0.0
    %1886 = vmatpush1.msra.mxu0 0.0
    %1887 = vmatprep.subr.mxu0 0.0
    %1888 = vmatpush1.msra.mxu0 0.0
    %1889 = vmatprep.subr.mxu0 0.0
    %1890 = vmatpush1.msra.mxu0 0.0
    %1891 = vmatprep.subr.mxu0 0.0
    %1892 = vmatpush1.msra.mxu0 0.0
    %1893 = vmatprep.subr.mxu0 0.0
    %1894 = vmatpush1.msra.mxu0 0.0
    %1895 = vmatprep.subr.mxu0 0.0
    %1896 = vmatpush1.msra.mxu0 0.0
    %1897 = vmatprep.subr.mxu0 0.0
    %1898 = vmatpush1.msra.mxu0 0.0
    %1899 = vmatprep.subr.mxu0 0.0
    %1900 = vmatpush1.msra.mxu0 0.0
    %1901 = vmatprep.mubr.f32.mxu0 0.0
    %1902 = vmatmul.mubr.f32.gmra.mrb[0].mxu0 %v1835
    %v1903 = vpop.f32.mrb[0].mxu0
    %v1904 = vadd.f32 0.0, %v1903
    %v1905 = vpop.f32.mrb[0].mxu0
    %1906 = vdwg.mxu0
    %v1907 = vadd.f32 %v1834, %v1904
    %v1908 = vxor.u32 %v1907, 2147483648
    %v1909 = vmul.f32 %v1908, 1.442695
    %v1910 = vpow.pop %v1909
    %v1911 = vadd.f32 %v1910, 1.0
    %v1912 = vrcp.pop %v1911
    %v1913 = vmul.f32 1.0, %v1912
    %v1914 = vtanh.pop %v1907
    %v1915 = vmul.f32 %v1913, %v1822
    %1917 = vrot.lane.b32.xlu0 %v1914, 32
    %v1918 = vpop.permute.xlu0 %1917
    %v1920 = vmul.f32 %v1913, %v1918
    %1922 = vrot.lane.b32.xlu0 %v1920, 32
    %v1923 = vpop.permute.xlu0 %1922
    %v1925 = vadd.f32 %v1915, %v1923
    %v1926 = vtanh.pop %v1925
    %1928 = vrot.lane.b32.xlu0 %v1926, 32
    %v1929 = vpop.permute.xlu0 %1928
    %v1931 = vmul.f32 %v1913, %v1929
    %1933 = vrot.lane.b32.xlu0 %v1931, 64
    %v1934 = vpop.permute.xlu0 %1933
    %1936 = vst.msk [vmem:[%s834] sm:$0xff] %vm56, %v1934
    %v1937 = vld [vmem:[%s836] sm:$0xff]
    %v1938 = vsel %vm56, %v1934, 0
    %1940 = vmatprep.subr.mxu0 0.0
    %1941 = vmatpush1.msra.mxu0 %v1317
    %1942 = vmatprep.subr.mxu0 0.0
    %1943 = vmatpush1.msra.mxu0 %v1318
    %1944 = vmatprep.subr.mxu0 0.0
    %1945 = vmatpush1.msra.mxu0 %v1319
    %1946 = vmatprep.subr.mxu0 0.0
    %1947 = vmatpush1.msra.mxu0 %v1320
    %1948 = vmatprep.subr.mxu0 0.0
    %1949 = vmatpush1.msra.mxu0 0.0
    %1950 = vmatprep.subr.mxu0 0.0
    %1951 = vmatpush1.msra.mxu0 0.0
    %1952 = vmatprep.subr.mxu0 0.0
    %1953 = vmatpush1.msra.mxu0 0.0
    %1954 = vmatprep.subr.mxu0 0.0
    %1955 = vmatpush1.msra.mxu0 0.0
    %1956 = vmatprep.subr.mxu0 0.0
    %1957 = vmatpush1.msra.mxu0 0.0
    %1958 = vmatprep.subr.mxu0 0.0
    %1959 = vmatpush1.msra.mxu0 0.0
    %1960 = vmatprep.subr.mxu0 0.0
    %1961 = vmatpush1.msra.mxu0 0.0
    %1962 = vmatprep.subr.mxu0 0.0
    %1963 = vmatpush1.msra.mxu0 0.0
    %1964 = vmatprep.subr.mxu0 0.0
    %1965 = vmatpush1.msra.mxu0 0.0
    %1966 = vmatprep.subr.mxu0 0.0
    %1967 = vmatpush1.msra.mxu0 0.0
    %1968 = vmatprep.subr.mxu0 0.0
    %1969 = vmatpush1.msra.mxu0 0.0
    %1970 = vmatprep.subr.mxu0 0.0
    %1971 = vmatpush1.msra.mxu0 0.0
    %1972 = vmatprep.subr.mxu0 0.0
    %1973 = vmatpush1.msra.mxu0 0.0
    %1974 = vmatprep.subr.mxu0 0.0
    %1975 = vmatpush1.msra.mxu0 0.0
    %1976 = vmatprep.subr.mxu0 0.0
    %1977 = vmatpush1.msra.mxu0 0.0
    %1978 = vmatprep.subr.mxu0 0.0
    %1979 = vmatpush1.msra.mxu0 0.0
    %1980 = vmatprep.subr.mxu0 0.0
    %1981 = vmatpush1.msra.mxu0 0.0
    %1982 = vmatprep.subr.mxu0 0.0
    %1983 = vmatpush1.msra.mxu0 0.0
    %1984 = vmatprep.subr.mxu0 0.0
    %1985 = vmatpush1.msra.mxu0 0.0
    %1986 = vmatprep.subr.mxu0 0.0
    %1987 = vmatpush1.msra.mxu0 0.0
    %1988 = vmatprep.subr.mxu0 0.0
    %1989 = vmatpush1.msra.mxu0 0.0
    %1990 = vmatprep.subr.mxu0 0.0
    %1991 = vmatpush1.msra.mxu0 0.0
    %1992 = vmatprep.subr.mxu0 0.0
    %1993 = vmatpush1.msra.mxu0 0.0
    %1994 = vmatprep.subr.mxu0 0.0
    %1995 = vmatpush1.msra.mxu0 0.0
    %1996 = vmatprep.subr.mxu0 0.0
    %1997 = vmatpush1.msra.mxu0 0.0
    %1998 = vmatprep.subr.mxu0 0.0
    %1999 = vmatpush1.msra.mxu0 0.0
    %2000 = vmatprep.subr.mxu0 0.0
    %2001 = vmatpush1.msra.mxu0 0.0
    %2002 = vmatprep.subr.mxu0 0.0
    %2003 = vmatpush1.msra.mxu0 0.0
    %2004 = vmatprep.mubr.f32.mxu0 0.0
    %2005 = vmatmul.mubr.f32.gmra.mrb[0].mxu0 %v1938
    %v2006 = vpop.f32.mrb[0].mxu0
    %v2007 = vadd.f32 0.0, %v2006
    %v2008 = vpop.f32.mrb[0].mxu0
    %2009 = vdwg.mxu0
    %v2010 = vadd.f32 %v1937, %v2007
    %v2011 = vxor.u32 %v2010, 2147483648
    %v2012 = vmul.f32 %v2011, 1.442695
    %v2013 = vpow.pop %v2012
    %v2014 = vadd.f32 %v2013, 1.0
    %v2015 = vrcp.pop %v2014
    %v2016 = vmul.f32 1.0, %v2015
    %v2017 = vtanh.pop %v2010
    %v2018 = vmul.f32 %v2016, %v1925
    %2020 = vrot.lane.b32.xlu0 %v2017, 32
    %v2021 = vpop.permute.xlu0 %2020
    %v2023 = vmul.f32 %v2016, %v2021
    %2025 = vrot.lane.b32.xlu0 %v2023, 32
    %v2026 = vpop.permute.xlu0 %2025
    %v2028 = vadd.f32 %v2018, %v2026
    %v2029 = vtanh.pop %v2028
    %2031 = vrot.lane.b32.xlu0 %v2029, 32
    %v2032 = vpop.permute.xlu0 %2031
    %v2034 = vmul.f32 %v2016, %v2032
    %2036 = vrot.lane.b32.xlu0 %v2034, 64
    %v2037 = vpop.permute.xlu0 %2036
    %2039 = vst.msk [vmem:[%s939] sm:$0xff] %vm56, %v2037
    %v2040 = vld [vmem:[%s941] sm:$0xff]
    %v2041 = vsel %vm56, %v2037, 0
    %2043 = vmatprep.subr.mxu0 0.0
    %2044 = vmatpush1.msra.mxu0 %v1317
    %2045 = vmatprep.subr.mxu0 0.0
    %2046 = vmatpush1.msra.mxu0 %v1318
    %2047 = vmatprep.subr.mxu0 0.0
    %2048 = vmatpush1.msra.mxu0 %v1319
    %2049 = vmatprep.subr.mxu0 0.0
    %2050 = vmatpush1.msra.mxu0 %v1320
    %2051 = vmatprep.subr.mxu0 0.0
    %2052 = vmatpush1.msra.mxu0 0.0
    %2053 = vmatprep.subr.mxu0 0.0
    %2054 = vmatpush1.msra.mxu0 0.0
    %2055 = vmatprep.subr.mxu0 0.0
    %2056 = vmatpush1.msra.mxu0 0.0
    %2057 = vmatprep.subr.mxu0 0.0
    %2058 = vmatpush1.msra.mxu0 0.0
    %2059 = vmatprep.subr.mxu0 0.0
    %2060 = vmatpush1.msra.mxu0 0.0
    %2061 = vmatprep.subr.mxu0 0.0
    %2062 = vmatpush1.msra.mxu0 0.0
    %2063 = vmatprep.subr.mxu0 0.0
    %2064 = vmatpush1.msra.mxu0 0.0
    %2065 = vmatprep.subr.mxu0 0.0
    %2066 = vmatpush1.msra.mxu0 0.0
    %2067 = vmatprep.subr.mxu0 0.0
    %2068 = vmatpush1.msra.mxu0 0.0
    %2069 = vmatprep.subr.mxu0 0.0
    %2070 = vmatpush1.msra.mxu0 0.0
    %2071 = vmatprep.subr.mxu0 0.0
    %2072 = vmatpush1.msra.mxu0 0.0
    %2073 = vmatprep.subr.mxu0 0.0
    %2074 = vmatpush1.msra.mxu0 0.0
    %2075 = vmatprep.subr.mxu0 0.0
    %2076 = vmatpush1.msra.mxu0 0.0
    %2077 = vmatprep.subr.mxu0 0.0
    %2078 = vmatpush1.msra.mxu0 0.0
    %2079 = vmatprep.subr.mxu0 0.0
    %2080 = vmatpush1.msra.mxu0 0.0
    %2081 = vmatprep.subr.mxu0 0.0
    %2082 = vmatpush1.msra.mxu0 0.0
    %2083 = vmatprep.subr.mxu0 0.0
    %2084 = vmatpush1.msra.mxu0 0.0
    %2085 = vmatprep.subr.mxu0 0.0
    %2086 = vmatpush1.msra.mxu0 0.0
    %2087 = vmatprep.subr.mxu0 0.0
    %2088 = vmatpush1.msra.mxu0 0.0
    %2089 = vmatprep.subr.mxu0 0.0
    %2090 = vmatpush1.msra.mxu0 0.0
    %2091 = vmatprep.subr.mxu0 0.0
    %2092 = vmatpush1.msra.mxu0 0.0
    %2093 = vmatprep.subr.mxu0 0.0
    %2094 = vmatpush1.msra.mxu0 0.0
    %2095 = vmatprep.subr.mxu0 0.0
    %2096 = vmatpush1.msra.mxu0 0.0
    %2097 = vmatprep.subr.mxu0 0.0
    %2098 = vmatpush1.msra.mxu0 0.0
    %2099 = vmatprep.subr.mxu0 0.0
    %2100 = vmatpush1.msra.mxu0 0.0
    %2101 = vmatprep.subr.mxu0 0.0
    %2102 = vmatpush1.msra.mxu0 0.0
    %2103 = vmatprep.subr.mxu0 0.0
    %2104 = vmatpush1.msra.mxu0 0.0
    %2105 = vmatprep.subr.mxu0 0.0
    %2106 = vmatpush1.msra.mxu0 0.0
    %2107 = vmatprep.mubr.f32.mxu0 0.0
    %2108 = vmatmul.mubr.f32.gmra.mrb[0].mxu0 %v2041
    %v2109 = vpop.f32.mrb[0].mxu0
    %v2110 = vadd.f32 0.0, %v2109
    %v2111 = vpop.f32.mrb[0].mxu0
    %2112 = vdwg.mxu0
    %v2113 = vadd.f32 %v2040, %v2110
    %v2114 = vxor.u32 %v2113, 2147483648
    %v2115 = vmul.f32 %v2114, 1.442695
    %v2116 = vpow.pop %v2115
    %v2117 = vadd.f32 %v2116, 1.0
    %v2118 = vrcp.pop %v2117
    %v2119 = vmul.f32 1.0, %v2118
    %v2120 = vtanh.pop %v2113
    %v2121 = vmul.f32 %v2119, %v2028
    %2123 = vrot.lane.b32.xlu0 %v2120, 32
    %v2124 = vpop.permute.xlu0 %2123
    %v2126 = vmul.f32 %v2119, %v2124
    %2128 = vrot.lane.b32.xlu0 %v2126, 32
    %v2129 = vpop.permute.xlu0 %2128
    %v2131 = vadd.f32 %v2121, %v2129
    %v2132 = vtanh.pop %v2131
    %2134 = vrot.lane.b32.xlu0 %v2132, 32
    %v2135 = vpop.permute.xlu0 %2134
    %v2137 = vmul.f32 %v2119, %v2135
    %2139 = vrot.lane.b32.xlu0 %v2137, 64
    %v2140 = vpop.permute.xlu0 %2139
    %2142 = vst.msk [vmem:[%s1044] sm:$0xff] %vm56, %v2140
    %v2143 = vld [vmem:[%s1046] sm:$0xff]
    %v2144 = vsel %vm56, %v2140, 0
    %2146 = vmatprep.subr.mxu0 0.0
    %2147 = vmatpush1.msra.mxu0 %v1317
    %2148 = vmatprep.subr.mxu0 0.0
    %2149 = vmatpush1.msra.mxu0 %v1318
    %2150 = vmatprep.subr.mxu0 0.0
    %2151 = vmatpush1.msra.mxu0 %v1319
    %2152 = vmatprep.subr.mxu0 0.0
    %2153 = vmatpush1.msra.mxu0 %v1320
    %2154 = vmatprep.subr.mxu0 0.0
    %2155 = vmatpush1.msra.mxu0 0.0
    %2156 = vmatprep.subr.mxu0 0.0
    %2157 = vmatpush1.msra.mxu0 0.0
    %2158 = vmatprep.subr.mxu0 0.0
    %2159 = vmatpush1.msra.mxu0 0.0
    %2160 = vmatprep.subr.mxu0 0.0
    %2161 = vmatpush1.msra.mxu0 0.0
    %2162 = vmatprep.subr.mxu0 0.0
    %2163 = vmatpush1.msra.mxu0 0.0
    %2164 = vmatprep.subr.mxu0 0.0
    %2165 = vmatpush1.msra.mxu0 0.0
    %2166 = vmatprep.subr.mxu0 0.0
    %2167 = vmatpush1.msra.mxu0 0.0
    %2168 = vmatprep.subr.mxu0 0.0
    %2169 = vmatpush1.msra.mxu0 0.0
    %2170 = vmatprep.subr.mxu0 0.0
    %2171 = vmatpush1.msra.mxu0 0.0
    %2172 = vmatprep.subr.mxu0 0.0
    %2173 = vmatpush1.msra.mxu0 0.0
    %2174 = vmatprep.subr.mxu0 0.0
    %2175 = vmatpush1.msra.mxu0 0.0
    %2176 = vmatprep.subr.mxu0 0.0
    %2177 = vmatpush1.msra.mxu0 0.0
    %2178 = vmatprep.subr.mxu0 0.0
    %2179 = vmatpush1.msra.mxu0 0.0
    %2180 = vmatprep.subr.mxu0 0.0
    %2181 = vmatpush1.msra.mxu0 0.0
    %2182 = vmatprep.subr.mxu0 0.0
    %2183 = vmatpush1.msra.mxu0 0.0
    %2184 = vmatprep.subr.mxu0 0.0
    %2185 = vmatpush1.msra.mxu0 0.0
    %2186 = vmatprep.subr.mxu0 0.0
    %2187 = vmatpush1.msra.mxu0 0.0
    %2188 = vmatprep.subr.mxu0 0.0
    %2189 = vmatpush1.msra.mxu0 0.0
    %2190 = vmatprep.subr.mxu0 0.0
    %2191 = vmatpush1.msra.mxu0 0.0
    %2192 = vmatprep.subr.mxu0 0.0
    %2193 = vmatpush1.msra.mxu0 0.0
    %2194 = vmatprep.subr.mxu0 0.0
    %2195 = vmatpush1.msra.mxu0 0.0
    %2196 = vmatprep.subr.mxu0 0.0
    %2197 = vmatpush1.msra.mxu0 0.0
    %2198 = vmatprep.subr.mxu0 0.0
    %2199 = vmatpush1.msra.mxu0 0.0
    %2200 = vmatprep.subr.mxu0 0.0
    %2201 = vmatpush1.msra.mxu0 0.0
    %2202 = vmatprep.subr.mxu0 0.0
    %2203 = vmatpush1.msra.mxu0 0.0
    %2204 = vmatprep.subr.mxu0 0.0
    %2205 = vmatpush1.msra.mxu0 0.0
    %2206 = vmatprep.subr.mxu0 0.0
    %2207 = vmatpush1.msra.mxu0 0.0
    %2208 = vmatprep.subr.mxu0 0.0
    %2209 = vmatpush1.msra.mxu0 0.0
    %2210 = vmatprep.mubr.f32.mxu0 0.0
    %2211 = vmatmul.mubr.f32.gmra.mrb[0].mxu0 %v2144
    %v2212 = vpop.f32.mrb[0].mxu0
    %v2213 = vadd.f32 0.0, %v2212
    %v2214 = vpop.f32.mrb[0].mxu0
    %2215 = vdwg.mxu0
    %v2216 = vadd.f32 %v2143, %v2213
    %v2217 = vxor.u32 %v2216, 2147483648
    %v2218 = vmul.f32 %v2217, 1.442695
    %v2219 = vpow.pop %v2218
    %v2220 = vadd.f32 %v2219, 1.0
    %v2221 = vrcp.pop %v2220
    %v2222 = vmul.f32 1.0, %v2221
    %v2223 = vtanh.pop %v2216
    %v2224 = vmul.f32 %v2222, %v2131
    %2226 = vrot.lane.b32.xlu0 %v2223, 32
    %v2227 = vpop.permute.xlu0 %2226
    %v2229 = vmul.f32 %v2222, %v2227
    %2231 = vrot.lane.b32.xlu0 %v2229, 32
    %v2232 = vpop.permute.xlu0 %2231
    %v2234 = vadd.f32 %v2224, %v2232
    %v2235 = vtanh.pop %v2234
    %2237 = vrot.lane.b32.xlu0 %v2235, 32
    %v2238 = vpop.permute.xlu0 %2237
    %v2240 = vmul.f32 %v2222, %v2238
    %2242 = vrot.lane.b32.xlu0 %v2240, 64
    %v2243 = vpop.permute.xlu0 %2242
    %2245 = vst.msk [vmem:[%s1149] sm:$0xff] %vm56, %v2243
  $region41: #{forward.1} parent=0 // pred_fallthru
    _
  %v2246 = vld [vmem:[#allocation3] sm:$0xff]
  %v2247 = vld [vmem:[#allocation3 + $0x8] sm:$0xff]
  %v2248 = vld [vmem:[#allocation3 + $0x10] sm:$0xff]
  %v2249 = vld [vmem:[#allocation3 + $0x18] sm:$0xff]
  %v2250 = vld [vmem:[#allocation3 + $0x20] sm:$0xff]
  %v2251 = vld [vmem:[#allocation3 + $0x28] sm:$0xff]
  %v2252 = vld [vmem:[#allocation3 + $0x30] sm:$0xff]
  %v2253 = vld [vmem:[#allocation3 + $0x38] sm:$0xff]
  %v2254 = vld [vmem:[#allocation3 + $0x40] sm:$0xff]
  %v2255 = vld [vmem:[%s7] sm:$0xff]
  %v2256 = vld [vmem:[%s7 + $0x8] sm:$0xff]
  %v2257 = vld [vmem:[%s7 + $0x10] sm:$0xff]
  %v2258 = vld [vmem:[%s7 + $0x18] sm:$0xff]
  %v2259 = vld [vmem:[%s8] sm:$0x1]
  %v2261 = vlaneseq
  %v2262 = vshrl.u32 %v2261, 7
  %v2263 = vsub.s32 0, %v2262
  %v2264 = vrot.slane %v2259, %v2263
  %vm2266 = vcmask 261120
  %v2268 = vsel %vm2266, %v2246, 0
  %v2271 = vsel %vm2266, %v2247, 0
  %v2274 = vsel %vm2266, %v2248, 0
  %v2277 = vsel %vm2266, %v2249, 0
  %v2280 = vsel %vm2266, %v2250, 0
  %v2283 = vsel %vm2266, %v2251, 0
  %v2286 = vsel %vm2266, %v2252, 0
  %v2289 = vsel %vm2266, %v2253, 0
  %v2292 = vsel %vm2266, %v2254, 0
  %2294 = vmatprep.subr.mxu0 0.0
  %2295 = vmatpush1.msra.mxu0 %v2255
  %2296 = vmatprep.subr.mxu0 0.0
  %2297 = vmatpush1.msra.mxu0 %v2256
  %2298 = vmatprep.subr.mxu0 0.0
  %2299 = vmatpush1.msra.mxu0 %v2257
  %2300 = vmatprep.subr.mxu0 0.0
  %2301 = vmatpush1.msra.mxu0 %v2258
  %2302 = vmatprep.subr.mxu0 0.0
  %2303 = vmatpush1.msra.mxu0 0.0
  %2304 = vmatprep.subr.mxu0 0.0
  %2305 = vmatpush1.msra.mxu0 0.0
  %2306 = vmatprep.subr.mxu0 0.0
  %2307 = vmatpush1.msra.mxu0 0.0
  %2308 = vmatprep.subr.mxu0 0.0
  %2309 = vmatpush1.msra.mxu0 0.0
  %2310 = vmatprep.subr.mxu0 0.0
  %2311 = vmatpush1.msra.mxu0 0.0
  %2312 = vmatprep.subr.mxu0 0.0
  %2313 = vmatpush1.msra.mxu0 0.0
  %2314 = vmatprep.subr.mxu0 0.0
  %2315 = vmatpush1.msra.mxu0 0.0
  %2316 = vmatprep.subr.mxu0 0.0
  %2317 = vmatpush1.msra.mxu0 0.0
  %2318 = vmatprep.subr.mxu0 0.0
  %2319 = vmatpush1.msra.mxu0 0.0
  %2320 = vmatprep.subr.mxu0 0.0
  %2321 = vmatpush1.msra.mxu0 0.0
  %2322 = vmatprep.subr.mxu0 0.0
  %2323 = vmatpush1.msra.mxu0 0.0
  %2324 = vmatprep.subr.mxu0 0.0
  %2325 = vmatpush1.msra.mxu0 0.0
  %2326 = vmatprep.subr.mxu0 0.0
  %2327 = vmatpush1.msra.mxu0 0.0
  %2328 = vmatprep.subr.mxu0 0.0
  %2329 = vmatpush1.msra.mxu0 0.0
  %2330 = vmatprep.subr.mxu0 0.0
  %2331 = vmatpush1.msra.mxu0 0.0
  %2332 = vmatprep.subr.mxu0 0.0
  %2333 = vmatpush1.msra.mxu0 0.0
  %2334 = vmatprep.subr.mxu0 0.0
  %2335 = vmatpush1.msra.mxu0 0.0
  %2336 = vmatprep.subr.mxu0 0.0
  %2337 = vmatpush1.msra.mxu0 0.0
  %2338 = vmatprep.subr.mxu0 0.0
  %2339 = vmatpush1.msra.mxu0 0.0
  %2340 = vmatprep.subr.mxu0 0.0
  %2341 = vmatpush1.msra.mxu0 0.0
  %2342 = vmatprep.subr.mxu0 0.0
  %2343 = vmatpush1.msra.mxu0 0.0
  %2344 = vmatprep.subr.mxu0 0.0
  %2345 = vmatpush1.msra.mxu0 0.0
  %2346 = vmatprep.subr.mxu0 0.0
  %2347 = vmatpush1.msra.mxu0 0.0
  %2348 = vmatprep.subr.mxu0 0.0
  %2349 = vmatpush1.msra.mxu0 0.0
  %2350 = vmatprep.subr.mxu0 0.0
  %2351 = vmatpush1.msra.mxu0 0.0
  %2352 = vmatprep.subr.mxu0 0.0
  %2353 = vmatpush1.msra.mxu0 0.0
  %2354 = vmatprep.subr.mxu0 0.0
  %2355 = vmatpush1.msra.mxu0 0.0
  %2356 = vmatprep.subr.mxu0 0.0
  %2357 = vmatpush1.msra.mxu0 0.0
  %2358 = vmatprep.mubr.f32.mxu0 0.0
  %2359 = vmatmul.mubr.f32.gmra.mrb[0].mxu0 %v2268
  %v2360 = vpop.f32.mrb[0].mxu0
  %v2361 = vadd.f32 %v2264, %v2360
  %v2362 = vpop.f32.mrb[0].mxu0
  %2363 = vmatprep.mubr.f32.mxu0 0.0
  %2364 = vmatmul.mubr.f32.gmra.mrb[0].mxu0 %v2271
  %v2365 = vpop.f32.mrb[0].mxu0
  %v2366 = vadd.f32 %v2264, %v2365
  %v2367 = vpop.f32.mrb[0].mxu0
  %2368 = vmatprep.mubr.f32.mxu0 0.0
  %2369 = vmatmul.mubr.f32.gmra.mrb[0].mxu0 %v2274
  %v2370 = vpop.f32.mrb[0].mxu0
  %v2371 = vadd.f32 %v2264, %v2370
  %v2372 = vpop.f32.mrb[0].mxu0
  %2373 = vmatprep.mubr.f32.mxu0 0.0
  %2374 = vmatmul.mubr.f32.gmra.mrb[0].mxu0 %v2277
  %v2375 = vpop.f32.mrb[0].mxu0
  %v2376 = vadd.f32 %v2264, %v2375
  %v2377 = vpop.f32.mrb[0].mxu0
  %2378 = vmatprep.mubr.f32.mxu0 0.0
  %2379 = vmatmul.mubr.f32.gmra.mrb[0].mxu0 %v2280
  %v2380 = vpop.f32.mrb[0].mxu0
  %v2381 = vadd.f32 %v2264, %v2380
  %v2382 = vpop.f32.mrb[0].mxu0
  %2383 = vmatprep.mubr.f32.mxu0 0.0
  %2384 = vmatmul.mubr.f32.gmra.mrb[0].mxu0 %v2283
  %v2385 = vpop.f32.mrb[0].mxu0
  %v2386 = vadd.f32 %v2264, %v2385
  %v2387 = vpop.f32.mrb[0].mxu0
  %2388 = vmatprep.mubr.f32.mxu0 0.0
  %2389 = vmatmul.mubr.f32.gmra.mrb[0].mxu0 %v2286
  %v2390 = vpop.f32.mrb[0].mxu0
  %v2391 = vadd.f32 %v2264, %v2390
  %v2392 = vpop.f32.mrb[0].mxu0
  %2393 = vmatprep.mubr.f32.mxu0 0.0
  %2394 = vmatmul.mubr.f32.gmra.mrb[0].mxu0 %v2289
  %v2395 = vpop.f32.mrb[0].mxu0
  %v2396 = vadd.f32 %v2264, %v2395
  %v2397 = vpop.f32.mrb[0].mxu0
  %2398 = vmatprep.mubr.f32.mxu0 0.0
  %2399 = vmatmul.mubr.f32.gmra.mrb[0].mxu0 %v2292
  %v2400 = vpop.f32.mrb[0].mxu0
  %v2401 = vadd.f32 %v2264, %v2400
  %v2402 = vpop.f32.mrb[0].mxu0
  %2403 = vdwg.mxu0
  %2404 = vst [vmem:[%s9] sm:$0xff] %v2361
  %2405 = vst [vmem:[%s9 + $0x8] sm:$0xff] %v2366
  %2406 = vst [vmem:[%s9 + $0x10] sm:$0xff] %v2371
  %2407 = vst [vmem:[%s9 + $0x18] sm:$0xff] %v2376
  %2408 = vst [vmem:[%s9 + $0x20] sm:$0xff] %v2381
  %2409 = vst [vmem:[%s9 + $0x28] sm:$0xff] %v2386
  %2410 = vst [vmem:[%s9 + $0x30] sm:$0xff] %v2391
  %2411 = vst [vmem:[%s9 + $0x38] sm:$0xff] %v2396
  %2412 = vst [vmem:[%s9 + $0x40] sm:$0xff] %v2401
  // Predicated region
  $region42: #{forward.1} parent=0 // pred_check
    _
  $region43: #{forward.1} parent=0 // pred_check_branch
    %2414 = sbr.rel (0) target = $region45
  $region44: #{forward.1} parent=0 // pred_region
    _
  $region45: #{forward.1} parent=0 // pred_fallthru
    _
  // Predicated region
  $region46: #{forward.1} parent=0 // pred_check
    _
  $region47: #{forward.1} parent=0 // pred_check_branch
    %2416 = sbr.rel (0) target = $region49
  $region48: #{forward.1} parent=0 // pred_region
    _
  $region49: #{forward.1} parent=0 // pred_fallthru
    _

</llo_original>
